<compile_context>
chip_gen: v7x
topology: tpu7x:2x2x1
jax: 0.10.0
libtpu: 0.0.40
codegen_flags: <defaults>
</compile_context>

<pallas_src>
import functools

import jax
import jax.numpy as jnp
from jax.experimental import pallas as pl
from jax.experimental.pallas import tpu as pltpu


# ---------------------------------------------------------------------------
# Fused kernel
# ---------------------------------------------------------------------------

def _cnn_fused_kernel(x_ref, w1b_ref, b1_ref, w2b_ref, b2_ref,
                      wfc1_ref, bfc1_ref, wfc2_ref, bfc2_ref, out_ref, *, tb):
    """Full forward pass for one tile of `tb` samples (activations stay in VMEM).

    x_ref   : [1, 7*tb, 112] bf16  row = q*tb + b (q in [0,7)); lane = r*28 + w
                                   (r in [0,4)) holds input pixel (4q + r, w).
    w1b_ref : [2, 112, 1024] bf16  banded conv1 weight for row-block offset
                                   s in {0,1}; col = wpar*512 + o*128 + (j*10+c),
                                   conv row = 4i + o, conv col = 2j + wpar.
    w2b_ref : [5, 128, 160] bf16   banded conv2 weight per kh tap; row = j*10+ci
                                   (rows 120..127 zero), col = wpar*80 + v*20 + c.
    wfc1_ref: [4, 80, 64] bf16     fc1 weight per pooled row u; row = v*20 + c,
                                   output cols 50..63 are zero padding.
    wfc2_ref: [64, 128] bf16       fc2 padded to a lane-dense output.
    """
    f32, bf16 = jnp.float32, jnp.bfloat16
    xc = x_ref[0]                                                # [7*tb, 112] bf16

    # ---- conv1 (+bias) + 2x2 max-pool + ReLU: two K=112 MXU dots -----------
    acc = (jnp.dot(xc[:6 * tb], w1b_ref[0], preferred_element_type=f32) +
           jnp.dot(xc[tb:], w1b_ref[1], preferred_element_type=f32))   # [6tb,1024]
    pw = jnp.maximum(acc[:, :512], acc[:, 512:])                 # pool along W
    h1 = []                                                      # parity-split maps
    for ip in range(2):
        hp = jnp.maximum(pw[:, (2 * ip) * 128:(2 * ip + 1) * 128],
                         pw[:, (2 * ip + 1) * 128:(2 * ip + 2) * 128])  # pool along H
        h1.append(jnp.maximum(hp + b1_ref[...], 0.0).astype(bf16))      # [6tb, 128]

    # TODO(synk): nn.Dropout2d after conv2 is stochastic in training; it is the
    # inference-mode identity here.

    # ---- conv2 (+bias) + 2x2 max-pool + ReLU --------------------------------
    acc2 = [None, None]                                          # per pool row-offset
    for kh in range(5):
        w2k = w2b_ref[kh]                                        # [128, 160]
        for dr in range(2):
            m = dr + kh                                          # h1 pooled row = 2u + m
            ip, s = m % 2, m // 2
            p = jnp.dot(h1[ip][s * tb:(s + 4) * tb], w2k,
                        preferred_element_type=f32)              # [4tb, 160]
            acc2[dr] = p if acc2[dr] is None else acc2[dr] + p
    a, b = acc2
    pooled2 = jnp.maximum(jnp.maximum(a[:, :80], a[:, 80:]),
                          jnp.maximum(b[:, :80], b[:, 80:]))
    h2 = jnp.maximum(pooled2 + b2_ref[...], 0.0).astype(bf16)    # [4tb, 80]

    # ---- fc1 + ReLU (torch NCHW flatten folded into the weight layout) ------
    hid = None
    for u in range(4):
        t = jnp.dot(h2[u * tb:(u + 1) * tb], wfc1_ref[u],
                    preferred_element_type=f32)
        hid = t if hid is None else hid + t
    hid = jnp.maximum(hid + bfc1_ref[...], 0.0).astype(bf16)     # [tb, 64]
    # TODO(synk): F.dropout(x, training=...) is the inference-mode identity here.

    # ---- fc2 + log_softmax (lane-dense 128-wide output) ---------------------
    z = jnp.dot(hid, wfc2_ref[...], preferred_element_type=f32) + bfc2_ref[...]
    zmax = jnp.max(z, axis=-1, keepdims=True)
    ez = jnp.exp(z - zmax)
    out_ref[...] = z - zmax - jnp.log(jnp.sum(ez, axis=-1, keepdims=True))


# ---------------------------------------------------------------------------
# XLA-side one-time prep: banded bf16 weights + lane-packed, batch-tiled input
# ---------------------------------------------------------------------------

def _prep_operands(params, x_nchw, tb):
    f32, bf16 = jnp.float32, jnp.bfloat16

    # conv1 -> two banded weights [2, 112, 1024] (row-block offset s in {0,1}).
    # Row l = r*28 + win; col = wpar*512 + o*128 + (j*10 + co), conv output
    # row 4i + o, output col 2j + wpar; lanes 120..127 of each 128-block zero.
    w1 = params["conv1_w"].astype(f32)[:, 0]                        # [10, 5, 5]
    r = jnp.arange(112) // 28
    win = jnp.arange(112) % 28
    col = jnp.arange(1024)
    wpar = col // 512
    o = (col % 512) // 128
    lane = col % 128
    j, co = lane // 10, lane % 10
    kw = win[:, None] - (2 * j + wpar)[None, :]                     # [112, 1024]
    kw_ok = (kw >= 0) & (kw < 5) & (lane < 120)[None, :]
    bands = []
    for s in (0, 1):
        kh = (4 * s + r)[:, None] - o[None, :]                      # [112, 1024]
        valid = kw_ok & (kh >= 0) & (kh < 5)
        vals = w1[co[None, :], jnp.clip(kh, 0, 4), jnp.clip(kw, 0, 4)]
        bands.append(jnp.where(valid, vals, 0.0))
    w1band = jnp.stack(bands).astype(bf16)                          # [2, 112, 1024]
    b1t = jnp.pad(jnp.tile(params["conv1_b"].astype(f32), 12),
                  (0, 8)).reshape(1, 128)

    # conv2 -> banded [5, 128, 160]; row = j*10 + ci (rows 120..127 zero),
    # col = wpar*80 + v*20 + c2, conv output col = 2v + wpar.
    w2 = params["conv2_w"].astype(f32)                              # [20, 10, 5, 5]
    row = jnp.arange(128)
    jr, ci = row // 10, row % 10
    c = jnp.arange(160)
    wpar2 = c // 80
    v, c2 = (c % 80) // 20, c % 20
    kw2 = jr[:, None] - (2 * v + wpar2)[None, :]                    # [128, 160]
    valid2 = ((kw2 >= 0) & (kw2 < 5) & (row < 120)[:, None])[None]
    vals2 = w2[c2[None, None, :], ci[None, :, None],
               jnp.arange(5)[:, None, None], jnp.clip(kw2, 0, 4)[None]]
    w2band = jnp.where(valid2, vals2, 0.0).astype(bf16)             # [5, 128, 160]
    b2t = jnp.tile(params["conv2_b"].astype(f32), 4).reshape(1, 80)

    # fc1: fold torch's x.view(-1, 320) (NCHW order) into the weight layout,
    # pad the 50 outputs to 64 lanes (zero cols / zero bias extension).
    wfc1 = (params["fc1_w"].astype(f32).reshape(50, 20, 4, 4)
            .transpose(2, 3, 1, 0).reshape(4, 80, 50))
    wfc1 = jnp.pad(wfc1, ((0, 0), (0, 0), (0, 14))).astype(bf16)    # [4, 80, 64]
    bfc1 = jnp.pad(params["fc1_b"].astype(f32), (0, 14)).reshape(1, 64)

    # fc2: pad to [64, 128]; pad-lane biases are -1e30 so they never win the
    # softmax max and their exp underflows to 0 (lane-dense output writeback).
    wfc2 = jnp.zeros((64, 128), f32).at[:50, :10].set(
        params["fc2_w"].astype(f32).T).astype(bf16)
    bfc2 = jnp.full((1, 128), -1e30, f32).at[0, :10].set(
        params["fc2_b"].astype(f32))

    # input: [B,1,28,28] -> batch-pad, pack the 4 H-phases along lanes
    # (lane = r*28 + w), split into batch tiles of tb rows each, cast bf16.
    B = x_nchw.shape[0]
    nt = -(-B // tb)
    bp = nt * tb
    x = x_nchw.astype(f32).reshape(B, 28, 28)
    x = jnp.pad(x, ((0, bp - B), (0, 0), (0, 0)))
    x = x.reshape(bp, 7, 4, 28).transpose(1, 0, 2, 3)               # [7, bp, 4, 28]
    x = x.reshape(7, nt, tb, 112).transpose(1, 0, 2, 3)             # [nt, 7, tb, 112]
    x = x.reshape(nt, 7 * tb, 112).astype(bf16)                     # rows = (q, b)
    return (x, w1band, b1t, w2band, b2t, wfc1, bfc1, wfc2, bfc2), nt, bp


# ---------------------------------------------------------------------------
# Public forward + params
# ---------------------------------------------------------------------------

def _round_up(x, m):
    return -(-x // m) * m


def _pick_tile_b(batch):
    """Batch tile: big enough to fill the MXU and amortize the ~0.35us grid
    step, capped at 256 (keeps the tile footprint well under v7x's 64 MiB
    VMEM), a multiple of 16 (bf16 sublane packing), and nudged so the tile
    count is even (keeps both v7x TensorCores busy on the 'parallel' axis)."""
    tb = min(256, _round_up(batch, 16))
    nt = -(-batch // tb)
    if nt > 1 and nt % 2 == 1:
        tb = _round_up(-(-batch // (nt + 1)), 16)
    return tb


def cnn_forward(params, x_nchw, *, tile_b=None):
    B = x_nchw.shape[0]
    assert x_nchw.shape[1:] == (1, 28, 28), x_nchw.shape
    tb = _round_up(tile_b, 16) if tile_b is not None else _pick_tile_b(B)
    operands, nt, bp = _prep_operands(params, x_nchw, tb)

    out = pl.pallas_call(
        functools.partial(_cnn_fused_kernel, tb=tb),
        out_shape=jax.ShapeDtypeStruct((bp, 128), jnp.float32),
        grid=(nt,),
        in_specs=[
            pl.BlockSpec((1, 7 * tb, 112), lambda i: (i, 0, 0)),    # input tile
            pl.BlockSpec((2, 112, 1024), lambda i: (0, 0, 0)),      # conv1 bands
            pl.BlockSpec((1, 128), lambda i: (0, 0)),               # conv1 bias
            pl.BlockSpec((5, 128, 160), lambda i: (0, 0, 0)),       # conv2 bands
            pl.BlockSpec((1, 80), lambda i: (0, 0)),                # conv2 bias
            pl.BlockSpec((4, 80, 64), lambda i: (0, 0, 0)),         # fc1 (permuted)
            pl.BlockSpec((1, 64), lambda i: (0, 0)),                # fc1 bias
            pl.BlockSpec((64, 128), lambda i: (0, 0)),              # fc2
            pl.BlockSpec((1, 128), lambda i: (0, 0)),               # fc2 bias
        ],
        out_specs=pl.BlockSpec((tb, 128), lambda i: (i, 0)),
        compiler_params=pltpu.CompilerParams(
            dimension_semantics=("parallel",),
            vmem_limit_bytes=48 * 1024 * 1024),
    )(*operands)
    return out[:B, :10]


def init_params(key):
    """torch-default init U(-1/sqrt(fan_in), +1/sqrt(fan_in))."""
    def uniform(k, shape, fan_in):
        bound = 1.0 / (fan_in ** 0.5)
        return jax.random.uniform(k, shape, jnp.float32, -bound, bound)
    ks = jax.random.split(key, 8)
    return {
        "conv1_w": uniform(ks[0], (10, 1, 5, 5), 1 * 25),
        "conv1_b": uniform(ks[1], (10,), 1 * 25),
        "conv2_w": uniform(ks[2], (20, 10, 5, 5), 10 * 25),
        "conv2_b": uniform(ks[3], (20,), 10 * 25),
        "fc1_w": uniform(ks[4], (50, 320), 320),
        "fc1_b": uniform(ks[5], (50,), 320),
        "fc2_w": uniform(ks[6], (10, 50), 50),
        "fc2_b": uniform(ks[7], (10,), 50),
    }


def cnn_reference(params, x_nchw):
    """Plain-JAX/XLA reference of the torch module (eval mode), f32 HIGHEST."""
    hi = jax.lax.Precision.HIGHEST
    dn = ("NCHW", "OIHW", "NCHW")
    c1 = jax.lax.conv_general_dilated(x_nchw, params["conv1_w"], (1, 1), "VALID",
                                      dimension_numbers=dn, precision=hi)
    c1 = c1 + params["conv1_b"][None, :, None, None]
    r1 = jnp.maximum(jax.lax.reduce_window(c1, -jnp.inf, jax.lax.max,
                                           (1, 1, 2, 2), (1, 1, 2, 2), "VALID"), 0.0)
    c2 = jax.lax.conv_general_dilated(r1, params["conv2_w"], (1, 1), "VALID",
                                      dimension_numbers=dn, precision=hi)
    c2 = c2 + params["conv2_b"][None, :, None, None]
    r2 = jnp.maximum(jax.lax.reduce_window(c2, -jnp.inf, jax.lax.max,
                                           (1, 1, 2, 2), (1, 1, 2, 2), "VALID"), 0.0)
    flat = r2.reshape(r2.shape[0], 320)
    h = jnp.maximum(jnp.dot(flat, params["fc1_w"].T, precision=hi) + params["fc1_b"], 0.0)
    z = jnp.dot(h, params["fc2_w"].T, precision=hi) + params["fc2_b"]
    return jax.nn.log_softmax(z, axis=-1)


if __name__ == "__main__":
    key = jax.random.PRNGKey(0)
    pkey, xkey = jax.random.split(key)
    params = init_params(pkey)
    x = jax.random.normal(xkey, (2, 1, 28, 28), jnp.float32)

    out = jax.jit(cnn_forward)(params, x)
    out = jax.block_until_ready(out)

    assert out.shape == (2, 10), out.shape
    assert bool(jnp.all(jnp.isfinite(out)))
    # log_softmax rows must exponentiate-sum to 1
    assert bool(jnp.allclose(jnp.sum(jnp.exp(out), axis=1), 1.0, atol=1e-4))
    # match the f32 HIGHEST XLA reference (kernel uses bf16 MXU operands,
    # hence the deliberately relaxed tolerance)
    ref = cnn_reference(params, x)
    err = float(jnp.max(jnp.abs(out - ref)))
    assert bool(jnp.allclose(out, ref, atol=2e-2, rtol=2e-2)), err
    print("KERNEL_OK")
</pallas_src>

<mosaic_0001>
module attributes {stable_mosaic.version = 11 : i64} {
  func.func @_cnn_fused_kernel(%arg0: i32, %arg1: memref<1x112x112xbf16, #tpu.memory_space<vmem>>, %arg2: memref<2x112x1024xbf16, #tpu.memory_space<vmem>>, %arg3: memref<1x128xf32, #tpu.memory_space<vmem>>, %arg4: memref<5x128x160xbf16, #tpu.memory_space<vmem>>, %arg5: memref<1x80xf32, #tpu.memory_space<vmem>>, %arg6: memref<4x80x64xbf16, #tpu.memory_space<vmem>>, %arg7: memref<1x64xf32, #tpu.memory_space<vmem>>, %arg8: memref<64x128xbf16, #tpu.memory_space<vmem>>, %arg9: memref<1x128xf32, #tpu.memory_space<vmem>>, %arg10: memref<16x128xf32, #tpu.memory_space<vmem>>) attributes {dimension_semantics = [#tpu.dimension_semantics<parallel>], iteration_bounds = array<i64: 1>, scalar_prefetch = 0 : i64, scratch_operands = 0 : i64, tpu.core_type = #tpu.core_type<tc>, window_params = [{transform_indices = @transform_0, window_bounds = array<i64: 1, 112, 112>}, {pipeline_mode = #tpu.pipeline_mode<synchronous>, transform_indices = @transform_1, window_bounds = array<i64: 2, 112, 1024>}, {pipeline_mode = #tpu.pipeline_mode<synchronous>, transform_indices = @transform_2, window_bounds = array<i64: 1, 128>}, {pipeline_mode = #tpu.pipeline_mode<synchronous>, transform_indices = @transform_3, window_bounds = array<i64: 5, 128, 160>}, {pipeline_mode = #tpu.pipeline_mode<synchronous>, transform_indices = @transform_4, window_bounds = array<i64: 1, 80>}, {pipeline_mode = #tpu.pipeline_mode<synchronous>, transform_indices = @transform_5, window_bounds = array<i64: 4, 80, 64>}, {pipeline_mode = #tpu.pipeline_mode<synchronous>, transform_indices = @transform_6, window_bounds = array<i64: 1, 64>}, {pipeline_mode = #tpu.pipeline_mode<synchronous>, transform_indices = @transform_7, window_bounds = array<i64: 64, 128>}, {pipeline_mode = #tpu.pipeline_mode<synchronous>, transform_indices = @transform_8, window_bounds = array<i64: 1, 128>}, {transform_indices = @transform_9, window_bounds = array<i64: 16, 128>}]} {
    %c0 = arith.constant 0 : index
    %c0_0 = arith.constant 0 : index
    %c0_1 = arith.constant 0 : index
    %0 = vector.load %arg1[%c0, %c0_0, %c0_1] : memref<1x112x112xbf16, #tpu.memory_space<vmem>>, vector<1x112x112xbf16>
    %1 = vector.shape_cast %0 : vector<1x112x112xbf16> to vector<112x112xbf16>
    %2 = vector.extract_strided_slice %1 {offsets = [0, 0], sizes = [96, 112], strides = [1, 1]} : vector<112x112xbf16> to vector<96x112xbf16>
    %c0_2 = arith.constant 0 : index
    %c0_3 = arith.constant 0 : index
    %c0_4 = arith.constant 0 : index
    %3 = vector.load %arg2[%c0_2, %c0_3, %c0_4] : memref<2x112x1024xbf16, #tpu.memory_space<vmem>>, vector<1x112x1024xbf16>
    %4 = vector.shape_cast %3 : vector<1x112x1024xbf16> to vector<112x1024xbf16>
    %cst = arith.constant dense<0.000000e+00> : vector<96x1024xf32>
    %5 = tpu.matmul %2, %4, %cst {dimension_numbers = #tpu.dot_dimension_numbers<[1], [0], [0], [1], [0, 0, 1, 1], [], []>} : vector<96x112xbf16>, vector<112x1024xbf16>, vector<96x1024xf32> -> vector<96x1024xf32>
    %6 = vector.extract_strided_slice %1 {offsets = [16, 0], sizes = [96, 112], strides = [1, 1]} : vector<112x112xbf16> to vector<96x112xbf16>
    %c1 = arith.constant 1 : index
    %c0_5 = arith.constant 0 : index
    %c0_6 = arith.constant 0 : index
    %7 = vector.load %arg2[%c1, %c0_5, %c0_6] : memref<2x112x1024xbf16, #tpu.memory_space<vmem>>, vector<1x112x1024xbf16>
    %8 = vector.shape_cast %7 : vector<1x112x1024xbf16> to vector<112x1024xbf16>
    %cst_7 = arith.constant dense<0.000000e+00> : vector<96x1024xf32>
    %9 = tpu.matmul %6, %8, %cst_7 {dimension_numbers = #tpu.dot_dimension_numbers<[1], [0], [0], [1], [0, 0, 1, 1], [], []>} : vector<96x112xbf16>, vector<112x1024xbf16>, vector<96x1024xf32> -> vector<96x1024xf32>
    %10 = arith.addf %5, %9 : vector<96x1024xf32>
    %11 = vector.extract_strided_slice %10 {offsets = [0, 0], sizes = [96, 512], strides = [1, 1]} : vector<96x1024xf32> to vector<96x512xf32>
    %12 = vector.extract_strided_slice %10 {offsets = [0, 512], sizes = [96, 512], strides = [1, 1]} : vector<96x1024xf32> to vector<96x512xf32>
    %13 = arith.maximumf %11, %12 : vector<96x512xf32>
    %14 = vector.extract_strided_slice %13 {offsets = [0, 0], sizes = [96, 128], strides = [1, 1]} : vector<96x512xf32> to vector<96x128xf32>
    %15 = vector.extract_strided_slice %13 {offsets = [0, 128], sizes = [96, 128], strides = [1, 1]} : vector<96x512xf32> to vector<96x128xf32>
    %16 = arith.maximumf %14, %15 : vector<96x128xf32>
    %c0_8 = arith.constant 0 : index
    %c0_9 = arith.constant 0 : index
    %17 = vector.load %arg3[%c0_8, %c0_9] : memref<1x128xf32, #tpu.memory_space<vmem>>, vector<1x128xf32>
    %18 = vector.broadcast %17 : vector<1x128xf32> to vector<96x128xf32>
    %19 = arith.addf %16, %18 : vector<96x128xf32>
    %cst_10 = arith.constant 0.000000e+00 : f32
    %20 = vector.broadcast %cst_10 : f32 to vector<96x128xf32>
    %21 = arith.maximumf %19, %20 : vector<96x128xf32>
    %22 = arith.truncf %21 : vector<96x128xf32> to vector<96x128xbf16>
    %23 = vector.extract_strided_slice %13 {offsets = [0, 256], sizes = [96, 128], strides = [1, 1]} : vector<96x512xf32> to vector<96x128xf32>
    %24 = vector.extract_strided_slice %13 {offsets = [0, 384], sizes = [96, 128], strides = [1, 1]} : vector<96x512xf32> to vector<96x128xf32>
    %25 = arith.maximumf %23, %24 : vector<96x128xf32>
    %c0_11 = arith.constant 0 : index
    %c0_12 = arith.constant 0 : index
    %26 = vector.load %arg3[%c0_11, %c0_12] : memref<1x128xf32, #tpu.memory_space<vmem>>, vector<1x128xf32>
    %27 = vector.broadcast %26 : vector<1x128xf32> to vector<96x128xf32>
    %28 = arith.addf %25, %27 : vector<96x128xf32>
    %cst_13 = arith.constant 0.000000e+00 : f32
    %29 = vector.broadcast %cst_13 : f32 to vector<96x128xf32>
    %30 = arith.maximumf %28, %29 : vector<96x128xf32>
    %31 = arith.truncf %30 : vector<96x128xf32> to vector<96x128xbf16>
    %c0_14 = arith.constant 0 : index
    %c0_15 = arith.constant 0 : index
    %c0_16 = arith.constant 0 : index
    %32 = vector.load %arg4[%c0_14, %c0_15, %c0_16] : memref<5x128x160xbf16, #tpu.memory_space<vmem>>, vector<1x128x160xbf16>
    %33 = vector.shape_cast %32 : vector<1x128x160xbf16> to vector<128x160xbf16>
    %34 = vector.extract_strided_slice %22 {offsets = [0, 0], sizes = [64, 128], strides = [1, 1]} : vector<96x128xbf16> to vector<64x128xbf16>
    %cst_17 = arith.constant dense<0.000000e+00> : vector<64x160xf32>
    %35 = tpu.matmul %34, %33, %cst_17 {dimension_numbers = #tpu.dot_dimension_numbers<[1], [0], [0], [1], [0, 0, 1, 1], [], []>} : vector<64x128xbf16>, vector<128x160xbf16>, vector<64x160xf32> -> vector<64x160xf32>
    %36 = vector.extract_strided_slice %31 {offsets = [0, 0], sizes = [64, 128], strides = [1, 1]} : vector<96x128xbf16> to vector<64x128xbf16>
    %cst_18 = arith.constant dense<0.000000e+00> : vector<64x160xf32>
    %37 = tpu.matmul %36, %33, %cst_18 {dimension_numbers = #tpu.dot_dimension_numbers<[1], [0], [0], [1], [0, 0, 1, 1], [], []>} : vector<64x128xbf16>, vector<128x160xbf16>, vector<64x160xf32> -> vector<64x160xf32>
    %c1_19 = arith.constant 1 : index
    %c0_20 = arith.constant 0 : index
    %c0_21 = arith.constant 0 : index
    %38 = vector.load %arg4[%c1_19, %c0_20, %c0_21] : memref<5x128x160xbf16, #tpu.memory_space<vmem>>, vector<1x128x160xbf16>
    %39 = vector.shape_cast %38 : vector<1x128x160xbf16> to vector<128x160xbf16>
    %40 = vector.extract_strided_slice %31 {offsets = [0, 0], sizes = [64, 128], strides = [1, 1]} : vector<96x128xbf16> to vector<64x128xbf16>
    %cst_22 = arith.constant dense<0.000000e+00> : vector<64x160xf32>
    %41 = tpu.matmul %40, %39, %cst_22 {dimension_numbers = #tpu.dot_dimension_numbers<[1], [0], [0], [1], [0, 0, 1, 1], [], []>} : vector<64x128xbf16>, vector<128x160xbf16>, vector<64x160xf32> -> vector<64x160xf32>
    %42 = arith.addf %35, %41 : vector<64x160xf32>
    %43 = vector.extract_strided_slice %22 {offsets = [16, 0], sizes = [64, 128], strides = [1, 1]} : vector<96x128xbf16> to vector<64x128xbf16>
    %cst_23 = arith.constant dense<0.000000e+00> : vector<64x160xf32>
    %44 = tpu.matmul %43, %39, %cst_23 {dimension_numbers = #tpu.dot_dimension_numbers<[1], [0], [0], [1], [0, 0, 1, 1], [], []>} : vector<64x128xbf16>, vector<128x160xbf16>, vector<64x160xf32> -> vector<64x160xf32>
    %45 = arith.addf %37, %44 : vector<64x160xf32>
    %c2 = arith.constant 2 : index
    %c0_24 = arith.constant 0 : index
    %c0_25 = arith.constant 0 : index
    %46 = vector.load %arg4[%c2, %c0_24, %c0_25] : memref<5x128x160xbf16, #tpu.memory_space<vmem>>, vector<1x128x160xbf16>
    %47 = vector.shape_cast %46 : vector<1x128x160xbf16> to vector<128x160xbf16>
    %48 = vector.extract_strided_slice %22 {offsets = [16, 0], sizes = [64, 128], strides = [1, 1]} : vector<96x128xbf16> to vector<64x128xbf16>
    %cst_26 = arith.constant dense<0.000000e+00> : vector<64x160xf32>
    %49 = tpu.matmul %48, %47, %cst_26 {dimension_numbers = #tpu.dot_dimension_numbers<[1], [0], [0], [1], [0, 0, 1, 1], [], []>} : vector<64x128xbf16>, vector<128x160xbf16>, vector<64x160xf32> -> vector<64x160xf32>
    %50 = arith.addf %42, %49 : vector<64x160xf32>
    %51 = vector.extract_strided_slice %31 {offsets = [16, 0], sizes = [64, 128], strides = [1, 1]} : vector<96x128xbf16> to vector<64x128xbf16>
    %cst_27 = arith.constant dense<0.000000e+00> : vector<64x160xf32>
    %52 = tpu.matmul %51, %47, %cst_27 {dimension_numbers = #tpu.dot_dimension_numbers<[1], [0], [0], [1], [0, 0, 1, 1], [], []>} : vector<64x128xbf16>, vector<128x160xbf16>, vector<64x160xf32> -> vector<64x160xf32>
    %53 = arith.addf %45, %52 : vector<64x160xf32>
    %c3 = arith.constant 3 : index
    %c0_28 = arith.constant 0 : index
    %c0_29 = arith.constant 0 : index
    %54 = vector.load %arg4[%c3, %c0_28, %c0_29] : memref<5x128x160xbf16, #tpu.memory_space<vmem>>, vector<1x128x160xbf16>
    %55 = vector.shape_cast %54 : vector<1x128x160xbf16> to vector<128x160xbf16>
    %56 = vector.extract_strided_slice %31 {offsets = [16, 0], sizes = [64, 128], strides = [1, 1]} : vector<96x128xbf16> to vector<64x128xbf16>
    %cst_30 = arith.constant dense<0.000000e+00> : vector<64x160xf32>
    %57 = tpu.matmul %56, %55, %cst_30 {dimension_numbers = #tpu.dot_dimension_numbers<[1], [0], [0], [1], [0, 0, 1, 1], [], []>} : vector<64x128xbf16>, vector<128x160xbf16>, vector<64x160xf32> -> vector<64x160xf32>
    %58 = arith.addf %50, %57 : vector<64x160xf32>
    %59 = vector.extract_strided_slice %22 {offsets = [32, 0], sizes = [64, 128], strides = [1, 1]} : vector<96x128xbf16> to vector<64x128xbf16>
    %cst_31 = arith.constant dense<0.000000e+00> : vector<64x160xf32>
    %60 = tpu.matmul %59, %55, %cst_31 {dimension_numbers = #tpu.dot_dimension_numbers<[1], [0], [0], [1], [0, 0, 1, 1], [], []>} : vector<64x128xbf16>, vector<128x160xbf16>, vector<64x160xf32> -> vector<64x160xf32>
    %61 = arith.addf %53, %60 : vector<64x160xf32>
    %c4 = arith.constant 4 : index
    %c0_32 = arith.constant 0 : index
    %c0_33 = arith.constant 0 : index
    %62 = vector.load %arg4[%c4, %c0_32, %c0_33] : memref<5x128x160xbf16, #tpu.memory_space<vmem>>, vector<1x128x160xbf16>
    %63 = vector.shape_cast %62 : vector<1x128x160xbf16> to vector<128x160xbf16>
    %64 = vector.extract_strided_slice %22 {offsets = [32, 0], sizes = [64, 128], strides = [1, 1]} : vector<96x128xbf16> to vector<64x128xbf16>
    %cst_34 = arith.constant dense<0.000000e+00> : vector<64x160xf32>
    %65 = tpu.matmul %64, %63, %cst_34 {dimension_numbers = #tpu.dot_dimension_numbers<[1], [0], [0], [1], [0, 0, 1, 1], [], []>} : vector<64x128xbf16>, vector<128x160xbf16>, vector<64x160xf32> -> vector<64x160xf32>
    %66 = arith.addf %58, %65 : vector<64x160xf32>
    %67 = vector.extract_strided_slice %31 {offsets = [32, 0], sizes = [64, 128], strides = [1, 1]} : vector<96x128xbf16> to vector<64x128xbf16>
    %cst_35 = arith.constant dense<0.000000e+00> : vector<64x160xf32>
    %68 = tpu.matmul %67, %63, %cst_35 {dimension_numbers = #tpu.dot_dimension_numbers<[1], [0], [0], [1], [0, 0, 1, 1], [], []>} : vector<64x128xbf16>, vector<128x160xbf16>, vector<64x160xf32> -> vector<64x160xf32>
    %69 = arith.addf %61, %68 : vector<64x160xf32>
    %70 = vector.extract_strided_slice %66 {offsets = [0, 0], sizes = [64, 80], strides = [1, 1]} : vector<64x160xf32> to vector<64x80xf32>
    %71 = vector.extract_strided_slice %66 {offsets = [0, 80], sizes = [64, 80], strides = [1, 1]} : vector<64x160xf32> to vector<64x80xf32>
    %72 = arith.maximumf %70, %71 : vector<64x80xf32>
    %73 = vector.extract_strided_slice %69 {offsets = [0, 0], sizes = [64, 80], strides = [1, 1]} : vector<64x160xf32> to vector<64x80xf32>
    %74 = vector.extract_strided_slice %69 {offsets = [0, 80], sizes = [64, 80], strides = [1, 1]} : vector<64x160xf32> to vector<64x80xf32>
    %75 = arith.maximumf %73, %74 : vector<64x80xf32>
    %76 = arith.maximumf %72, %75 : vector<64x80xf32>
    %c0_36 = arith.constant 0 : index
    %c0_37 = arith.constant 0 : index
    %77 = vector.load %arg5[%c0_36, %c0_37] : memref<1x80xf32, #tpu.memory_space<vmem>>, vector<1x80xf32>
    %78 = vector.broadcast %77 : vector<1x80xf32> to vector<64x80xf32>
    %79 = arith.addf %76, %78 : vector<64x80xf32>
    %cst_38 = arith.constant 0.000000e+00 : f32
    %80 = vector.broadcast %cst_38 : f32 to vector<64x80xf32>
    %81 = arith.maximumf %79, %80 : vector<64x80xf32>
    %82 = arith.truncf %81 : vector<64x80xf32> to vector<64x80xbf16>
    %83 = vector.extract_strided_slice %82 {offsets = [0, 0], sizes = [16, 80], strides = [1, 1]} : vector<64x80xbf16> to vector<16x80xbf16>
    %c0_39 = arith.constant 0 : index
    %c0_40 = arith.constant 0 : index
    %c0_41 = arith.constant 0 : index
    %84 = vector.load %arg6[%c0_39, %c0_40, %c0_41] : memref<4x80x64xbf16, #tpu.memory_space<vmem>>, vector<1x80x64xbf16>
    %85 = vector.shape_cast %84 : vector<1x80x64xbf16> to vector<80x64xbf16>
    %cst_42 = arith.constant dense<0.000000e+00> : vector<16x64xf32>
    %86 = tpu.matmul %83, %85, %cst_42 {dimension_numbers = #tpu.dot_dimension_numbers<[1], [0], [0], [1], [0, 0, 1, 1], [], []>} : vector<16x80xbf16>, vector<80x64xbf16>, vector<16x64xf32> -> vector<16x64xf32>
    %87 = vector.extract_strided_slice %82 {offsets = [16, 0], sizes = [16, 80], strides = [1, 1]} : vector<64x80xbf16> to vector<16x80xbf16>
    %c1_43 = arith.constant 1 : index
    %c0_44 = arith.constant 0 : index
    %c0_45 = arith.constant 0 : index
    %88 = vector.load %arg6[%c1_43, %c0_44, %c0_45] : memref<4x80x64xbf16, #tpu.memory_space<vmem>>, vector<1x80x64xbf16>
    %89 = vector.shape_cast %88 : vector<1x80x64xbf16> to vector<80x64xbf16>
    %cst_46 = arith.constant dense<0.000000e+00> : vector<16x64xf32>
    %90 = tpu.matmul %87, %89, %cst_46 {dimension_numbers = #tpu.dot_dimension_numbers<[1], [0], [0], [1], [0, 0, 1, 1], [], []>} : vector<16x80xbf16>, vector<80x64xbf16>, vector<16x64xf32> -> vector<16x64xf32>
    %91 = arith.addf %86, %90 : vector<16x64xf32>
    %92 = vector.extract_strided_slice %82 {offsets = [32, 0], sizes = [16, 80], strides = [1, 1]} : vector<64x80xbf16> to vector<16x80xbf16>
    %c2_47 = arith.constant 2 : index
    %c0_48 = arith.constant 0 : index
    %c0_49 = arith.constant 0 : index
    %93 = vector.load %arg6[%c2_47, %c0_48, %c0_49] : memref<4x80x64xbf16, #tpu.memory_space<vmem>>, vector<1x80x64xbf16>
    %94 = vector.shape_cast %93 : vector<1x80x64xbf16> to vector<80x64xbf16>
    %cst_50 = arith.constant dense<0.000000e+00> : vector<16x64xf32>
    %95 = tpu.matmul %92, %94, %cst_50 {dimension_numbers = #tpu.dot_dimension_numbers<[1], [0], [0], [1], [0, 0, 1, 1], [], []>} : vector<16x80xbf16>, vector<80x64xbf16>, vector<16x64xf32> -> vector<16x64xf32>
    %96 = arith.addf %91, %95 : vector<16x64xf32>
    %97 = vector.extract_strided_slice %82 {offsets = [48, 0], sizes = [16, 80], strides = [1, 1]} : vector<64x80xbf16> to vector<16x80xbf16>
    %c3_51 = arith.constant 3 : index
    %c0_52 = arith.constant 0 : index
    %c0_53 = arith.constant 0 : index
    %98 = vector.load %arg6[%c3_51, %c0_52, %c0_53] : memref<4x80x64xbf16, #tpu.memory_space<vmem>>, vector<1x80x64xbf16>
    %99 = vector.shape_cast %98 : vector<1x80x64xbf16> to vector<80x64xbf16>
    %cst_54 = arith.constant dense<0.000000e+00> : vector<16x64xf32>
    %100 = tpu.matmul %97, %99, %cst_54 {dimension_numbers = #tpu.dot_dimension_numbers<[1], [0], [0], [1], [0, 0, 1, 1], [], []>} : vector<16x80xbf16>, vector<80x64xbf16>, vector<16x64xf32> -> vector<16x64xf32>
    %101 = arith.addf %96, %100 : vector<16x64xf32>
    %c0_55 = arith.constant 0 : index
    %c0_56 = arith.constant 0 : index
    %102 = vector.load %arg7[%c0_55, %c0_56] : memref<1x64xf32, #tpu.memory_space<vmem>>, vector<1x64xf32>
    %103 = vector.broadcast %102 : vector<1x64xf32> to vector<16x64xf32>
    %104 = arith.addf %101, %103 : vector<16x64xf32>
    %cst_57 = arith.constant 0.000000e+00 : f32
    %105 = vector.broadcast %cst_57 : f32 to vector<16x64xf32>
    %106 = arith.maximumf %104, %105 : vector<16x64xf32>
    %107 = arith.truncf %106 : vector<16x64xf32> to vector<16x64xbf16>
    %c0_58 = arith.constant 0 : index
    %c0_59 = arith.constant 0 : index
    %108 = vector.load %arg8[%c0_58, %c0_59] : memref<64x128xbf16, #tpu.memory_space<vmem>>, vector<64x128xbf16>
    %cst_60 = arith.constant dense<0.000000e+00> : vector<16x128xf32>
    %109 = tpu.matmul %107, %108, %cst_60 {dimension_numbers = #tpu.dot_dimension_numbers<[1], [0], [0], [1], [0, 0, 1, 1], [], []>} : vector<16x64xbf16>, vector<64x128xbf16>, vector<16x128xf32> -> vector<16x128xf32>
    %c0_61 = arith.constant 0 : index
    %c0_62 = arith.constant 0 : index
    %110 = vector.load %arg9[%c0_61, %c0_62] : memref<1x128xf32, #tpu.memory_space<vmem>>, vector<1x128xf32>
    %111 = vector.broadcast %110 : vector<1x128xf32> to vector<16x128xf32>
    %112 = arith.addf %109, %111 : vector<16x128xf32>
    %cst_63 = arith.constant dense<0xFF800000> : vector<16xf32>
    %113 = vector.multi_reduction <maximumf>, %112, %cst_63 [1] : vector<16x128xf32> to vector<16xf32>
    %114 = vector.shape_cast %113 : vector<16xf32> to vector<16x1xf32>
    %115 = vector.broadcast %114 : vector<16x1xf32> to vector<16x128xf32>
    %116 = arith.subf %112, %115 : vector<16x128xf32>
    %117 = math.exp %116 : vector<16x128xf32>
    %118 = vector.broadcast %114 : vector<16x1xf32> to vector<16x128xf32>
    %119 = arith.subf %112, %118 : vector<16x128xf32>
    %cst_64 = arith.constant dense<0.000000e+00> : vector<16xf32>
    %120 = vector.multi_reduction <add>, %117, %cst_64 [1] : vector<16x128xf32> to vector<16xf32>
    %121 = vector.shape_cast %120 : vector<16xf32> to vector<16x1xf32>
    %122 = math.log %121 : vector<16x1xf32>
    %123 = vector.broadcast %122 : vector<16x1xf32> to vector<16x128xf32>
    %124 = arith.subf %119, %123 : vector<16x128xf32>
    %c0_65 = arith.constant 0 : index
    %c0_66 = arith.constant 0 : index
    %125 = vector.load %arg10[%c0_65, %c0_66] : memref<16x128xf32, #tpu.memory_space<vmem>>, vector<16x128xf32>
    tpu.vector_store %arg10[%c0_65, %c0_66], %124 {strides = array<i32>} : memref<16x128xf32, #tpu.memory_space<vmem>>, vector<16x128xf32>,
    return
  }
  func.func @transform_0(%arg0: i32) -> (i32, i32, i32) {
    %c0_i32 = arith.constant 0 : i32
    %c0_i32_0 = arith.constant 0 : i32
    %c0_i32_1 = arith.constant 0 : i32
    return %arg0, %c0_i32, %c0_i32_0 : i32, i32, i32
  }
  func.func @transform_1(%arg0: i32) -> (i32, i32, i32) {
    %c0_i32 = arith.constant 0 : i32
    %c0_i32_0 = arith.constant 0 : i32
    %c0_i32_1 = arith.constant 0 : i32
    %c0_i32_2 = arith.constant 0 : i32
    return %c0_i32, %c0_i32_0, %c0_i32_1 : i32, i32, i32
  }
  func.func @transform_2(%arg0: i32) -> (i32, i32) {
    %c0_i32 = arith.constant 0 : i32
    %c0_i32_0 = arith.constant 0 : i32
    %c0_i32_1 = arith.constant 0 : i32
    return %c0_i32, %c0_i32_0 : i32, i32
  }
  func.func @transform_3(%arg0: i32) -> (i32, i32, i32) {
    %c0_i32 = arith.constant 0 : i32
    %c0_i32_0 = arith.constant 0 : i32
    %c0_i32_1 = arith.constant 0 : i32
    %c0_i32_2 = arith.constant 0 : i32
    return %c0_i32, %c0_i32_0, %c0_i32_1 : i32, i32, i32
  }
  func.func @transform_4(%arg0: i32) -> (i32, i32) {
    %c0_i32 = arith.constant 0 : i32
    %c0_i32_0 = arith.constant 0 : i32
    %c0_i32_1 = arith.constant 0 : i32
    return %c0_i32, %c0_i32_0 : i32, i32
  }
  func.func @transform_5(%arg0: i32) -> (i32, i32, i32) {
    %c0_i32 = arith.constant 0 : i32
    %c0_i32_0 = arith.constant 0 : i32
    %c0_i32_1 = arith.constant 0 : i32
    %c0_i32_2 = arith.constant 0 : i32
    return %c0_i32, %c0_i32_0, %c0_i32_1 : i32, i32, i32
  }
  func.func @transform_6(%arg0: i32) -> (i32, i32) {
    %c0_i32 = arith.constant 0 : i32
    %c0_i32_0 = arith.constant 0 : i32
    %c0_i32_1 = arith.constant 0 : i32
    return %c0_i32, %c0_i32_0 : i32, i32
  }
  func.func @transform_7(%arg0: i32) -> (i32, i32) {
    %c0_i32 = arith.constant 0 : i32
    %c0_i32_0 = arith.constant 0 : i32
    %c0_i32_1 = arith.constant 0 : i32
    return %c0_i32, %c0_i32_0 : i32, i32
  }
  func.func @transform_8(%arg0: i32) -> (i32, i32) {
    %c0_i32 = arith.constant 0 : i32
    %c0_i32_0 = arith.constant 0 : i32
    %c0_i32_1 = arith.constant 0 : i32
    return %c0_i32, %c0_i32_0 : i32, i32
  }
  func.func @transform_9(%arg0: i32) -> (i32, i32) {
    %c0_i32 = arith.constant 0 : i32
    %c0_i32_0 = arith.constant 0 : i32
    return %arg0, %c0_i32 : i32, i32
  }
}

</mosaic_0001>

<llo_original>
// kernel: tile.13
$region0: #{tile.13}
  #allocation0 [shape = 's32[1]{0}', space=sflag, size = 0x4, scoped, tag = 'scoped memory for tile.13']
  %s0 = inlined_call_operand.vmem [shape: f32[10], index: 0, kind: input, shape index: {}]
  %s1 = inlined_call_operand.vmem [shape: f32[12,10], index: 1, kind: output, shape index: {}]
  // Predicated region
  $region2: #{tile.13} parent=0 // pred_check
    _
  $region3: #{tile.13} parent=0 // pred_check_branch
    %3 = sbr.rel (0) target = $region5
  $region4: #{tile.13} parent=0 // pred_region
    _
  $region5: #{tile.13} parent=0 // pred_fallthru
    _
  %v4 = vld [vmem:[%s0] ss:$0 sm:$0xff]
  %5 = vst [vmem:[%s1] sm:$0xff] %v4
  %s6 = scalar_lea.vmem %s1, 8
  %7 = vst [vmem:[%s6] sm:$0xff] %v4

// kernel: tile.14
$region0: #{tile.14}
  %s0 = inlined_call_operand.vmem [shape: f32[12,10], index: 0, kind: input, shape index: {}]
  %s1 = inlined_call_operand.vmem [shape: f32[120], index: 1, kind: output, shape index: {}]
  $region1: #{tile.14} parent=0
    #allocation0 [shape = 'u8[4096]{0}', space=vmem, size = 0x1000, scoped, tag = 'scoped mem for output reshape']
    %v2 = vld [vmem:[%s0] sm:$0x1]
    %vm3 = vcmask 80896
    %4 = vst.msk [vmem:[#allocation0] sm:$0x1] %vm3, %v2
    %s5 = scalar_lea.vmem %s0, 11
    %v6 = vld [vmem:[%s5] sm:$0x1]
    %7 = vrot.lane.b32.xlu0 %v6, 110
    %v8 = vpop.permute.xlu0 %7
    %vm9 = vcmask 982896
    %10 = vst.msk [vmem:[#allocation0] sm:$0x1] %vm9, %v8
    %s11 = scalar_lea.vmem %s0, 10
    %v12 = vld [vmem:[%s11] sm:$0x1]
    %13 = vrot.lane.b32.xlu0 %v12, 100
    %v14 = vpop.permute.xlu0 %13
    %vm15 = vcmask 900896
    %16 = vst.msk [vmem:[#allocation0] sm:$0x1] %vm15, %v14
    %s17 = scalar_lea.vmem %s0, 9
    %v18 = vld [vmem:[%s17] sm:$0x1]
    %19 = vrot.lane.b32.xlu0 %v18, 90
    %v20 = vpop.permute.xlu0 %19
    %vm21 = vcmask 818896
    %22 = vst.msk [vmem:[#allocation0] sm:$0x1] %vm21, %v20
    %s23 = scalar_lea.vmem %s0, 8
    %v24 = vld [vmem:[%s23] sm:$0x1]
    %25 = vrot.lane.b32.xlu0 %v24, 80
    %v26 = vpop.permute.xlu0 %25
    %vm27 = vcmask 736896
    %28 = vst.msk [vmem:[#allocation0] sm:$0x1] %vm27, %v26
    %s29 = scalar_lea.vmem %s0, 7
    %v30 = vld [vmem:[%s29] sm:$0x1]
    %31 = vrot.lane.b32.xlu0 %v30, 70
    %v32 = vpop.permute.xlu0 %31
    %vm33 = vcmask 654896
    %34 = vst.msk [vmem:[#allocation0] sm:$0x1] %vm33, %v32
    %s35 = scalar_lea.vmem %s0, 6
    %v36 = vld [vmem:[%s35] sm:$0x1]
    %37 = vrot.lane.b32.xlu0 %v36, 60
    %v38 = vpop.permute.xlu0 %37
    %vm39 = vcmask 572896
    %40 = vst.msk [vmem:[#allocation0] sm:$0x1] %vm39, %v38
    %s41 = scalar_lea.vmem %s0, 5
    %v42 = vld [vmem:[%s41] sm:$0x1]
    %43 = vrot.lane.b32.xlu0 %v42, 50
    %v44 = vpop.permute.xlu0 %43
    %vm45 = vcmask 490896
    %46 = vst.msk [vmem:[#allocation0] sm:$0x1] %vm45, %v44
    %s47 = scalar_lea.vmem %s0, 4
    %v48 = vld [vmem:[%s47] sm:$0x1]
    %49 = vrot.lane.b32.xlu0 %v48, 40
    %v50 = vpop.permute.xlu0 %49
    %vm51 = vcmask 408896
    %52 = vst.msk [vmem:[#allocation0] sm:$0x1] %vm51, %v50
    %s53 = scalar_lea.vmem %s0, 3
    %v54 = vld [vmem:[%s53] sm:$0x1]
    %55 = vrot.lane.b32.xlu0 %v54, 30
    %v56 = vpop.permute.xlu0 %55
    %vm57 = vcmask 326896
    %58 = vst.msk [vmem:[#allocation0] sm:$0x1] %vm57, %v56
    %s59 = scalar_lea.vmem %s0, 2
    %v60 = vld [vmem:[%s59] sm:$0x1]
    %61 = vrot.lane.b32.xlu0 %v60, 20
    %v62 = vpop.permute.xlu0 %61
    %vm63 = vcmask 244896
    %64 = vst.msk [vmem:[#allocation0] sm:$0x1] %vm63, %v62
    %s65 = scalar_lea.vmem %s0, 1
    %v66 = vld [vmem:[%s65] sm:$0x1]
    %67 = vrot.lane.b32.xlu0 %v66, 10
    %v68 = vpop.permute.xlu0 %67
    %vm69 = vcmask 162896
    %70 = vst.msk [vmem:[#allocation0] sm:$0x1] %vm69, %v68
    %s72 = sshllo.u32 0, 1
    %v74 = vld [vmem:[#allocation0] sm:%s72]
    %s75 = sshllo.u32 0, 1
    %76 = vst [vmem:[%s1] sm:%s75] %v74

// kernel: tile.18
$region0: #{tile.18}
  #allocation0 [shape = 's32[1]{0}', space=sflag, size = 0x4, scoped, tag = 'scoped memory for tile.18']
  %s0 = inlined_call_operand.vmem [shape: f32[20], index: 0, kind: input, shape index: {}]
  %s1 = inlined_call_operand.vmem [shape: f32[4,20], index: 1, kind: output, shape index: {}]
  // Predicated region
  $region2: #{tile.18} parent=0 // pred_check
    _
  $region3: #{tile.18} parent=0 // pred_check_branch
    %3 = sbr.rel (0) target = $region5
  $region4: #{tile.18} parent=0 // pred_region
    _
  $region5: #{tile.18} parent=0 // pred_fallthru
    _
  %v4 = vld [vmem:[%s0] ss:$0 sm:$0xff]
  %5 = vst [vmem:[%s1] sm:$0xf] %v4

// kernel: tile.19
$region0: #{tile.19}
  %s0 = inlined_call_operand.vmem [shape: f32[4,20], index: 0, kind: input, shape index: {}]
  %s1 = inlined_call_operand.vmem [shape: f32[1,80], index: 1, kind: output, shape index: {}]
  $region1: #{tile.19} parent=0
    #allocation0 [shape = 'u8[4096]{0}', space=vmem, size = 0x1000, scoped, tag = 'scoped mem for output reshape']
    #allocation1 [shape = 'u8[4096]{0}', space=vmem, size = 0x1000, scoped, tag = 'scoped mem for input reshape']
    %s3 = sshllo.u32 0, 4
    %v4 = vld [vmem:[%s0] sm:%s3]
    %5 = vst [vmem:[#allocation1] sm:%s3] %v4
    %v6 = vld [vmem:[#allocation1] sm:$0x1]
    %vm7 = vcmask 162816
    %8 = vst.msk [vmem:[#allocation0] sm:$0x1] %vm7, %v6
    %s9 = scalar_lea.vmem [#allocation1], 3
    %v10 = vld [vmem:[%s9] sm:$0x1]
    %11 = vrot.lane.b32.xlu0 %v10, 60
    %v12 = vpop.permute.xlu0 %11
    %vm13 = vcmask 654816
    %14 = vst.msk [vmem:[#allocation0] sm:$0x1] %vm13, %v12
    %s15 = scalar_lea.vmem [#allocation1], 2
    %v16 = vld [vmem:[%s15] sm:$0x1]
    %17 = vrot.lane.b32.xlu0 %v16, 40
    %v18 = vpop.permute.xlu0 %17
    %vm19 = vcmask 490816
    %20 = vst.msk [vmem:[#allocation0] sm:$0x1] %vm19, %v18
    %s21 = scalar_lea.vmem [#allocation1], 1
    %v22 = vld [vmem:[%s21] sm:$0x1]
    %23 = vrot.lane.b32.xlu0 %v22, 20
    %v24 = vpop.permute.xlu0 %23
    %vm25 = vcmask 326816
    %26 = vst.msk [vmem:[#allocation0] sm:$0x1] %vm25, %v24
    %s28 = sshllo.u32 0, 1
    %v30 = vld [vmem:[#allocation0] sm:%s28]
    %s31 = sshllo.u32 0, 1
    %32 = vst [vmem:[%s1] sm:%s31] %v30

// kernel: cnn_forward.1
$region0: #{cnn_forward.1}
  #allocation0 [shape = 'u32[]', space=smem, size = 0x4, offset = 0x4, fixed_abs, tag = 'smem constant byte address 0x4 - core index']
  #allocation1 [shape = 'u32[144,128]{1,0:T(1,128)}', space=vmem, size = 0x12000, scoped, tag = 'internal scratch']
  %s0 = inlined_call_operand.vmem [shape: bf16[1,112,112], index: 0, kind: input, shape index: {}]
  %s1 = inlined_call_operand.vmem [shape: bf16[2,112,1024], index: 1, kind: input, shape index: {}]
  %s2 = inlined_call_operand.vmem [shape: f32[1,128], index: 2, kind: input, shape index: {}]
  %s3 = inlined_call_operand.vmem [shape: bf16[5,128,160], index: 3, kind: input, shape index: {}]
  %s4 = inlined_call_operand.vmem [shape: f32[1,80], index: 4, kind: input, shape index: {}]
  %s5 = inlined_call_operand.vmem [shape: bf16[4,80,64], index: 5, kind: input, shape index: {}]
  %s6 = inlined_call_operand.vmem [shape: f32[1,64], index: 6, kind: input, shape index: {}]
  %s7 = inlined_call_operand.vmem [shape: bf16[64,128], index: 7, kind: input, shape index: {}]
  %s8 = inlined_call_operand.vmem [shape: f32[1,128], index: 8, kind: input, shape index: {}]
  %s9 = inlined_call_operand.vmem [shape: f32[16,128], index: 9, kind: output, shape index: {}]
  %s10 = sld [smem:[#allocation0]]
  $region46: #{cnn_forward.1} parent=0
    _
  %s12 = ssub.s32 1, %s10
  %s13 = scalar_select 0, %s12, %s10
  // Predicated region
  $region2: #{cnn_forward.1} parent=0 // pred_check
    _
  $region3: #{cnn_forward.1} parent=0 // pred_check_branch
    %15 = sbr.rel (0) target = $region5
  $region4: #{cnn_forward.1} parent=0 // pred_region
    _
  $region5: #{cnn_forward.1} parent=0 // pred_fallthru
    _
  // Predicated region
  $region6: #{cnn_forward.1} parent=0 // pred_check
    _
  $region7: #{cnn_forward.1} parent=0 // pred_check_branch
    %17 = sbr.rel (0) target = $region9
  $region8: #{cnn_forward.1} parent=0 // pred_region
    _
  $region9: #{cnn_forward.1} parent=0 // pred_fallthru
    _
  // Predicated region
  $region10: #{cnn_forward.1} parent=0 // pred_check
    _
  $region11: #{cnn_forward.1} parent=0 // pred_check_branch
    %19 = sbr.rel (0) target = $region13
  $region12: #{cnn_forward.1} parent=0 // pred_region
    _
  $region13: #{cnn_forward.1} parent=0 // pred_fallthru
    _
  // Predicated region
  $region14: #{cnn_forward.1} parent=0 // pred_check
    _
  $region15: #{cnn_forward.1} parent=0 // pred_check_branch
    %21 = sbr.rel (0) target = $region17
  $region16: #{cnn_forward.1} parent=0 // pred_region
    _
  $region17: #{cnn_forward.1} parent=0 // pred_fallthru
    _
  // Predicated region
  $region18: #{cnn_forward.1} parent=0 // pred_check
    _
  $region19: #{cnn_forward.1} parent=0 // pred_check_branch
    %23 = sbr.rel (0) target = $region21
  $region20: #{cnn_forward.1} parent=0 // pred_region
    _
  $region21: #{cnn_forward.1} parent=0 // pred_fallthru
    _
  // Predicated region
  $region22: #{cnn_forward.1} parent=0 // pred_check
    _
  $region23: #{cnn_forward.1} parent=0 // pred_check_branch
    %25 = sbr.rel (0) target = $region25
  $region24: #{cnn_forward.1} parent=0 // pred_region
    _
  $region25: #{cnn_forward.1} parent=0 // pred_fallthru
    _
  // Predicated region
  $region26: #{cnn_forward.1} parent=0 // pred_check
    _
  $region27: #{cnn_forward.1} parent=0 // pred_check_branch
    %27 = sbr.rel (0) target = $region29
  $region28: #{cnn_forward.1} parent=0 // pred_region
    _
  $region29: #{cnn_forward.1} parent=0 // pred_fallthru
    _
  // Predicated region
  $region30: #{cnn_forward.1} parent=0 // pred_check
    _
  $region31: #{cnn_forward.1} parent=0 // pred_check_branch
    %29 = sbr.rel (0) target = $region33
  $region32: #{cnn_forward.1} parent=0 // pred_region
    _
  $region33: #{cnn_forward.1} parent=0 // pred_fallthru
    _
  // Predicated region
  $region34: #{cnn_forward.1} parent=0 // pred_check
    _
  $region35: #{cnn_forward.1} parent=0 // pred_check_branch
    %31 = sbr.rel (0) target = $region37
  $region36: #{cnn_forward.1} parent=0 // pred_region
    _
  $region37: #{cnn_forward.1} parent=0 // pred_fallthru
    _
  %v33 = vld [vmem:[%s0] sm:$0xf]
  %v34 = vld [vmem:[%s0 + $0x4] sm:$0xf]
  %v35 = vld [vmem:[%s0 + $0x8] sm:$0xf]
  %v36 = vld [vmem:[%s0 + $0xc] sm:$0xf]
  %v37 = vld [vmem:[%s0 + $0x10] sm:$0xf]
  %v38 = vld [vmem:[%s0 + $0x14] sm:$0xf]
  %v39 = vld [vmem:[%s0 + $0x18] sm:$0xf]
  %v40 = vld [vmem:[%s0 + $0x1c] sm:$0xf]
  %v41 = vld [vmem:[%s0 + $0x20] sm:$0xf]
  %v42 = vld [vmem:[%s0 + $0x24] sm:$0xf]
  %v43 = vld [vmem:[%s0 + $0x28] sm:$0xf]
  %v44 = vld [vmem:[%s0 + $0x2c] sm:$0xf]
  %v45 = vld [vmem:[%s0 + $0x30] sm:$0xf]
  %v46 = vld [vmem:[%s0 + $0x34] sm:$0xf]
  %v47 = vld [vmem:[%s1] sm:$0xff]
  %v48 = vld [vmem:[%s1 + $0x8] sm:$0xff]
  %v49 = vld [vmem:[%s1 + $0x10] sm:$0xff]
  %v50 = vld [vmem:[%s1 + $0x18] sm:$0xff]
  %v51 = vld [vmem:[%s1 + $0x20] sm:$0xff]
  %v52 = vld [vmem:[%s1 + $0x28] sm:$0xff]
  %v53 = vld [vmem:[%s1 + $0x30] sm:$0xff]
  %v54 = vld [vmem:[%s1 + $0x38] sm:$0xff]
  %v55 = vld [vmem:[%s1 + $0x40] sm:$0xff]
  %v56 = vld [vmem:[%s1 + $0x48] sm:$0xff]
  %v57 = vld [vmem:[%s1 + $0x50] sm:$0xff]
  %v58 = vld [vmem:[%s1 + $0x58] sm:$0xff]
  %v59 = vld [vmem:[%s1 + $0x60] sm:$0xff]
  %v60 = vld [vmem:[%s1 + $0x68] sm:$0xff]
  %v61 = vld [vmem:[%s1 + $0x70] sm:$0xff]
  %v62 = vld [vmem:[%s1 + $0x78] sm:$0xff]
  %v63 = vld [vmem:[%s1 + $0x80] sm:$0xff]
  %v64 = vld [vmem:[%s1 + $0x88] sm:$0xff]
  %v65 = vld [vmem:[%s1 + $0x90] sm:$0xff]
  %v66 = vld [vmem:[%s1 + $0x98] sm:$0xff]
  %v67 = vld [vmem:[%s1 + $0xa0] sm:$0xff]
  %v68 = vld [vmem:[%s1 + $0xa8] sm:$0xff]
  %v69 = vld [vmem:[%s1 + $0xb0] sm:$0xff]
  %v70 = vld [vmem:[%s1 + $0xb8] sm:$0xff]
  %v71 = vld [vmem:[%s1 + $0xc0] sm:$0xff]
  %v72 = vld [vmem:[%s1 + $0xc8] sm:$0xff]
  %v73 = vld [vmem:[%s1 + $0xd0] sm:$0xff]
  %v74 = vld [vmem:[%s1 + $0xd8] sm:$0xff]
  %v75 = vld [vmem:[%s1 + $0xe0] sm:$0xff]
  %v76 = vld [vmem:[%s1 + $0xe8] sm:$0xff]
  %v77 = vld [vmem:[%s1 + $0xf0] sm:$0xff]
  %v78 = vld [vmem:[%s1 + $0xf8] sm:$0xff]
  %v79 = vld [vmem:[%s1 + $0x100] sm:$0xff]
  %v80 = vld [vmem:[%s1 + $0x108] sm:$0xff]
  %v81 = vld [vmem:[%s1 + $0x110] sm:$0xff]
  %v82 = vld [vmem:[%s1 + $0x118] sm:$0xff]
  %v83 = vld [vmem:[%s1 + $0x120] sm:$0xff]
  %v84 = vld [vmem:[%s1 + $0x128] sm:$0xff]
  %v85 = vld [vmem:[%s1 + $0x130] sm:$0xff]
  %v86 = vld [vmem:[%s1 + $0x138] sm:$0xff]
  %v87 = vld [vmem:[%s1 + $0x140] sm:$0xff]
  %v88 = vld [vmem:[%s1 + $0x148] sm:$0xff]
  %v89 = vld [vmem:[%s1 + $0x150] sm:$0xff]
  %v90 = vld [vmem:[%s1 + $0x158] sm:$0xff]
  %v91 = vld [vmem:[%s1 + $0x160] sm:$0xff]
  %v92 = vld [vmem:[%s1 + $0x168] sm:$0xff]
  %v93 = vld [vmem:[%s1 + $0x170] sm:$0xff]
  %v94 = vld [vmem:[%s1 + $0x178] sm:$0xff]
  %v95 = vld [vmem:[%s1 + $0x180] sm:$0xff]
  %v96 = vld [vmem:[%s1 + $0x188] sm:$0xff]
  %v97 = vld [vmem:[%s1 + $0x190] sm:$0xff]
  %v98 = vld [vmem:[%s1 + $0x198] sm:$0xff]
  %v99 = vld [vmem:[%s1 + $0x1a0] sm:$0xff]
  %v100 = vld [vmem:[%s1 + $0x1a8] sm:$0xff]
  %v101 = vld [vmem:[%s1 + $0x1b0] sm:$0xff]
  %v102 = vld [vmem:[%s1 + $0x1b8] sm:$0xff]
  %s103 = scalar_lea.vmem %s1, 448
  %v104 = vld [vmem:[%s103] sm:$0xff]
  %v105 = vld [vmem:[%s103 + $0x8] sm:$0xff]
  %v106 = vld [vmem:[%s103 + $0x10] sm:$0xff]
  %v107 = vld [vmem:[%s103 + $0x18] sm:$0xff]
  %v108 = vld [vmem:[%s103 + $0x20] sm:$0xff]
  %v109 = vld [vmem:[%s103 + $0x28] sm:$0xff]
  %v110 = vld [vmem:[%s103 + $0x30] sm:$0xff]
  %v111 = vld [vmem:[%s103 + $0x38] sm:$0xff]
  %v112 = vld [vmem:[%s103 + $0x40] sm:$0xff]
  %v113 = vld [vmem:[%s103 + $0x48] sm:$0xff]
  %v114 = vld [vmem:[%s103 + $0x50] sm:$0xff]
  %v115 = vld [vmem:[%s103 + $0x58] sm:$0xff]
  %v116 = vld [vmem:[%s103 + $0x60] sm:$0xff]
  %v117 = vld [vmem:[%s103 + $0x68] sm:$0xff]
  %v118 = vld [vmem:[%s103 + $0x70] sm:$0xff]
  %v119 = vld [vmem:[%s103 + $0x78] sm:$0xff]
  %v120 = vld [vmem:[%s103 + $0x80] sm:$0xff]
  %v121 = vld [vmem:[%s103 + $0x88] sm:$0xff]
  %v122 = vld [vmem:[%s103 + $0x90] sm:$0xff]
  %v123 = vld [vmem:[%s103 + $0x98] sm:$0xff]
  %v124 = vld [vmem:[%s103 + $0xa0] sm:$0xff]
  %v125 = vld [vmem:[%s103 + $0xa8] sm:$0xff]
  %v126 = vld [vmem:[%s103 + $0xb0] sm:$0xff]
  %v127 = vld [vmem:[%s103 + $0xb8] sm:$0xff]
  %v128 = vld [vmem:[%s103 + $0xc0] sm:$0xff]
  %v129 = vld [vmem:[%s103 + $0xc8] sm:$0xff]
  %v130 = vld [vmem:[%s103 + $0xd0] sm:$0xff]
  %v131 = vld [vmem:[%s103 + $0xd8] sm:$0xff]
  %v132 = vld [vmem:[%s103 + $0xe0] sm:$0xff]
  %v133 = vld [vmem:[%s103 + $0xe8] sm:$0xff]
  %v134 = vld [vmem:[%s103 + $0xf0] sm:$0xff]
  %v135 = vld [vmem:[%s103 + $0xf8] sm:$0xff]
  %v136 = vld [vmem:[%s103 + $0x100] sm:$0xff]
  %v137 = vld [vmem:[%s103 + $0x108] sm:$0xff]
  %v138 = vld [vmem:[%s103 + $0x110] sm:$0xff]
  %v139 = vld [vmem:[%s103 + $0x118] sm:$0xff]
  %v140 = vld [vmem:[%s103 + $0x120] sm:$0xff]
  %v141 = vld [vmem:[%s103 + $0x128] sm:$0xff]
  %v142 = vld [vmem:[%s103 + $0x130] sm:$0xff]
  %v143 = vld [vmem:[%s103 + $0x138] sm:$0xff]
  %v144 = vld [vmem:[%s103 + $0x140] sm:$0xff]
  %v145 = vld [vmem:[%s103 + $0x148] sm:$0xff]
  %v146 = vld [vmem:[%s103 + $0x150] sm:$0xff]
  %v147 = vld [vmem:[%s103 + $0x158] sm:$0xff]
  %v148 = vld [vmem:[%s103 + $0x160] sm:$0xff]
  %v149 = vld [vmem:[%s103 + $0x168] sm:$0xff]
  %v150 = vld [vmem:[%s103 + $0x170] sm:$0xff]
  %v151 = vld [vmem:[%s103 + $0x178] sm:$0xff]
  %v152 = vld [vmem:[%s103 + $0x180] sm:$0xff]
  %v153 = vld [vmem:[%s103 + $0x188] sm:$0xff]
  %v154 = vld [vmem:[%s103 + $0x190] sm:$0xff]
  %v155 = vld [vmem:[%s103 + $0x198] sm:$0xff]
  %v156 = vld [vmem:[%s103 + $0x1a0] sm:$0xff]
  %v157 = vld [vmem:[%s103 + $0x1a8] sm:$0xff]
  %v158 = vld [vmem:[%s103 + $0x1b0] sm:$0xff]
  %v159 = vld [vmem:[%s103 + $0x1b8] sm:$0xff]
  %v172 = vunpack.c.l.b16 %v35
  %v173 = vunpack.c.l.b16 %v36
  %v174 = vunpack.c.l.b16 %v37
  %v175 = vunpack.c.l.b16 %v38
  %v176 = vunpack.c.l.b16 %v39
  %v177 = vunpack.c.l.b16 %v40
  %v178 = vunpack.c.l.b16 %v41
  %v179 = vunpack.c.l.b16 %v42
  %v180 = vunpack.c.l.b16 %v43
  %v181 = vunpack.c.l.b16 %v44
  %v182 = vunpack.c.l.b16 %v45
  %v183 = vunpack.c.l.b16 %v46
  %v184 = vpack.c.b16 %v173, %v172
  %v185 = vpack.c.b16 %v175, %v174
  %v186 = vpack.c.b16 %v177, %v176
  %v187 = vpack.c.b16 %v179, %v178
  %v188 = vpack.c.b16 %v181, %v180
  %v189 = vpack.c.b16 %v183, %v182
  %v246 = vunpack.c.l.b16 %v104
  %v247 = vunpack.c.h.b16 %v104
  %v248 = vunpack.c.l.b16 %v105
  %v249 = vunpack.c.h.b16 %v105
  %v250 = vunpack.c.l.b16 %v106
  %v251 = vunpack.c.h.b16 %v106
  %v252 = vunpack.c.l.b16 %v107
  %v253 = vunpack.c.h.b16 %v107
  %v254 = vunpack.c.l.b16 %v108
  %v255 = vunpack.c.h.b16 %v108
  %v256 = vunpack.c.l.b16 %v109
  %v257 = vunpack.c.h.b16 %v109
  %v258 = vunpack.c.l.b16 %v110
  %v259 = vunpack.c.h.b16 %v110
  %v260 = vunpack.c.l.b16 %v111
  %v261 = vunpack.c.h.b16 %v111
  %v262 = vunpack.c.l.b16 %v112
  %v263 = vunpack.c.h.b16 %v112
  %v264 = vunpack.c.l.b16 %v113
  %v265 = vunpack.c.h.b16 %v113
  %v266 = vunpack.c.l.b16 %v114
  %v267 = vunpack.c.h.b16 %v114
  %v268 = vunpack.c.l.b16 %v115
  %v269 = vunpack.c.h.b16 %v115
  %v270 = vunpack.c.l.b16 %v116
  %v271 = vunpack.c.h.b16 %v116
  %v272 = vunpack.c.l.b16 %v117
  %v273 = vunpack.c.h.b16 %v117
  %v274 = vunpack.c.l.b16 %v118
  %v275 = vunpack.c.h.b16 %v118
  %v276 = vunpack.c.l.b16 %v119
  %v277 = vunpack.c.h.b16 %v119
  %v278 = vunpack.c.l.b16 %v120
  %v279 = vunpack.c.h.b16 %v120
  %v280 = vunpack.c.l.b16 %v121
  %v281 = vunpack.c.h.b16 %v121
  %v282 = vunpack.c.l.b16 %v122
  %v283 = vunpack.c.h.b16 %v122
  %v284 = vunpack.c.l.b16 %v123
  %v285 = vunpack.c.h.b16 %v123
  %v286 = vunpack.c.l.b16 %v124
  %v287 = vunpack.c.h.b16 %v124
  %v288 = vunpack.c.l.b16 %v125
  %v289 = vunpack.c.h.b16 %v125
  %v290 = vunpack.c.l.b16 %v126
  %v291 = vunpack.c.h.b16 %v126
  %v292 = vunpack.c.l.b16 %v127
  %v293 = vunpack.c.h.b16 %v127
  %v294 = vunpack.c.l.b16 %v128
  %v295 = vunpack.c.h.b16 %v128
  %v296 = vunpack.c.l.b16 %v129
  %v297 = vunpack.c.h.b16 %v129
  %v298 = vunpack.c.l.b16 %v130
  %v299 = vunpack.c.h.b16 %v130
  %v300 = vunpack.c.l.b16 %v131
  %v301 = vunpack.c.h.b16 %v131
  %v302 = vunpack.c.l.b16 %v132
  %v303 = vunpack.c.h.b16 %v132
  %v304 = vunpack.c.l.b16 %v133
  %v305 = vunpack.c.h.b16 %v133
  %v306 = vunpack.c.l.b16 %v134
  %v307 = vunpack.c.h.b16 %v134
  %v308 = vunpack.c.l.b16 %v135
  %v309 = vunpack.c.h.b16 %v135
  %v310 = vunpack.c.l.b16 %v136
  %v311 = vunpack.c.h.b16 %v136
  %v312 = vunpack.c.l.b16 %v137
  %v313 = vunpack.c.h.b16 %v137
  %v314 = vunpack.c.l.b16 %v138
  %v315 = vunpack.c.h.b16 %v138
  %v316 = vunpack.c.l.b16 %v139
  %v317 = vunpack.c.h.b16 %v139
  %v318 = vunpack.c.l.b16 %v140
  %v319 = vunpack.c.h.b16 %v140
  %v320 = vunpack.c.l.b16 %v141
  %v321 = vunpack.c.h.b16 %v141
  %v322 = vunpack.c.l.b16 %v142
  %v323 = vunpack.c.h.b16 %v142
  %v324 = vunpack.c.l.b16 %v143
  %v325 = vunpack.c.h.b16 %v143
  %v326 = vunpack.c.l.b16 %v144
  %v327 = vunpack.c.h.b16 %v144
  %v328 = vunpack.c.l.b16 %v145
  %v329 = vunpack.c.h.b16 %v145
  %v330 = vunpack.c.l.b16 %v146
  %v331 = vunpack.c.h.b16 %v146
  %v332 = vunpack.c.l.b16 %v147
  %v333 = vunpack.c.h.b16 %v147
  %v334 = vunpack.c.l.b16 %v148
  %v335 = vunpack.c.h.b16 %v148
  %v336 = vunpack.c.l.b16 %v149
  %v337 = vunpack.c.h.b16 %v149
  %v338 = vunpack.c.l.b16 %v150
  %v339 = vunpack.c.h.b16 %v150
  %v340 = vunpack.c.l.b16 %v151
  %v341 = vunpack.c.h.b16 %v151
  %v342 = vunpack.c.l.b16 %v152
  %v343 = vunpack.c.h.b16 %v152
  %v344 = vunpack.c.l.b16 %v153
  %v345 = vunpack.c.h.b16 %v153
  %v346 = vunpack.c.l.b16 %v154
  %v347 = vunpack.c.h.b16 %v154
  %v348 = vunpack.c.l.b16 %v155
  %v349 = vunpack.c.h.b16 %v155
  %v350 = vunpack.c.l.b16 %v156
  %v351 = vunpack.c.h.b16 %v156
  %v352 = vunpack.c.l.b16 %v157
  %v353 = vunpack.c.h.b16 %v157
  %v354 = vunpack.c.l.b16 %v158
  %v355 = vunpack.c.h.b16 %v158
  %v356 = vunpack.c.l.b16 %v159
  %v357 = vunpack.c.h.b16 %v159
  %v358 = vpack.c.b16 %v254, %v246
  %v359 = vpack.c.b16 %v255, %v247
  %v360 = vpack.c.b16 %v256, %v248
  %v361 = vpack.c.b16 %v257, %v249
  %v362 = vpack.c.b16 %v258, %v250
  %v363 = vpack.c.b16 %v259, %v251
  %v364 = vpack.c.b16 %v260, %v252
  %v365 = vpack.c.b16 %v261, %v253
  %v366 = vpack.c.b16 %v270, %v262
  %v367 = vpack.c.b16 %v271, %v263
  %v368 = vpack.c.b16 %v272, %v264
  %v369 = vpack.c.b16 %v273, %v265
  %v370 = vpack.c.b16 %v274, %v266
  %v371 = vpack.c.b16 %v275, %v267
  %v372 = vpack.c.b16 %v276, %v268
  %v373 = vpack.c.b16 %v277, %v269
  %v374 = vpack.c.b16 %v286, %v278
  %v375 = vpack.c.b16 %v287, %v279
  %v376 = vpack.c.b16 %v288, %v280
  %v377 = vpack.c.b16 %v289, %v281
  %v378 = vpack.c.b16 %v290, %v282
  %v379 = vpack.c.b16 %v291, %v283
  %v380 = vpack.c.b16 %v292, %v284
  %v381 = vpack.c.b16 %v293, %v285
  %v382 = vpack.c.b16 %v302, %v294
  %v383 = vpack.c.b16 %v303, %v295
  %v384 = vpack.c.b16 %v304, %v296
  %v385 = vpack.c.b16 %v305, %v297
  %v386 = vpack.c.b16 %v306, %v298
  %v387 = vpack.c.b16 %v307, %v299
  %v388 = vpack.c.b16 %v308, %v300
  %v389 = vpack.c.b16 %v309, %v301
  %v390 = vpack.c.b16 %v318, %v310
  %v391 = vpack.c.b16 %v319, %v311
  %v392 = vpack.c.b16 %v320, %v312
  %v393 = vpack.c.b16 %v321, %v313
  %v394 = vpack.c.b16 %v322, %v314
  %v395 = vpack.c.b16 %v323, %v315
  %v396 = vpack.c.b16 %v324, %v316
  %v397 = vpack.c.b16 %v325, %v317
  %v398 = vpack.c.b16 %v334, %v326
  %v399 = vpack.c.b16 %v335, %v327
  %v400 = vpack.c.b16 %v336, %v328
  %v401 = vpack.c.b16 %v337, %v329
  %v402 = vpack.c.b16 %v338, %v330
  %v403 = vpack.c.b16 %v339, %v331
  %v404 = vpack.c.b16 %v340, %v332
  %v405 = vpack.c.b16 %v341, %v333
  %v406 = vpack.c.b16 %v350, %v342
  %v407 = vpack.c.b16 %v351, %v343
  %v408 = vpack.c.b16 %v352, %v344
  %v409 = vpack.c.b16 %v353, %v345
  %v410 = vpack.c.b16 %v354, %v346
  %v411 = vpack.c.b16 %v355, %v347
  %v412 = vpack.c.b16 %v356, %v348
  %v413 = vpack.c.b16 %v357, %v349
  %vm470 = vcmask 916480
  %v472 = vsel %vm470, %v184, 0
  %v475 = vsel %vm470, %v185, 0
  %v478 = vsel %vm470, %v186, 0
  %v481 = vsel %vm470, %v187, 0
  %v484 = vsel %vm470, %v188, 0
  %v487 = vsel %vm470, %v189, 0
  %489 = vmatprep.subr.bf16.mxu0 %v359
  %490 = vmatpush1.bf16.msra.mxu0 %v358
  %491 = vmatprep.subr.bf16.mxu0 %v367
  %492 = vmatpush1.bf16.msra.mxu0 %v366
  %493 = vmatprep.subr.bf16.mxu0 %v375
  %494 = vmatpush1.bf16.msra.mxu0 %v374
  %495 = vmatprep.subr.bf16.mxu0 %v383
  %496 = vmatpush1.bf16.msra.mxu0 %v382
  %497 = vmatprep.subr.bf16.mxu0 %v391
  %498 = vmatpush1.bf16.msra.mxu0 %v390
  %499 = vmatprep.subr.bf16.mxu0 %v399
  %500 = vmatpush1.bf16.msra.mxu0 %v398
  %501 = vmatprep.subr.bf16.mxu0 %v407
  %502 = vmatpush1.bf16.msra.mxu0 %v406
  %503 = vmatprep.subr.bf16.mxu0 0
  %504 = vmatpush1.bf16.msra.mxu0 0
  %505 = vmatprep.subr.bf16.mxu0 0
  %506 = vmatpush1.bf16.msra.mxu0 0
  %507 = vmatprep.subr.bf16.mxu0 0
  %508 = vmatpush1.bf16.msra.mxu0 0
  %509 = vmatprep.subr.bf16.mxu0 0
  %510 = vmatpush1.bf16.msra.mxu0 0
  %511 = vmatprep.subr.bf16.mxu0 0
  %512 = vmatpush1.bf16.msra.mxu0 0
  %513 = vmatprep.subr.bf16.mxu0 0
  %514 = vmatpush1.bf16.msra.mxu0 0
  %515 = vmatprep.subr.bf16.mxu0 0
  %516 = vmatpush1.bf16.msra.mxu0 0
  %517 = vmatprep.subr.bf16.mxu0 0
  %518 = vmatpush1.bf16.msra.mxu0 0
  %519 = vmatprep.subr.bf16.mxu0 0
  %520 = vmatpush1.bf16.msra.mxu0 0
  %521 = vmatprep.mubr.bf16.mxu0 0
  %522 = vmatmul.mubr.bf16.gmra.mrb[0].mxu0 %v472
  %v523 = vpop.f32.mrb[0].mxu0
  %v524 = vadd.f32 0.0, %v523
  %v525 = vpop.f32.mrb[0].mxu0
  %v526 = vadd.f32 0.0, %v525
  %v527 = vpop.f32.mrb[0].mxu0
  %v528 = vadd.f32 0.0, %v527
  %v529 = vpop.f32.mrb[0].mxu0
  %v530 = vadd.f32 0.0, %v529
  %531 = vmatprep.mubr.bf16.mxu0 0
  %532 = vmatmul.mubr.bf16.gmra.mrb[0].mxu0 %v475
  %v533 = vpop.f32.mrb[0].mxu0
  %v534 = vadd.f32 0.0, %v533
  %v535 = vpop.f32.mrb[0].mxu0
  %v536 = vadd.f32 0.0, %v535
  %v537 = vpop.f32.mrb[0].mxu0
  %v538 = vadd.f32 0.0, %v537
  %v539 = vpop.f32.mrb[0].mxu0
  %v540 = vadd.f32 0.0, %v539
  %541 = vmatprep.mubr.bf16.mxu0 0
  %542 = vmatmul.mubr.bf16.gmra.mrb[0].mxu0 %v478
  %v543 = vpop.f32.mrb[0].mxu0
  %v544 = vadd.f32 0.0, %v543
  %v545 = vpop.f32.mrb[0].mxu0
  %v546 = vadd.f32 0.0, %v545
  %v547 = vpop.f32.mrb[0].mxu0
  %v548 = vadd.f32 0.0, %v547
  %v549 = vpop.f32.mrb[0].mxu0
  %v550 = vadd.f32 0.0, %v549
  %551 = vmatprep.mubr.bf16.mxu0 0
  %552 = vmatmul.mubr.bf16.gmra.mrb[0].mxu0 %v481
  %v553 = vpop.f32.mrb[0].mxu0
  %v554 = vadd.f32 0.0, %v553
  %v555 = vpop.f32.mrb[0].mxu0
  %v556 = vadd.f32 0.0, %v555
  %v557 = vpop.f32.mrb[0].mxu0
  %v558 = vadd.f32 0.0, %v557
  %v559 = vpop.f32.mrb[0].mxu0
  %v560 = vadd.f32 0.0, %v559
  %561 = vmatprep.mubr.bf16.mxu0 0
  %562 = vmatmul.mubr.bf16.gmra.mrb[0].mxu0 %v484
  %v563 = vpop.f32.mrb[0].mxu0
  %v564 = vadd.f32 0.0, %v563
  %v565 = vpop.f32.mrb[0].mxu0
  %v566 = vadd.f32 0.0, %v565
  %v567 = vpop.f32.mrb[0].mxu0
  %v568 = vadd.f32 0.0, %v567
  %v569 = vpop.f32.mrb[0].mxu0
  %v570 = vadd.f32 0.0, %v569
  %571 = vmatprep.mubr.bf16.mxu0 0
  %572 = vmatmul.mubr.bf16.gmra.mrb[0].mxu0 %v487
  %v573 = vpop.f32.mrb[0].mxu0
  %v574 = vadd.f32 0.0, %v573
  %v575 = vpop.f32.mrb[0].mxu0
  %v576 = vadd.f32 0.0, %v575
  %v577 = vpop.f32.mrb[0].mxu0
  %v578 = vadd.f32 0.0, %v577
  %v579 = vpop.f32.mrb[0].mxu0
  %v580 = vadd.f32 0.0, %v579
  %581 = vdwg.mxu0
  %582 = vmatprep.subr.bf16.mxu0 %v361
  %583 = vmatpush1.bf16.msra.mxu0 %v360
  %584 = vmatprep.subr.bf16.mxu0 %v369
  %585 = vmatpush1.bf16.msra.mxu0 %v368
  %586 = vmatprep.subr.bf16.mxu0 %v377
  %587 = vmatpush1.bf16.msra.mxu0 %v376
  %588 = vmatprep.subr.bf16.mxu0 %v385
  %589 = vmatpush1.bf16.msra.mxu0 %v384
  %590 = vmatprep.subr.bf16.mxu0 %v393
  %591 = vmatpush1.bf16.msra.mxu0 %v392
  %592 = vmatprep.subr.bf16.mxu0 %v401
  %593 = vmatpush1.bf16.msra.mxu0 %v400
  %594 = vmatprep.subr.bf16.mxu0 %v409
  %595 = vmatpush1.bf16.msra.mxu0 %v408
  %596 = vmatprep.subr.bf16.mxu0 0
  %597 = vmatpush1.bf16.msra.mxu0 0
  %598 = vmatprep.subr.bf16.mxu0 0
  %599 = vmatpush1.bf16.msra.mxu0 0
  %600 = vmatprep.subr.bf16.mxu0 0
  %601 = vmatpush1.bf16.msra.mxu0 0
  %602 = vmatprep.subr.bf16.mxu0 0
  %603 = vmatpush1.bf16.msra.mxu0 0
  %604 = vmatprep.subr.bf16.mxu0 0
  %605 = vmatpush1.bf16.msra.mxu0 0
  %606 = vmatprep.subr.bf16.mxu0 0
  %607 = vmatpush1.bf16.msra.mxu0 0
  %608 = vmatprep.subr.bf16.mxu0 0
  %609 = vmatpush1.bf16.msra.mxu0 0
  %610 = vmatprep.subr.bf16.mxu0 0
  %611 = vmatpush1.bf16.msra.mxu0 0
  %612 = vmatprep.subr.bf16.mxu0 0
  %613 = vmatpush1.bf16.msra.mxu0 0
  %614 = vmatprep.mubr.bf16.mxu0 0
  %615 = vmatmul.mubr.bf16.gmra.mrb[0].mxu0 %v472
  %v616 = vpop.f32.mrb[0].mxu0
  %v617 = vadd.f32 0.0, %v616
  %v618 = vpop.f32.mrb[0].mxu0
  %v619 = vadd.f32 0.0, %v618
  %v620 = vpop.f32.mrb[0].mxu0
  %v621 = vadd.f32 0.0, %v620
  %v622 = vpop.f32.mrb[0].mxu0
  %v623 = vadd.f32 0.0, %v622
  %624 = vmatprep.mubr.bf16.mxu0 0
  %625 = vmatmul.mubr.bf16.gmra.mrb[0].mxu0 %v475
  %v626 = vpop.f32.mrb[0].mxu0
  %v627 = vadd.f32 0.0, %v626
  %v628 = vpop.f32.mrb[0].mxu0
  %v629 = vadd.f32 0.0, %v628
  %v630 = vpop.f32.mrb[0].mxu0
  %v631 = vadd.f32 0.0, %v630
  %v632 = vpop.f32.mrb[0].mxu0
  %v633 = vadd.f32 0.0, %v632
  %634 = vmatprep.mubr.bf16.mxu0 0
  %635 = vmatmul.mubr.bf16.gmra.mrb[0].mxu0 %v478
  %v636 = vpop.f32.mrb[0].mxu0
  %v637 = vadd.f32 0.0, %v636
  %v638 = vpop.f32.mrb[0].mxu0
  %v639 = vadd.f32 0.0, %v638
  %v640 = vpop.f32.mrb[0].mxu0
  %v641 = vadd.f32 0.0, %v640
  %v642 = vpop.f32.mrb[0].mxu0
  %v643 = vadd.f32 0.0, %v642
  %644 = vmatprep.mubr.bf16.mxu0 0
  %645 = vmatmul.mubr.bf16.gmra.mrb[0].mxu0 %v481
  %v646 = vpop.f32.mrb[0].mxu0
  %v647 = vadd.f32 0.0, %v646
  %v648 = vpop.f32.mrb[0].mxu0
  %v649 = vadd.f32 0.0, %v648
  %v650 = vpop.f32.mrb[0].mxu0
  %v651 = vadd.f32 0.0, %v650
  %v652 = vpop.f32.mrb[0].mxu0
  %v653 = vadd.f32 0.0, %v652
  %654 = vmatprep.mubr.bf16.mxu0 0
  %655 = vmatmul.mubr.bf16.gmra.mrb[0].mxu0 %v484
  %v656 = vpop.f32.mrb[0].mxu0
  %v657 = vadd.f32 0.0, %v656
  %v658 = vpop.f32.mrb[0].mxu0
  %v659 = vadd.f32 0.0, %v658
  %v660 = vpop.f32.mrb[0].mxu0
  %v661 = vadd.f32 0.0, %v660
  %v662 = vpop.f32.mrb[0].mxu0
  %v663 = vadd.f32 0.0, %v662
  %664 = vmatprep.mubr.bf16.mxu0 0
  %665 = vmatmul.mubr.bf16.gmra.mrb[0].mxu0 %v487
  %v666 = vpop.f32.mrb[0].mxu0
  %v667 = vadd.f32 0.0, %v666
  %v668 = vpop.f32.mrb[0].mxu0
  %v669 = vadd.f32 0.0, %v668
  %v670 = vpop.f32.mrb[0].mxu0
  %v671 = vadd.f32 0.0, %v670
  %v672 = vpop.f32.mrb[0].mxu0
  %v673 = vadd.f32 0.0, %v672
  %674 = vdwg.mxu0
  %675 = vmatprep.subr.bf16.mxu0 %v363
  %676 = vmatpush1.bf16.msra.mxu0 %v362
  %677 = vmatprep.subr.bf16.mxu0 %v371
  %678 = vmatpush1.bf16.msra.mxu0 %v370
  %679 = vmatprep.subr.bf16.mxu0 %v379
  %680 = vmatpush1.bf16.msra.mxu0 %v378
  %681 = vmatprep.subr.bf16.mxu0 %v387
  %682 = vmatpush1.bf16.msra.mxu0 %v386
  %683 = vmatprep.subr.bf16.mxu0 %v395
  %684 = vmatpush1.bf16.msra.mxu0 %v394
  %685 = vmatprep.subr.bf16.mxu0 %v403
  %686 = vmatpush1.bf16.msra.mxu0 %v402
  %687 = vmatprep.subr.bf16.mxu0 %v411
  %688 = vmatpush1.bf16.msra.mxu0 %v410
  %689 = vmatprep.subr.bf16.mxu0 0
  %690 = vmatpush1.bf16.msra.mxu0 0
  %691 = vmatprep.subr.bf16.mxu0 0
  %692 = vmatpush1.bf16.msra.mxu0 0
  %693 = vmatprep.subr.bf16.mxu0 0
  %694 = vmatpush1.bf16.msra.mxu0 0
  %695 = vmatprep.subr.bf16.mxu0 0
  %696 = vmatpush1.bf16.msra.mxu0 0
  %697 = vmatprep.subr.bf16.mxu0 0
  %698 = vmatpush1.bf16.msra.mxu0 0
  %699 = vmatprep.subr.bf16.mxu0 0
  %700 = vmatpush1.bf16.msra.mxu0 0
  %701 = vmatprep.subr.bf16.mxu0 0
  %702 = vmatpush1.bf16.msra.mxu0 0
  %703 = vmatprep.subr.bf16.mxu0 0
  %704 = vmatpush1.bf16.msra.mxu0 0
  %705 = vmatprep.subr.bf16.mxu0 0
  %706 = vmatpush1.bf16.msra.mxu0 0
  %707 = vmatprep.mubr.bf16.mxu0 0
  %708 = vmatmul.mubr.bf16.gmra.mrb[0].mxu0 %v472
  %v709 = vpop.f32.mrb[0].mxu0
  %v710 = vadd.f32 0.0, %v709
  %v711 = vpop.f32.mrb[0].mxu0
  %v712 = vadd.f32 0.0, %v711
  %v713 = vpop.f32.mrb[0].mxu0
  %v714 = vadd.f32 0.0, %v713
  %v715 = vpop.f32.mrb[0].mxu0
  %v716 = vadd.f32 0.0, %v715
  %717 = vmatprep.mubr.bf16.mxu0 0
  %718 = vmatmul.mubr.bf16.gmra.mrb[0].mxu0 %v475
  %v719 = vpop.f32.mrb[0].mxu0
  %v720 = vadd.f32 0.0, %v719
  %v721 = vpop.f32.mrb[0].mxu0
  %v722 = vadd.f32 0.0, %v721
  %v723 = vpop.f32.mrb[0].mxu0
  %v724 = vadd.f32 0.0, %v723
  %v725 = vpop.f32.mrb[0].mxu0
  %v726 = vadd.f32 0.0, %v725
  %727 = vmatprep.mubr.bf16.mxu0 0
  %728 = vmatmul.mubr.bf16.gmra.mrb[0].mxu0 %v478
  %v729 = vpop.f32.mrb[0].mxu0
  %v730 = vadd.f32 0.0, %v729
  %v731 = vpop.f32.mrb[0].mxu0
  %v732 = vadd.f32 0.0, %v731
  %v733 = vpop.f32.mrb[0].mxu0
  %v734 = vadd.f32 0.0, %v733
  %v735 = vpop.f32.mrb[0].mxu0
  %v736 = vadd.f32 0.0, %v735
  %737 = vmatprep.mubr.bf16.mxu0 0
  %738 = vmatmul.mubr.bf16.gmra.mrb[0].mxu0 %v481
  %v739 = vpop.f32.mrb[0].mxu0
  %v740 = vadd.f32 0.0, %v739
  %v741 = vpop.f32.mrb[0].mxu0
  %v742 = vadd.f32 0.0, %v741
  %v743 = vpop.f32.mrb[0].mxu0
  %v744 = vadd.f32 0.0, %v743
  %v745 = vpop.f32.mrb[0].mxu0
  %v746 = vadd.f32 0.0, %v745
  %747 = vmatprep.mubr.bf16.mxu0 0
  %748 = vmatmul.mubr.bf16.gmra.mrb[0].mxu0 %v484
  %v749 = vpop.f32.mrb[0].mxu0
  %v750 = vadd.f32 0.0, %v749
  %v751 = vpop.f32.mrb[0].mxu0
  %v752 = vadd.f32 0.0, %v751
  %v753 = vpop.f32.mrb[0].mxu0
  %v754 = vadd.f32 0.0, %v753
  %v755 = vpop.f32.mrb[0].mxu0
  %v756 = vadd.f32 0.0, %v755
  %757 = vmatprep.mubr.bf16.mxu0 0
  %758 = vmatmul.mubr.bf16.gmra.mrb[0].mxu0 %v487
  %v759 = vpop.f32.mrb[0].mxu0
  %v760 = vadd.f32 0.0, %v759
  %v761 = vpop.f32.mrb[0].mxu0
  %v762 = vadd.f32 0.0, %v761
  %v763 = vpop.f32.mrb[0].mxu0
  %v764 = vadd.f32 0.0, %v763
  %v765 = vpop.f32.mrb[0].mxu0
  %v766 = vadd.f32 0.0, %v765
  %767 = vdwg.mxu0
  %768 = vmatprep.subr.bf16.mxu0 %v365
  %769 = vmatpush1.bf16.msra.mxu0 %v364
  %770 = vmatprep.subr.bf16.mxu0 %v373
  %771 = vmatpush1.bf16.msra.mxu0 %v372
  %772 = vmatprep.subr.bf16.mxu0 %v381
  %773 = vmatpush1.bf16.msra.mxu0 %v380
  %774 = vmatprep.subr.bf16.mxu0 %v389
  %775 = vmatpush1.bf16.msra.mxu0 %v388
  %776 = vmatprep.subr.bf16.mxu0 %v397
  %777 = vmatpush1.bf16.msra.mxu0 %v396
  %778 = vmatprep.subr.bf16.mxu0 %v405
  %779 = vmatpush1.bf16.msra.mxu0 %v404
  %780 = vmatprep.subr.bf16.mxu0 %v413
  %781 = vmatpush1.bf16.msra.mxu0 %v412
  %782 = vmatprep.subr.bf16.mxu0 0
  %783 = vmatpush1.bf16.msra.mxu0 0
  %784 = vmatprep.subr.bf16.mxu0 0
  %785 = vmatpush1.bf16.msra.mxu0 0
  %786 = vmatprep.subr.bf16.mxu0 0
  %787 = vmatpush1.bf16.msra.mxu0 0
  %788 = vmatprep.subr.bf16.mxu0 0
  %789 = vmatpush1.bf16.msra.mxu0 0
  %790 = vmatprep.subr.bf16.mxu0 0
  %791 = vmatpush1.bf16.msra.mxu0 0
  %792 = vmatprep.subr.bf16.mxu0 0
  %793 = vmatpush1.bf16.msra.mxu0 0
  %794 = vmatprep.subr.bf16.mxu0 0
  %795 = vmatpush1.bf16.msra.mxu0 0
  %796 = vmatprep.subr.bf16.mxu0 0
  %797 = vmatpush1.bf16.msra.mxu0 0
  %798 = vmatprep.subr.bf16.mxu0 0
  %799 = vmatpush1.bf16.msra.mxu0 0
  %800 = vmatprep.mubr.bf16.mxu0 0
  %801 = vmatmul.mubr.bf16.gmra.mrb[0].mxu0 %v472
  %v802 = vpop.f32.mrb[0].mxu0
  %v803 = vadd.f32 0.0, %v802
  %v804 = vpop.f32.mrb[0].mxu0
  %v805 = vadd.f32 0.0, %v804
  %v806 = vpop.f32.mrb[0].mxu0
  %v807 = vadd.f32 0.0, %v806
  %v808 = vpop.f32.mrb[0].mxu0
  %v809 = vadd.f32 0.0, %v808
  %810 = vmatprep.mubr.bf16.mxu0 0
  %811 = vmatmul.mubr.bf16.gmra.mrb[0].mxu0 %v475
  %v812 = vpop.f32.mrb[0].mxu0
  %v813 = vadd.f32 0.0, %v812
  %v814 = vpop.f32.mrb[0].mxu0
  %v815 = vadd.f32 0.0, %v814
  %v816 = vpop.f32.mrb[0].mxu0
  %v817 = vadd.f32 0.0, %v816
  %v818 = vpop.f32.mrb[0].mxu0
  %v819 = vadd.f32 0.0, %v818
  %820 = vmatprep.mubr.bf16.mxu0 0
  %821 = vmatmul.mubr.bf16.gmra.mrb[0].mxu0 %v478
  %v822 = vpop.f32.mrb[0].mxu0
  %v823 = vadd.f32 0.0, %v822
  %v824 = vpop.f32.mrb[0].mxu0
  %v825 = vadd.f32 0.0, %v824
  %v826 = vpop.f32.mrb[0].mxu0
  %v827 = vadd.f32 0.0, %v826
  %v828 = vpop.f32.mrb[0].mxu0
  %v829 = vadd.f32 0.0, %v828
  %830 = vmatprep.mubr.bf16.mxu0 0
  %831 = vmatmul.mubr.bf16.gmra.mrb[0].mxu0 %v481
  %v832 = vpop.f32.mrb[0].mxu0
  %v833 = vadd.f32 0.0, %v832
  %v834 = vpop.f32.mrb[0].mxu0
  %v835 = vadd.f32 0.0, %v834
  %v836 = vpop.f32.mrb[0].mxu0
  %v837 = vadd.f32 0.0, %v836
  %v838 = vpop.f32.mrb[0].mxu0
  %v839 = vadd.f32 0.0, %v838
  %840 = vmatprep.mubr.bf16.mxu0 0
  %841 = vmatmul.mubr.bf16.gmra.mrb[0].mxu0 %v484
  %v842 = vpop.f32.mrb[0].mxu0
  %v843 = vadd.f32 0.0, %v842
  %v844 = vpop.f32.mrb[0].mxu0
  %v845 = vadd.f32 0.0, %v844
  %v846 = vpop.f32.mrb[0].mxu0
  %v847 = vadd.f32 0.0, %v846
  %v848 = vpop.f32.mrb[0].mxu0
  %v849 = vadd.f32 0.0, %v848
  %850 = vmatprep.mubr.bf16.mxu0 0
  %851 = vmatmul.mubr.bf16.gmra.mrb[0].mxu0 %v487
  %v852 = vpop.f32.mrb[0].mxu0
  %v853 = vadd.f32 0.0, %v852
  %v854 = vpop.f32.mrb[0].mxu0
  %v855 = vadd.f32 0.0, %v854
  %v856 = vpop.f32.mrb[0].mxu0
  %v857 = vadd.f32 0.0, %v856
  %v858 = vpop.f32.mrb[0].mxu0
  %v859 = vadd.f32 0.0, %v858
  %860 = vdwg.mxu0
  %v863 = vunpack.c.l.b16 %v33
  %v864 = vunpack.c.l.b16 %v34
  %v865 = vpack.c.b16 %v864, %v863
  %v922 = vunpack.c.l.b16 %v47
  %v923 = vunpack.c.h.b16 %v47
  %v924 = vunpack.c.l.b16 %v48
  %v925 = vunpack.c.h.b16 %v48
  %v926 = vunpack.c.l.b16 %v49
  %v927 = vunpack.c.h.b16 %v49
  %v928 = vunpack.c.l.b16 %v50
  %v929 = vunpack.c.h.b16 %v50
  %v930 = vunpack.c.l.b16 %v51
  %v931 = vunpack.c.h.b16 %v51
  %v932 = vunpack.c.l.b16 %v52
  %v933 = vunpack.c.h.b16 %v52
  %v934 = vunpack.c.l.b16 %v53
  %v935 = vunpack.c.h.b16 %v53
  %v936 = vunpack.c.l.b16 %v54
  %v937 = vunpack.c.h.b16 %v54
  %v938 = vunpack.c.l.b16 %v55
  %v939 = vunpack.c.h.b16 %v55
  %v940 = vunpack.c.l.b16 %v56
  %v941 = vunpack.c.h.b16 %v56
  %v942 = vunpack.c.l.b16 %v57
  %v943 = vunpack.c.h.b16 %v57
  %v944 = vunpack.c.l.b16 %v58
  %v945 = vunpack.c.h.b16 %v58
  %v946 = vunpack.c.l.b16 %v59
  %v947 = vunpack.c.h.b16 %v59
  %v948 = vunpack.c.l.b16 %v60
  %v949 = vunpack.c.h.b16 %v60
  %v950 = vunpack.c.l.b16 %v61
  %v951 = vunpack.c.h.b16 %v61
  %v952 = vunpack.c.l.b16 %v62
  %v953 = vunpack.c.h.b16 %v62
  %v954 = vunpack.c.l.b16 %v63
  %v955 = vunpack.c.h.b16 %v63
  %v956 = vunpack.c.l.b16 %v64
  %v957 = vunpack.c.h.b16 %v64
  %v958 = vunpack.c.l.b16 %v65
  %v959 = vunpack.c.h.b16 %v65
  %v960 = vunpack.c.l.b16 %v66
  %v961 = vunpack.c.h.b16 %v66
  %v962 = vunpack.c.l.b16 %v67
  %v963 = vunpack.c.h.b16 %v67
  %v964 = vunpack.c.l.b16 %v68
  %v965 = vunpack.c.h.b16 %v68
  %v966 = vunpack.c.l.b16 %v69
  %v967 = vunpack.c.h.b16 %v69
  %v968 = vunpack.c.l.b16 %v70
  %v969 = vunpack.c.h.b16 %v70
  %v970 = vunpack.c.l.b16 %v71
  %v971 = vunpack.c.h.b16 %v71
  %v972 = vunpack.c.l.b16 %v72
  %v973 = vunpack.c.h.b16 %v72
  %v974 = vunpack.c.l.b16 %v73
  %v975 = vunpack.c.h.b16 %v73
  %v976 = vunpack.c.l.b16 %v74
  %v977 = vunpack.c.h.b16 %v74
  %v978 = vunpack.c.l.b16 %v75
  %v979 = vunpack.c.h.b16 %v75
  %v980 = vunpack.c.l.b16 %v76
  %v981 = vunpack.c.h.b16 %v76
  %v982 = vunpack.c.l.b16 %v77
  %v983 = vunpack.c.h.b16 %v77
  %v984 = vunpack.c.l.b16 %v78
  %v985 = vunpack.c.h.b16 %v78
  %v986 = vunpack.c.l.b16 %v79
  %v987 = vunpack.c.h.b16 %v79
  %v988 = vunpack.c.l.b16 %v80
  %v989 = vunpack.c.h.b16 %v80
  %v990 = vunpack.c.l.b16 %v81
  %v991 = vunpack.c.h.b16 %v81
  %v992 = vunpack.c.l.b16 %v82
  %v993 = vunpack.c.h.b16 %v82
  %v994 = vunpack.c.l.b16 %v83
  %v995 = vunpack.c.h.b16 %v83
  %v996 = vunpack.c.l.b16 %v84
  %v997 = vunpack.c.h.b16 %v84
  %v998 = vunpack.c.l.b16 %v85
  %v999 = vunpack.c.h.b16 %v85
  %v1000 = vunpack.c.l.b16 %v86
  %v1001 = vunpack.c.h.b16 %v86
  %v1002 = vunpack.c.l.b16 %v87
  %v1003 = vunpack.c.h.b16 %v87
  %v1004 = vunpack.c.l.b16 %v88
  %v1005 = vunpack.c.h.b16 %v88
  %v1006 = vunpack.c.l.b16 %v89
  %v1007 = vunpack.c.h.b16 %v89
  %v1008 = vunpack.c.l.b16 %v90
  %v1009 = vunpack.c.h.b16 %v90
  %v1010 = vunpack.c.l.b16 %v91
  %v1011 = vunpack.c.h.b16 %v91
  %v1012 = vunpack.c.l.b16 %v92
  %v1013 = vunpack.c.h.b16 %v92
  %v1014 = vunpack.c.l.b16 %v93
  %v1015 = vunpack.c.h.b16 %v93
  %v1016 = vunpack.c.l.b16 %v94
  %v1017 = vunpack.c.h.b16 %v94
  %v1018 = vunpack.c.l.b16 %v95
  %v1019 = vunpack.c.h.b16 %v95
  %v1020 = vunpack.c.l.b16 %v96
  %v1021 = vunpack.c.h.b16 %v96
  %v1022 = vunpack.c.l.b16 %v97
  %v1023 = vunpack.c.h.b16 %v97
  %v1024 = vunpack.c.l.b16 %v98
  %v1025 = vunpack.c.h.b16 %v98
  %v1026 = vunpack.c.l.b16 %v99
  %v1027 = vunpack.c.h.b16 %v99
  %v1028 = vunpack.c.l.b16 %v100
  %v1029 = vunpack.c.h.b16 %v100
  %v1030 = vunpack.c.l.b16 %v101
  %v1031 = vunpack.c.h.b16 %v101
  %v1032 = vunpack.c.l.b16 %v102
  %v1033 = vunpack.c.h.b16 %v102
  %v1034 = vpack.c.b16 %v930, %v922
  %v1035 = vpack.c.b16 %v931, %v923
  %v1036 = vpack.c.b16 %v932, %v924
  %v1037 = vpack.c.b16 %v933, %v925
  %v1038 = vpack.c.b16 %v934, %v926
  %v1039 = vpack.c.b16 %v935, %v927
  %v1040 = vpack.c.b16 %v936, %v928
  %v1041 = vpack.c.b16 %v937, %v929
  %v1042 = vpack.c.b16 %v946, %v938
  %v1043 = vpack.c.b16 %v947, %v939
  %v1044 = vpack.c.b16 %v948, %v940
  %v1045 = vpack.c.b16 %v949, %v941
  %v1046 = vpack.c.b16 %v950, %v942
  %v1047 = vpack.c.b16 %v951, %v943
  %v1048 = vpack.c.b16 %v952, %v944
  %v1049 = vpack.c.b16 %v953, %v945
  %v1050 = vpack.c.b16 %v962, %v954
  %v1051 = vpack.c.b16 %v963, %v955
  %v1052 = vpack.c.b16 %v964, %v956
  %v1053 = vpack.c.b16 %v965, %v957
  %v1054 = vpack.c.b16 %v966, %v958
  %v1055 = vpack.c.b16 %v967, %v959
  %v1056 = vpack.c.b16 %v968, %v960
  %v1057 = vpack.c.b16 %v969, %v961
  %v1058 = vpack.c.b16 %v978, %v970
  %v1059 = vpack.c.b16 %v979, %v971
  %v1060 = vpack.c.b16 %v980, %v972
  %v1061 = vpack.c.b16 %v981, %v973
  %v1062 = vpack.c.b16 %v982, %v974
  %v1063 = vpack.c.b16 %v983, %v975
  %v1064 = vpack.c.b16 %v984, %v976
  %v1065 = vpack.c.b16 %v985, %v977
  %v1066 = vpack.c.b16 %v994, %v986
  %v1067 = vpack.c.b16 %v995, %v987
  %v1068 = vpack.c.b16 %v996, %v988
  %v1069 = vpack.c.b16 %v997, %v989
  %v1070 = vpack.c.b16 %v998, %v990
  %v1071 = vpack.c.b16 %v999, %v991
  %v1072 = vpack.c.b16 %v1000, %v992
  %v1073 = vpack.c.b16 %v1001, %v993
  %v1074 = vpack.c.b16 %v1010, %v1002
  %v1075 = vpack.c.b16 %v1011, %v1003
  %v1076 = vpack.c.b16 %v1012, %v1004
  %v1077 = vpack.c.b16 %v1013, %v1005
  %v1078 = vpack.c.b16 %v1014, %v1006
  %v1079 = vpack.c.b16 %v1015, %v1007
  %v1080 = vpack.c.b16 %v1016, %v1008
  %v1081 = vpack.c.b16 %v1017, %v1009
  %v1082 = vpack.c.b16 %v1026, %v1018
  %v1083 = vpack.c.b16 %v1027, %v1019
  %v1084 = vpack.c.b16 %v1028, %v1020
  %v1085 = vpack.c.b16 %v1029, %v1021
  %v1086 = vpack.c.b16 %v1030, %v1022
  %v1087 = vpack.c.b16 %v1031, %v1023
  %v1088 = vpack.c.b16 %v1032, %v1024
  %v1089 = vpack.c.b16 %v1033, %v1025
  %v1147 = vsel %vm470, %v865, 0
  %1149 = vmatprep.subr.bf16.mxu0 %v1035
  %1150 = vmatpush1.bf16.msra.mxu0 %v1034
  %1151 = vmatprep.subr.bf16.mxu0 %v1043
  %1152 = vmatpush1.bf16.msra.mxu0 %v1042
  %1153 = vmatprep.subr.bf16.mxu0 %v1051
  %1154 = vmatpush1.bf16.msra.mxu0 %v1050
  %1155 = vmatprep.subr.bf16.mxu0 %v1059
  %1156 = vmatpush1.bf16.msra.mxu0 %v1058
  %1157 = vmatprep.subr.bf16.mxu0 %v1067
  %1158 = vmatpush1.bf16.msra.mxu0 %v1066
  %1159 = vmatprep.subr.bf16.mxu0 %v1075
  %1160 = vmatpush1.bf16.msra.mxu0 %v1074
  %1161 = vmatprep.subr.bf16.mxu0 %v1083
  %1162 = vmatpush1.bf16.msra.mxu0 %v1082
  %1163 = vmatprep.subr.bf16.mxu0 0
  %1164 = vmatpush1.bf16.msra.mxu0 0
  %1165 = vmatprep.subr.bf16.mxu0 0
  %1166 = vmatpush1.bf16.msra.mxu0 0
  %1167 = vmatprep.subr.bf16.mxu0 0
  %1168 = vmatpush1.bf16.msra.mxu0 0
  %1169 = vmatprep.subr.bf16.mxu0 0
  %1170 = vmatpush1.bf16.msra.mxu0 0
  %1171 = vmatprep.subr.bf16.mxu0 0
  %1172 = vmatpush1.bf16.msra.mxu0 0
  %1173 = vmatprep.subr.bf16.mxu0 0
  %1174 = vmatpush1.bf16.msra.mxu0 0
  %1175 = vmatprep.subr.bf16.mxu0 0
  %1176 = vmatpush1.bf16.msra.mxu0 0
  %1177 = vmatprep.subr.bf16.mxu0 0
  %1178 = vmatpush1.bf16.msra.mxu0 0
  %1179 = vmatprep.subr.bf16.mxu0 0
  %1180 = vmatpush1.bf16.msra.mxu0 0
  %1181 = vmatprep.mubr.bf16.mxu0 0
  %1182 = vmatmul.mubr.bf16.gmra.mrb[0].mxu0 %v1147
  %v1183 = vpop.f32.mrb[0].mxu0
  %v1184 = vadd.f32 %v524, %v1183
  %v1185 = vpop.f32.mrb[0].mxu0
  %v1186 = vadd.f32 %v526, %v1185
  %v1187 = vpop.f32.mrb[0].mxu0
  %v1188 = vadd.f32 %v528, %v1187
  %v1189 = vpop.f32.mrb[0].mxu0
  %v1190 = vadd.f32 %v530, %v1189
  %1191 = vmatprep.mubr.bf16.mxu0 0
  %1192 = vmatmul.mubr.bf16.gmra.mrb[0].mxu0 %v472
  %v1193 = vpop.f32.mrb[0].mxu0
  %v1194 = vadd.f32 %v534, %v1193
  %v1195 = vpop.f32.mrb[0].mxu0
  %v1196 = vadd.f32 %v536, %v1195
  %v1197 = vpop.f32.mrb[0].mxu0
  %v1198 = vadd.f32 %v538, %v1197
  %v1199 = vpop.f32.mrb[0].mxu0
  %v1200 = vadd.f32 %v540, %v1199
  %1201 = vmatprep.mubr.bf16.mxu0 0
  %1202 = vmatmul.mubr.bf16.gmra.mrb[0].mxu0 %v475
  %v1203 = vpop.f32.mrb[0].mxu0
  %v1204 = vadd.f32 %v544, %v1203
  %v1205 = vpop.f32.mrb[0].mxu0
  %v1206 = vadd.f32 %v546, %v1205
  %v1207 = vpop.f32.mrb[0].mxu0
  %v1208 = vadd.f32 %v548, %v1207
  %v1209 = vpop.f32.mrb[0].mxu0
  %v1210 = vadd.f32 %v550, %v1209
  %1211 = vmatprep.mubr.bf16.mxu0 0
  %1212 = vmatmul.mubr.bf16.gmra.mrb[0].mxu0 %v478
  %v1213 = vpop.f32.mrb[0].mxu0
  %v1214 = vadd.f32 %v554, %v1213
  %v1215 = vpop.f32.mrb[0].mxu0
  %v1216 = vadd.f32 %v556, %v1215
  %v1217 = vpop.f32.mrb[0].mxu0
  %v1218 = vadd.f32 %v558, %v1217
  %v1219 = vpop.f32.mrb[0].mxu0
  %v1220 = vadd.f32 %v560, %v1219
  %1221 = vmatprep.mubr.bf16.mxu0 0
  %1222 = vmatmul.mubr.bf16.gmra.mrb[0].mxu0 %v481
  %v1223 = vpop.f32.mrb[0].mxu0
  %v1224 = vadd.f32 %v564, %v1223
  %v1225 = vpop.f32.mrb[0].mxu0
  %v1226 = vadd.f32 %v566, %v1225
  %v1227 = vpop.f32.mrb[0].mxu0
  %v1228 = vadd.f32 %v568, %v1227
  %v1229 = vpop.f32.mrb[0].mxu0
  %v1230 = vadd.f32 %v570, %v1229
  %1231 = vmatprep.mubr.bf16.mxu0 0
  %1232 = vmatmul.mubr.bf16.gmra.mrb[0].mxu0 %v484
  %v1233 = vpop.f32.mrb[0].mxu0
  %v1234 = vadd.f32 %v574, %v1233
  %v1235 = vpop.f32.mrb[0].mxu0
  %v1236 = vadd.f32 %v576, %v1235
  %v1237 = vpop.f32.mrb[0].mxu0
  %v1238 = vadd.f32 %v578, %v1237
  %v1239 = vpop.f32.mrb[0].mxu0
  %v1240 = vadd.f32 %v580, %v1239
  %1241 = vdwg.mxu0
  %1242 = vmatprep.subr.bf16.mxu0 %v1037
  %1243 = vmatpush1.bf16.msra.mxu0 %v1036
  %1244 = vmatprep.subr.bf16.mxu0 %v1045
  %1245 = vmatpush1.bf16.msra.mxu0 %v1044
  %1246 = vmatprep.subr.bf16.mxu0 %v1053
  %1247 = vmatpush1.bf16.msra.mxu0 %v1052
  %1248 = vmatprep.subr.bf16.mxu0 %v1061
  %1249 = vmatpush1.bf16.msra.mxu0 %v1060
  %1250 = vmatprep.subr.bf16.mxu0 %v1069
  %1251 = vmatpush1.bf16.msra.mxu0 %v1068
  %1252 = vmatprep.subr.bf16.mxu0 %v1077
  %1253 = vmatpush1.bf16.msra.mxu0 %v1076
  %1254 = vmatprep.subr.bf16.mxu0 %v1085
  %1255 = vmatpush1.bf16.msra.mxu0 %v1084
  %1256 = vmatprep.subr.bf16.mxu0 0
  %1257 = vmatpush1.bf16.msra.mxu0 0
  %1258 = vmatprep.subr.bf16.mxu0 0
  %1259 = vmatpush1.bf16.msra.mxu0 0
  %1260 = vmatprep.subr.bf16.mxu0 0
  %1261 = vmatpush1.bf16.msra.mxu0 0
  %1262 = vmatprep.subr.bf16.mxu0 0
  %1263 = vmatpush1.bf16.msra.mxu0 0
  %1264 = vmatprep.subr.bf16.mxu0 0
  %1265 = vmatpush1.bf16.msra.mxu0 0
  %1266 = vmatprep.subr.bf16.mxu0 0
  %1267 = vmatpush1.bf16.msra.mxu0 0
  %1268 = vmatprep.subr.bf16.mxu0 0
  %1269 = vmatpush1.bf16.msra.mxu0 0
  %1270 = vmatprep.subr.bf16.mxu0 0
  %1271 = vmatpush1.bf16.msra.mxu0 0
  %1272 = vmatprep.subr.bf16.mxu0 0
  %1273 = vmatpush1.bf16.msra.mxu0 0
  %1274 = vmatprep.mubr.bf16.mxu0 0
  %1275 = vmatmul.mubr.bf16.gmra.mrb[0].mxu0 %v1147
  %v1276 = vpop.f32.mrb[0].mxu0
  %v1277 = vadd.f32 %v617, %v1276
  %v1278 = vpop.f32.mrb[0].mxu0
  %v1279 = vadd.f32 %v619, %v1278
  %v1280 = vpop.f32.mrb[0].mxu0
  %v1281 = vadd.f32 %v621, %v1280
  %v1282 = vpop.f32.mrb[0].mxu0
  %v1283 = vadd.f32 %v623, %v1282
  %1284 = vmatprep.mubr.bf16.mxu0 0
  %1285 = vmatmul.mubr.bf16.gmra.mrb[0].mxu0 %v472
  %v1286 = vpop.f32.mrb[0].mxu0
  %v1287 = vadd.f32 %v627, %v1286
  %v1288 = vpop.f32.mrb[0].mxu0
  %v1289 = vadd.f32 %v629, %v1288
  %v1290 = vpop.f32.mrb[0].mxu0
  %v1291 = vadd.f32 %v631, %v1290
  %v1292 = vpop.f32.mrb[0].mxu0
  %v1293 = vadd.f32 %v633, %v1292
  %1294 = vmatprep.mubr.bf16.mxu0 0
  %1295 = vmatmul.mubr.bf16.gmra.mrb[0].mxu0 %v475
  %v1296 = vpop.f32.mrb[0].mxu0
  %v1297 = vadd.f32 %v637, %v1296
  %v1298 = vpop.f32.mrb[0].mxu0
  %v1299 = vadd.f32 %v639, %v1298
  %v1300 = vpop.f32.mrb[0].mxu0
  %v1301 = vadd.f32 %v641, %v1300
  %v1302 = vpop.f32.mrb[0].mxu0
  %v1303 = vadd.f32 %v643, %v1302
  %1304 = vmatprep.mubr.bf16.mxu0 0
  %1305 = vmatmul.mubr.bf16.gmra.mrb[0].mxu0 %v478
  %v1306 = vpop.f32.mrb[0].mxu0
  %v1307 = vadd.f32 %v647, %v1306
  %v1308 = vpop.f32.mrb[0].mxu0
  %v1309 = vadd.f32 %v649, %v1308
  %v1310 = vpop.f32.mrb[0].mxu0
  %v1311 = vadd.f32 %v651, %v1310
  %v1312 = vpop.f32.mrb[0].mxu0
  %v1313 = vadd.f32 %v653, %v1312
  %1314 = vmatprep.mubr.bf16.mxu0 0
  %1315 = vmatmul.mubr.bf16.gmra.mrb[0].mxu0 %v481
  %v1316 = vpop.f32.mrb[0].mxu0
  %v1317 = vadd.f32 %v657, %v1316
  %v1318 = vpop.f32.mrb[0].mxu0
  %v1319 = vadd.f32 %v659, %v1318
  %v1320 = vpop.f32.mrb[0].mxu0
  %v1321 = vadd.f32 %v661, %v1320
  %v1322 = vpop.f32.mrb[0].mxu0
  %v1323 = vadd.f32 %v663, %v1322
  %1324 = vmatprep.mubr.bf16.mxu0 0
  %1325 = vmatmul.mubr.bf16.gmra.mrb[0].mxu0 %v484
  %v1326 = vpop.f32.mrb[0].mxu0
  %v1327 = vadd.f32 %v667, %v1326
  %v1328 = vpop.f32.mrb[0].mxu0
  %v1329 = vadd.f32 %v669, %v1328
  %v1330 = vpop.f32.mrb[0].mxu0
  %v1331 = vadd.f32 %v671, %v1330
  %v1332 = vpop.f32.mrb[0].mxu0
  %v1333 = vadd.f32 %v673, %v1332
  %1334 = vdwg.mxu0
  %1335 = vmatprep.subr.bf16.mxu0 %v1039
  %1336 = vmatpush1.bf16.msra.mxu0 %v1038
  %1337 = vmatprep.subr.bf16.mxu0 %v1047
  %1338 = vmatpush1.bf16.msra.mxu0 %v1046
  %1339 = vmatprep.subr.bf16.mxu0 %v1055
  %1340 = vmatpush1.bf16.msra.mxu0 %v1054
  %1341 = vmatprep.subr.bf16.mxu0 %v1063
  %1342 = vmatpush1.bf16.msra.mxu0 %v1062
  %1343 = vmatprep.subr.bf16.mxu0 %v1071
  %1344 = vmatpush1.bf16.msra.mxu0 %v1070
  %1345 = vmatprep.subr.bf16.mxu0 %v1079
  %1346 = vmatpush1.bf16.msra.mxu0 %v1078
  %1347 = vmatprep.subr.bf16.mxu0 %v1087
  %1348 = vmatpush1.bf16.msra.mxu0 %v1086
  %1349 = vmatprep.subr.bf16.mxu0 0
  %1350 = vmatpush1.bf16.msra.mxu0 0
  %1351 = vmatprep.subr.bf16.mxu0 0
  %1352 = vmatpush1.bf16.msra.mxu0 0
  %1353 = vmatprep.subr.bf16.mxu0 0
  %1354 = vmatpush1.bf16.msra.mxu0 0
  %1355 = vmatprep.subr.bf16.mxu0 0
  %1356 = vmatpush1.bf16.msra.mxu0 0
  %1357 = vmatprep.subr.bf16.mxu0 0
  %1358 = vmatpush1.bf16.msra.mxu0 0
  %1359 = vmatprep.subr.bf16.mxu0 0
  %1360 = vmatpush1.bf16.msra.mxu0 0
  %1361 = vmatprep.subr.bf16.mxu0 0
  %1362 = vmatpush1.bf16.msra.mxu0 0
  %1363 = vmatprep.subr.bf16.mxu0 0
  %1364 = vmatpush1.bf16.msra.mxu0 0
  %1365 = vmatprep.subr.bf16.mxu0 0
  %1366 = vmatpush1.bf16.msra.mxu0 0
  %1367 = vmatprep.mubr.bf16.mxu0 0
  %1368 = vmatmul.mubr.bf16.gmra.mrb[0].mxu0 %v1147
  %v1369 = vpop.f32.mrb[0].mxu0
  %v1370 = vadd.f32 %v710, %v1369
  %v1371 = vpop.f32.mrb[0].mxu0
  %v1372 = vadd.f32 %v712, %v1371
  %v1373 = vpop.f32.mrb[0].mxu0
  %v1374 = vadd.f32 %v714, %v1373
  %v1375 = vpop.f32.mrb[0].mxu0
  %v1376 = vadd.f32 %v716, %v1375
  %1377 = vmatprep.mubr.bf16.mxu0 0
  %1378 = vmatmul.mubr.bf16.gmra.mrb[0].mxu0 %v472
  %v1379 = vpop.f32.mrb[0].mxu0
  %v1380 = vadd.f32 %v720, %v1379
  %v1381 = vpop.f32.mrb[0].mxu0
  %v1382 = vadd.f32 %v722, %v1381
  %v1383 = vpop.f32.mrb[0].mxu0
  %v1384 = vadd.f32 %v724, %v1383
  %v1385 = vpop.f32.mrb[0].mxu0
  %v1386 = vadd.f32 %v726, %v1385
  %1387 = vmatprep.mubr.bf16.mxu0 0
  %1388 = vmatmul.mubr.bf16.gmra.mrb[0].mxu0 %v475
  %v1389 = vpop.f32.mrb[0].mxu0
  %v1390 = vadd.f32 %v730, %v1389
  %v1391 = vpop.f32.mrb[0].mxu0
  %v1392 = vadd.f32 %v732, %v1391
  %v1393 = vpop.f32.mrb[0].mxu0
  %v1394 = vadd.f32 %v734, %v1393
  %v1395 = vpop.f32.mrb[0].mxu0
  %v1396 = vadd.f32 %v736, %v1395
  %1397 = vmatprep.mubr.bf16.mxu0 0
  %1398 = vmatmul.mubr.bf16.gmra.mrb[0].mxu0 %v478
  %v1399 = vpop.f32.mrb[0].mxu0
  %v1400 = vadd.f32 %v740, %v1399
  %v1401 = vpop.f32.mrb[0].mxu0
  %v1402 = vadd.f32 %v742, %v1401
  %v1403 = vpop.f32.mrb[0].mxu0
  %v1404 = vadd.f32 %v744, %v1403
  %v1405 = vpop.f32.mrb[0].mxu0
  %v1406 = vadd.f32 %v746, %v1405
  %1407 = vmatprep.mubr.bf16.mxu0 0
  %1408 = vmatmul.mubr.bf16.gmra.mrb[0].mxu0 %v481
  %v1409 = vpop.f32.mrb[0].mxu0
  %v1410 = vadd.f32 %v750, %v1409
  %v1411 = vpop.f32.mrb[0].mxu0
  %v1412 = vadd.f32 %v752, %v1411
  %v1413 = vpop.f32.mrb[0].mxu0
  %v1414 = vadd.f32 %v754, %v1413
  %v1415 = vpop.f32.mrb[0].mxu0
  %v1416 = vadd.f32 %v756, %v1415
  %1417 = vmatprep.mubr.bf16.mxu0 0
  %1418 = vmatmul.mubr.bf16.gmra.mrb[0].mxu0 %v484
  %v1419 = vpop.f32.mrb[0].mxu0
  %v1420 = vadd.f32 %v760, %v1419
  %v1421 = vpop.f32.mrb[0].mxu0
  %v1422 = vadd.f32 %v762, %v1421
  %v1423 = vpop.f32.mrb[0].mxu0
  %v1424 = vadd.f32 %v764, %v1423
  %v1425 = vpop.f32.mrb[0].mxu0
  %v1426 = vadd.f32 %v766, %v1425
  %1427 = vdwg.mxu0
  %1428 = vmatprep.subr.bf16.mxu0 %v1041
  %1429 = vmatpush1.bf16.msra.mxu0 %v1040
  %1430 = vmatprep.subr.bf16.mxu0 %v1049
  %1431 = vmatpush1.bf16.msra.mxu0 %v1048
  %1432 = vmatprep.subr.bf16.mxu0 %v1057
  %1433 = vmatpush1.bf16.msra.mxu0 %v1056
  %1434 = vmatprep.subr.bf16.mxu0 %v1065
  %1435 = vmatpush1.bf16.msra.mxu0 %v1064
  %1436 = vmatprep.subr.bf16.mxu0 %v1073
  %1437 = vmatpush1.bf16.msra.mxu0 %v1072
  %1438 = vmatprep.subr.bf16.mxu0 %v1081
  %1439 = vmatpush1.bf16.msra.mxu0 %v1080
  %1440 = vmatprep.subr.bf16.mxu0 %v1089
  %1441 = vmatpush1.bf16.msra.mxu0 %v1088
  %1442 = vmatprep.subr.bf16.mxu0 0
  %1443 = vmatpush1.bf16.msra.mxu0 0
  %1444 = vmatprep.subr.bf16.mxu0 0
  %1445 = vmatpush1.bf16.msra.mxu0 0
  %1446 = vmatprep.subr.bf16.mxu0 0
  %1447 = vmatpush1.bf16.msra.mxu0 0
  %1448 = vmatprep.subr.bf16.mxu0 0
  %1449 = vmatpush1.bf16.msra.mxu0 0
  %1450 = vmatprep.subr.bf16.mxu0 0
  %1451 = vmatpush1.bf16.msra.mxu0 0
  %1452 = vmatprep.subr.bf16.mxu0 0
  %1453 = vmatpush1.bf16.msra.mxu0 0
  %1454 = vmatprep.subr.bf16.mxu0 0
  %1455 = vmatpush1.bf16.msra.mxu0 0
  %1456 = vmatprep.subr.bf16.mxu0 0
  %1457 = vmatpush1.bf16.msra.mxu0 0
  %1458 = vmatprep.subr.bf16.mxu0 0
  %1459 = vmatpush1.bf16.msra.mxu0 0
  %1460 = vmatprep.mubr.bf16.mxu0 0
  %1461 = vmatmul.mubr.bf16.gmra.mrb[0].mxu0 %v1147
  %v1462 = vpop.f32.mrb[0].mxu0
  %v1463 = vadd.f32 %v803, %v1462
  %v1464 = vpop.f32.mrb[0].mxu0
  %v1465 = vadd.f32 %v805, %v1464
  %v1466 = vpop.f32.mrb[0].mxu0
  %v1467 = vadd.f32 %v807, %v1466
  %v1468 = vpop.f32.mrb[0].mxu0
  %v1469 = vadd.f32 %v809, %v1468
  %1470 = vmatprep.mubr.bf16.mxu0 0
  %1471 = vmatmul.mubr.bf16.gmra.mrb[0].mxu0 %v472
  %v1472 = vpop.f32.mrb[0].mxu0
  %v1473 = vadd.f32 %v813, %v1472
  %v1474 = vpop.f32.mrb[0].mxu0
  %v1475 = vadd.f32 %v815, %v1474
  %v1476 = vpop.f32.mrb[0].mxu0
  %v1477 = vadd.f32 %v817, %v1476
  %v1478 = vpop.f32.mrb[0].mxu0
  %v1479 = vadd.f32 %v819, %v1478
  %1480 = vmatprep.mubr.bf16.mxu0 0
  %1481 = vmatmul.mubr.bf16.gmra.mrb[0].mxu0 %v475
  %v1482 = vpop.f32.mrb[0].mxu0
  %v1483 = vadd.f32 %v823, %v1482
  %v1484 = vpop.f32.mrb[0].mxu0
  %v1485 = vadd.f32 %v825, %v1484
  %v1486 = vpop.f32.mrb[0].mxu0
  %v1487 = vadd.f32 %v827, %v1486
  %v1488 = vpop.f32.mrb[0].mxu0
  %v1489 = vadd.f32 %v829, %v1488
  %1490 = vmatprep.mubr.bf16.mxu0 0
  %1491 = vmatmul.mubr.bf16.gmra.mrb[0].mxu0 %v478
  %v1492 = vpop.f32.mrb[0].mxu0
  %v1493 = vadd.f32 %v833, %v1492
  %v1494 = vpop.f32.mrb[0].mxu0
  %v1495 = vadd.f32 %v835, %v1494
  %v1496 = vpop.f32.mrb[0].mxu0
  %v1497 = vadd.f32 %v837, %v1496
  %v1498 = vpop.f32.mrb[0].mxu0
  %v1499 = vadd.f32 %v839, %v1498
  %1500 = vmatprep.mubr.bf16.mxu0 0
  %1501 = vmatmul.mubr.bf16.gmra.mrb[0].mxu0 %v481
  %v1502 = vpop.f32.mrb[0].mxu0
  %v1503 = vadd.f32 %v843, %v1502
  %v1504 = vpop.f32.mrb[0].mxu0
  %v1505 = vadd.f32 %v845, %v1504
  %v1506 = vpop.f32.mrb[0].mxu0
  %v1507 = vadd.f32 %v847, %v1506
  %v1508 = vpop.f32.mrb[0].mxu0
  %v1509 = vadd.f32 %v849, %v1508
  %1510 = vmatprep.mubr.bf16.mxu0 0
  %1511 = vmatmul.mubr.bf16.gmra.mrb[0].mxu0 %v484
  %v1512 = vpop.f32.mrb[0].mxu0
  %v1513 = vadd.f32 %v853, %v1512
  %v1514 = vpop.f32.mrb[0].mxu0
  %v1515 = vadd.f32 %v855, %v1514
  %v1516 = vpop.f32.mrb[0].mxu0
  %v1517 = vadd.f32 %v857, %v1516
  %v1518 = vpop.f32.mrb[0].mxu0
  %v1519 = vadd.f32 %v859, %v1518
  %1520 = vdwg.mxu0
  %v1521 = vmax.f32 %v1184, %v1370
  %v1522 = vmax.f32 %v1186, %v1372
  %v1523 = vmax.f32 %v1277, %v1463
  %v1524 = vmax.f32 %v1279, %v1465
  %v1525 = vmax.f32 %v1188, %v1374
  %v1526 = vmax.f32 %v1190, %v1376
  %v1527 = vmax.f32 %v1281, %v1467
  %v1528 = vmax.f32 %v1283, %v1469
  %v1529 = vmax.f32 %v1194, %v1380
  %v1530 = vmax.f32 %v1196, %v1382
  %v1531 = vmax.f32 %v1287, %v1473
  %v1532 = vmax.f32 %v1289, %v1475
  %v1533 = vmax.f32 %v1198, %v1384
  %v1534 = vmax.f32 %v1200, %v1386
  %v1535 = vmax.f32 %v1291, %v1477
  %v1536 = vmax.f32 %v1293, %v1479
  %v1537 = vmax.f32 %v1204, %v1390
  %v1538 = vmax.f32 %v1206, %v1392
  %v1539 = vmax.f32 %v1297, %v1483
  %v1540 = vmax.f32 %v1299, %v1485
  %v1541 = vmax.f32 %v1208, %v1394
  %v1542 = vmax.f32 %v1210, %v1396
  %v1543 = vmax.f32 %v1301, %v1487
  %v1544 = vmax.f32 %v1303, %v1489
  %v1545 = vmax.f32 %v1214, %v1400
  %v1546 = vmax.f32 %v1216, %v1402
  %v1547 = vmax.f32 %v1307, %v1493
  %v1548 = vmax.f32 %v1309, %v1495
  %v1549 = vmax.f32 %v1218, %v1404
  %v1550 = vmax.f32 %v1220, %v1406
  %v1551 = vmax.f32 %v1311, %v1497
  %v1552 = vmax.f32 %v1313, %v1499
  %v1553 = vmax.f32 %v1224, %v1410
  %v1554 = vmax.f32 %v1226, %v1412
  %v1555 = vmax.f32 %v1317, %v1503
  %v1556 = vmax.f32 %v1319, %v1505
  %v1557 = vmax.f32 %v1228, %v1414
  %v1558 = vmax.f32 %v1230, %v1416
  %v1559 = vmax.f32 %v1321, %v1507
  %v1560 = vmax.f32 %v1323, %v1509
  %v1561 = vmax.f32 %v1234, %v1420
  %v1562 = vmax.f32 %v1236, %v1422
  %v1563 = vmax.f32 %v1327, %v1513
  %v1564 = vmax.f32 %v1329, %v1515
  %v1565 = vmax.f32 %v1238, %v1424
  %v1566 = vmax.f32 %v1240, %v1426
  %v1567 = vmax.f32 %v1331, %v1517
  %v1568 = vmax.f32 %v1333, %v1519
  %v1569 = vmax.f32 %v1521, %v1522
  %v1570 = vmax.f32 %v1525, %v1526
  %v1571 = vmax.f32 %v1529, %v1530
  %v1572 = vmax.f32 %v1533, %v1534
  %v1573 = vmax.f32 %v1537, %v1538
  %v1574 = vmax.f32 %v1541, %v1542
  %v1575 = vmax.f32 %v1545, %v1546
  %v1576 = vmax.f32 %v1549, %v1550
  %v1577 = vmax.f32 %v1553, %v1554
  %v1578 = vmax.f32 %v1557, %v1558
  %v1579 = vmax.f32 %v1561, %v1562
  %v1580 = vmax.f32 %v1565, %v1566
  %v1581 = vld [vmem:[%s2] sm:$0x1]
  %v1583 = vlaneseq
  %v1584 = vshrl.u32 %v1583, 7
  %v1585 = vsub.s32 0, %v1584
  %v1586 = vrot.slane %v1581, %v1585
  %v1588 = vadd.f32 %v1569, %v1586
  %v1589 = vadd.f32 %v1570, %v1586
  %v1590 = vadd.f32 %v1571, %v1586
  %v1591 = vadd.f32 %v1572, %v1586
  %v1592 = vadd.f32 %v1573, %v1586
  %v1593 = vadd.f32 %v1574, %v1586
  %v1594 = vadd.f32 %v1575, %v1586
  %v1595 = vadd.f32 %v1576, %v1586
  %v1596 = vadd.f32 %v1577, %v1586
  %v1597 = vadd.f32 %v1578, %v1586
  %v1598 = vadd.f32 %v1579, %v1586
  %v1599 = vadd.f32 %v1580, %v1586
  %v1600 = vmax.f32 %v1588, 0.0
  %v1601 = vmax.f32 %v1589, 0.0
  %v1602 = vmax.f32 %v1590, 0.0
  %v1603 = vmax.f32 %v1591, 0.0
  %v1604 = vmax.f32 %v1592, 0.0
  %v1605 = vmax.f32 %v1593, 0.0
  %v1606 = vmax.f32 %v1594, 0.0
  %v1607 = vmax.f32 %v1595, 0.0
  %v1608 = vmax.f32 %v1596, 0.0
  %v1609 = vmax.f32 %v1597, 0.0
  %v1610 = vmax.f32 %v1598, 0.0
  %v1611 = vmax.f32 %v1599, 0.0
  %v1612 = vpack.c.bf16 %v1601, %v1600
  %v1613 = vpack.c.bf16 %v1603, %v1602
  %v1614 = vpack.c.bf16 %v1605, %v1604
  %v1615 = vpack.c.bf16 %v1607, %v1606
  %v1616 = vpack.c.bf16 %v1609, %v1608
  %v1617 = vpack.c.bf16 %v1611, %v1610
  %v1618 = vmax.f32 %v1523, %v1524
  %v1619 = vmax.f32 %v1527, %v1528
  %v1620 = vmax.f32 %v1531, %v1532
  %v1621 = vmax.f32 %v1535, %v1536
  %v1622 = vmax.f32 %v1539, %v1540
  %v1623 = vmax.f32 %v1543, %v1544
  %v1624 = vmax.f32 %v1547, %v1548
  %v1625 = vmax.f32 %v1551, %v1552
  %v1626 = vmax.f32 %v1555, %v1556
  %v1627 = vmax.f32 %v1559, %v1560
  %v1628 = vmax.f32 %v1563, %v1564
  %v1629 = vmax.f32 %v1567, %v1568
  %v1630 = vadd.f32 %v1618, %v1586
  %v1631 = vadd.f32 %v1619, %v1586
  %v1632 = vadd.f32 %v1620, %v1586
  %v1633 = vadd.f32 %v1621, %v1586
  %v1634 = vadd.f32 %v1622, %v1586
  %v1635 = vadd.f32 %v1623, %v1586
  %v1636 = vadd.f32 %v1624, %v1586
  %v1637 = vadd.f32 %v1625, %v1586
  %v1638 = vadd.f32 %v1626, %v1586
  %v1639 = vadd.f32 %v1627, %v1586
  %v1640 = vadd.f32 %v1628, %v1586
  %v1641 = vadd.f32 %v1629, %v1586
  %v1642 = vmax.f32 %v1630, 0.0
  %v1643 = vmax.f32 %v1631, 0.0
  %v1644 = vmax.f32 %v1632, 0.0
  %v1645 = vmax.f32 %v1633, 0.0
  %v1646 = vmax.f32 %v1634, 0.0
  %v1647 = vmax.f32 %v1635, 0.0
  %v1648 = vmax.f32 %v1636, 0.0
  %v1649 = vmax.f32 %v1637, 0.0
  %v1650 = vmax.f32 %v1638, 0.0
  %v1651 = vmax.f32 %v1639, 0.0
  %v1652 = vmax.f32 %v1640, 0.0
  %v1653 = vmax.f32 %v1641, 0.0
  %v1654 = vpack.c.bf16 %v1643, %v1642
  %v1655 = vpack.c.bf16 %v1645, %v1644
  %v1656 = vpack.c.bf16 %v1647, %v1646
  %v1657 = vpack.c.bf16 %v1649, %v1648
  %v1658 = vpack.c.bf16 %v1651, %v1650
  %v1659 = vpack.c.bf16 %v1653, %v1652
  %v1660 = vld [vmem:[%s3] sm:$0xff]
  %v1661 = vld [vmem:[%s3 + $0x8] sm:$0xff]
  %v1662 = vld [vmem:[%s3 + $0x10] sm:$0xff]
  %v1663 = vld [vmem:[%s3 + $0x18] sm:$0xff]
  %v1664 = vld [vmem:[%s3 + $0x20] sm:$0xff]
  %v1665 = vld [vmem:[%s3 + $0x28] sm:$0xff]
  %v1666 = vld [vmem:[%s3 + $0x30] sm:$0xff]
  %v1667 = vld [vmem:[%s3 + $0x38] sm:$0xff]
  %v1668 = vld [vmem:[%s3 + $0x40] sm:$0xff]
  %v1669 = vld [vmem:[%s3 + $0x48] sm:$0xff]
  %v1670 = vld [vmem:[%s3 + $0x50] sm:$0xff]
  %v1671 = vld [vmem:[%s3 + $0x58] sm:$0xff]
  %v1672 = vld [vmem:[%s3 + $0x60] sm:$0xff]
  %v1673 = vld [vmem:[%s3 + $0x68] sm:$0xff]
  %v1674 = vld [vmem:[%s3 + $0x70] sm:$0xff]
  %v1675 = vld [vmem:[%s3 + $0x78] sm:$0xff]
  %s1676 = scalar_lea.vmem %s3, 128
  %v1677 = vld [vmem:[%s1676] sm:$0xff]
  %v1678 = vld [vmem:[%s1676 + $0x8] sm:$0xff]
  %v1679 = vld [vmem:[%s1676 + $0x10] sm:$0xff]
  %v1680 = vld [vmem:[%s1676 + $0x18] sm:$0xff]
  %v1681 = vld [vmem:[%s1676 + $0x20] sm:$0xff]
  %v1682 = vld [vmem:[%s1676 + $0x28] sm:$0xff]
  %v1683 = vld [vmem:[%s1676 + $0x30] sm:$0xff]
  %v1684 = vld [vmem:[%s1676 + $0x38] sm:$0xff]
  %v1685 = vld [vmem:[%s1676 + $0x40] sm:$0xff]
  %v1686 = vld [vmem:[%s1676 + $0x48] sm:$0xff]
  %v1687 = vld [vmem:[%s1676 + $0x50] sm:$0xff]
  %v1688 = vld [vmem:[%s1676 + $0x58] sm:$0xff]
  %v1689 = vld [vmem:[%s1676 + $0x60] sm:$0xff]
  %v1690 = vld [vmem:[%s1676 + $0x68] sm:$0xff]
  %v1691 = vld [vmem:[%s1676 + $0x70] sm:$0xff]
  %v1692 = vld [vmem:[%s1676 + $0x78] sm:$0xff]
  %v1709 = vunpack.c.l.b16 %v1677
  %v1710 = vunpack.c.h.b16 %v1677
  %v1711 = vunpack.c.l.b16 %v1678
  %v1712 = vunpack.c.h.b16 %v1678
  %v1713 = vunpack.c.l.b16 %v1679
  %v1714 = vunpack.c.h.b16 %v1679
  %v1715 = vunpack.c.l.b16 %v1680
  %v1716 = vunpack.c.h.b16 %v1680
  %v1717 = vunpack.c.l.b16 %v1681
  %v1718 = vunpack.c.h.b16 %v1681
  %v1719 = vunpack.c.l.b16 %v1682
  %v1720 = vunpack.c.h.b16 %v1682
  %v1721 = vunpack.c.l.b16 %v1683
  %v1722 = vunpack.c.h.b16 %v1683
  %v1723 = vunpack.c.l.b16 %v1684
  %v1724 = vunpack.c.h.b16 %v1684
  %v1725 = vunpack.c.l.b16 %v1685
  %v1726 = vunpack.c.h.b16 %v1685
  %v1727 = vunpack.c.l.b16 %v1686
  %v1728 = vunpack.c.h.b16 %v1686
  %v1729 = vunpack.c.l.b16 %v1687
  %v1730 = vunpack.c.h.b16 %v1687
  %v1731 = vunpack.c.l.b16 %v1688
  %v1732 = vunpack.c.h.b16 %v1688
  %v1733 = vunpack.c.l.b16 %v1689
  %v1734 = vunpack.c.h.b16 %v1689
  %v1735 = vunpack.c.l.b16 %v1690
  %v1736 = vunpack.c.h.b16 %v1690
  %v1737 = vunpack.c.l.b16 %v1691
  %v1738 = vunpack.c.h.b16 %v1691
  %v1739 = vunpack.c.l.b16 %v1692
  %v1740 = vunpack.c.h.b16 %v1692
  %v1741 = vpack.c.b16 %v1711, %v1709
  %v1742 = vpack.c.b16 %v1712, %v1710
  %v1743 = vpack.c.b16 %v1715, %v1713
  %v1744 = vpack.c.b16 %v1716, %v1714
  %v1745 = vpack.c.b16 %v1719, %v1717
  %v1746 = vpack.c.b16 %v1720, %v1718
  %v1747 = vpack.c.b16 %v1723, %v1721
  %v1748 = vpack.c.b16 %v1724, %v1722
  %v1749 = vpack.c.b16 %v1727, %v1725
  %v1750 = vpack.c.b16 %v1728, %v1726
  %v1751 = vpack.c.b16 %v1731, %v1729
  %v1752 = vpack.c.b16 %v1732, %v1730
  %v1753 = vpack.c.b16 %v1735, %v1733
  %v1754 = vpack.c.b16 %v1736, %v1734
  %v1755 = vpack.c.b16 %v1739, %v1737
  %v1756 = vpack.c.b16 %v1740, %v1738
  %1773 = vmatprep.subr.bf16.mxu0 %v1742
  %1774 = vmatpush1.bf16.msra.mxu0 %v1741
  %1775 = vmatprep.subr.bf16.mxu0 %v1744
  %1776 = vmatpush1.bf16.msra.mxu0 %v1743
  %1777 = vmatprep.subr.bf16.mxu0 %v1746
  %1778 = vmatpush1.bf16.msra.mxu0 %v1745
  %1779 = vmatprep.subr.bf16.mxu0 %v1748
  %1780 = vmatpush1.bf16.msra.mxu0 %v1747
  %1781 = vmatprep.subr.bf16.mxu0 %v1750
  %1782 = vmatpush1.bf16.msra.mxu0 %v1749
  %1783 = vmatprep.subr.bf16.mxu0 %v1752
  %1784 = vmatpush1.bf16.msra.mxu0 %v1751
  %1785 = vmatprep.subr.bf16.mxu0 %v1754
  %1786 = vmatpush1.bf16.msra.mxu0 %v1753
  %1787 = vmatprep.subr.bf16.mxu0 %v1756
  %1788 = vmatpush1.bf16.msra.mxu0 %v1755
  %1789 = vmatprep.subr.bf16.mxu0 0
  %1790 = vmatpush1.bf16.msra.mxu0 0
  %1791 = vmatprep.subr.bf16.mxu0 0
  %1792 = vmatpush1.bf16.msra.mxu0 0
  %1793 = vmatprep.subr.bf16.mxu0 0
  %1794 = vmatpush1.bf16.msra.mxu0 0
  %1795 = vmatprep.subr.bf16.mxu0 0
  %1796 = vmatpush1.bf16.msra.mxu0 0
  %1797 = vmatprep.subr.bf16.mxu0 0
  %1798 = vmatpush1.bf16.msra.mxu0 0
  %1799 = vmatprep.subr.bf16.mxu0 0
  %1800 = vmatpush1.bf16.msra.mxu0 0
  %1801 = vmatprep.subr.bf16.mxu0 0
  %1802 = vmatpush1.bf16.msra.mxu0 0
  %1803 = vmatprep.subr.bf16.mxu0 0
  %1804 = vmatpush1.bf16.msra.mxu0 0
  %1805 = vmatprep.mubr.bf16.mxu0 0
  %1806 = vmatmul.mubr.bf16.gmra.mrb[0].mxu0 %v1654
  %v1807 = vpop.f32.mrb[0].mxu0
  %v1808 = vadd.f32 0.0, %v1807
  %v1809 = vpop.f32.mrb[0].mxu0
  %v1810 = vadd.f32 0.0, %v1809
  %v1811 = vpop.f32.mrb[0].mxu0
  %v1812 = vadd.f32 0.0, %v1811
  %v1813 = vpop.f32.mrb[0].mxu0
  %v1814 = vadd.f32 0.0, %v1813
  %1815 = vmatprep.mubr.bf16.mxu0 0
  %1816 = vmatmul.mubr.bf16.gmra.mrb[0].mxu0 %v1655
  %v1817 = vpop.f32.mrb[0].mxu0
  %v1818 = vadd.f32 0.0, %v1817
  %v1819 = vpop.f32.mrb[0].mxu0
  %v1820 = vadd.f32 0.0, %v1819
  %v1821 = vpop.f32.mrb[0].mxu0
  %v1822 = vadd.f32 0.0, %v1821
  %v1823 = vpop.f32.mrb[0].mxu0
  %v1824 = vadd.f32 0.0, %v1823
  %1825 = vmatprep.mubr.bf16.mxu0 0
  %1826 = vmatmul.mubr.bf16.gmra.mrb[0].mxu0 %v1656
  %v1827 = vpop.f32.mrb[0].mxu0
  %v1828 = vadd.f32 0.0, %v1827
  %v1829 = vpop.f32.mrb[0].mxu0
  %v1830 = vadd.f32 0.0, %v1829
  %v1831 = vpop.f32.mrb[0].mxu0
  %v1832 = vadd.f32 0.0, %v1831
  %v1833 = vpop.f32.mrb[0].mxu0
  %v1834 = vadd.f32 0.0, %v1833
  %1835 = vmatprep.mubr.bf16.mxu0 0
  %1836 = vmatmul.mubr.bf16.gmra.mrb[0].mxu0 %v1657
  %v1837 = vpop.f32.mrb[0].mxu0
  %v1838 = vadd.f32 0.0, %v1837
  %v1839 = vpop.f32.mrb[0].mxu0
  %v1840 = vadd.f32 0.0, %v1839
  %v1841 = vpop.f32.mrb[0].mxu0
  %v1842 = vadd.f32 0.0, %v1841
  %v1843 = vpop.f32.mrb[0].mxu0
  %v1844 = vadd.f32 0.0, %v1843
  %1845 = vdwg.mxu0
  %v1862 = vunpack.c.l.b16 %v1660
  %v1863 = vunpack.c.h.b16 %v1660
  %v1864 = vunpack.c.l.b16 %v1661
  %v1865 = vunpack.c.h.b16 %v1661
  %v1866 = vunpack.c.l.b16 %v1662
  %v1867 = vunpack.c.h.b16 %v1662
  %v1868 = vunpack.c.l.b16 %v1663
  %v1869 = vunpack.c.h.b16 %v1663
  %v1870 = vunpack.c.l.b16 %v1664
  %v1871 = vunpack.c.h.b16 %v1664
  %v1872 = vunpack.c.l.b16 %v1665
  %v1873 = vunpack.c.h.b16 %v1665
  %v1874 = vunpack.c.l.b16 %v1666
  %v1875 = vunpack.c.h.b16 %v1666
  %v1876 = vunpack.c.l.b16 %v1667
  %v1877 = vunpack.c.h.b16 %v1667
  %v1878 = vunpack.c.l.b16 %v1668
  %v1879 = vunpack.c.h.b16 %v1668
  %v1880 = vunpack.c.l.b16 %v1669
  %v1881 = vunpack.c.h.b16 %v1669
  %v1882 = vunpack.c.l.b16 %v1670
  %v1883 = vunpack.c.h.b16 %v1670
  %v1884 = vunpack.c.l.b16 %v1671
  %v1885 = vunpack.c.h.b16 %v1671
  %v1886 = vunpack.c.l.b16 %v1672
  %v1887 = vunpack.c.h.b16 %v1672
  %v1888 = vunpack.c.l.b16 %v1673
  %v1889 = vunpack.c.h.b16 %v1673
  %v1890 = vunpack.c.l.b16 %v1674
  %v1891 = vunpack.c.h.b16 %v1674
  %v1892 = vunpack.c.l.b16 %v1675
  %v1893 = vunpack.c.h.b16 %v1675
  %v1894 = vpack.c.b16 %v1864, %v1862
  %v1895 = vpack.c.b16 %v1865, %v1863
  %v1896 = vpack.c.b16 %v1868, %v1866
  %v1897 = vpack.c.b16 %v1869, %v1867
  %v1898 = vpack.c.b16 %v1872, %v1870
  %v1899 = vpack.c.b16 %v1873, %v1871
  %v1900 = vpack.c.b16 %v1876, %v1874
  %v1901 = vpack.c.b16 %v1877, %v1875
  %v1902 = vpack.c.b16 %v1880, %v1878
  %v1903 = vpack.c.b16 %v1881, %v1879
  %v1904 = vpack.c.b16 %v1884, %v1882
  %v1905 = vpack.c.b16 %v1885, %v1883
  %v1906 = vpack.c.b16 %v1888, %v1886
  %v1907 = vpack.c.b16 %v1889, %v1887
  %v1908 = vpack.c.b16 %v1892, %v1890
  %v1909 = vpack.c.b16 %v1893, %v1891
  %1926 = vmatprep.subr.bf16.mxu0 %v1895
  %1927 = vmatpush1.bf16.msra.mxu0 %v1894
  %1928 = vmatprep.subr.bf16.mxu0 %v1897
  %1929 = vmatpush1.bf16.msra.mxu0 %v1896
  %1930 = vmatprep.subr.bf16.mxu0 %v1899
  %1931 = vmatpush1.bf16.msra.mxu0 %v1898
  %1932 = vmatprep.subr.bf16.mxu0 %v1901
  %1933 = vmatpush1.bf16.msra.mxu0 %v1900
  %1934 = vmatprep.subr.bf16.mxu0 %v1903
  %1935 = vmatpush1.bf16.msra.mxu0 %v1902
  %1936 = vmatprep.subr.bf16.mxu0 %v1905
  %1937 = vmatpush1.bf16.msra.mxu0 %v1904
  %1938 = vmatprep.subr.bf16.mxu0 %v1907
  %1939 = vmatpush1.bf16.msra.mxu0 %v1906
  %1940 = vmatprep.subr.bf16.mxu0 %v1909
  %1941 = vmatpush1.bf16.msra.mxu0 %v1908
  %1942 = vmatprep.subr.bf16.mxu0 0
  %1943 = vmatpush1.bf16.msra.mxu0 0
  %1944 = vmatprep.subr.bf16.mxu0 0
  %1945 = vmatpush1.bf16.msra.mxu0 0
  %1946 = vmatprep.subr.bf16.mxu0 0
  %1947 = vmatpush1.bf16.msra.mxu0 0
  %1948 = vmatprep.subr.bf16.mxu0 0
  %1949 = vmatpush1.bf16.msra.mxu0 0
  %1950 = vmatprep.subr.bf16.mxu0 0
  %1951 = vmatpush1.bf16.msra.mxu0 0
  %1952 = vmatprep.subr.bf16.mxu0 0
  %1953 = vmatpush1.bf16.msra.mxu0 0
  %1954 = vmatprep.subr.bf16.mxu0 0
  %1955 = vmatpush1.bf16.msra.mxu0 0
  %1956 = vmatprep.subr.bf16.mxu0 0
  %1957 = vmatpush1.bf16.msra.mxu0 0
  %1958 = vmatprep.mubr.bf16.mxu0 0
  %1959 = vmatmul.mubr.bf16.gmra.mrb[0].mxu0 %v1612
  %v1960 = vpop.f32.mrb[0].mxu0
  %v1961 = vadd.f32 %v1808, %v1960
  %v1962 = vpop.f32.mrb[0].mxu0
  %v1963 = vadd.f32 %v1810, %v1962
  %v1964 = vpop.f32.mrb[0].mxu0
  %v1965 = vadd.f32 %v1812, %v1964
  %v1966 = vpop.f32.mrb[0].mxu0
  %v1967 = vadd.f32 %v1814, %v1966
  %1968 = vmatprep.mubr.bf16.mxu0 0
  %1969 = vmatmul.mubr.bf16.gmra.mrb[0].mxu0 %v1613
  %v1970 = vpop.f32.mrb[0].mxu0
  %v1971 = vadd.f32 %v1818, %v1970
  %v1972 = vpop.f32.mrb[0].mxu0
  %v1973 = vadd.f32 %v1820, %v1972
  %v1974 = vpop.f32.mrb[0].mxu0
  %v1975 = vadd.f32 %v1822, %v1974
  %v1976 = vpop.f32.mrb[0].mxu0
  %v1977 = vadd.f32 %v1824, %v1976
  %1978 = vmatprep.mubr.bf16.mxu0 0
  %1979 = vmatmul.mubr.bf16.gmra.mrb[0].mxu0 %v1614
  %v1980 = vpop.f32.mrb[0].mxu0
  %v1981 = vadd.f32 %v1828, %v1980
  %v1982 = vpop.f32.mrb[0].mxu0
  %v1983 = vadd.f32 %v1830, %v1982
  %v1984 = vpop.f32.mrb[0].mxu0
  %v1985 = vadd.f32 %v1832, %v1984
  %v1986 = vpop.f32.mrb[0].mxu0
  %v1987 = vadd.f32 %v1834, %v1986
  %1988 = vmatprep.mubr.bf16.mxu0 0
  %1989 = vmatmul.mubr.bf16.gmra.mrb[0].mxu0 %v1615
  %v1990 = vpop.f32.mrb[0].mxu0
  %v1991 = vadd.f32 %v1838, %v1990
  %v1992 = vpop.f32.mrb[0].mxu0
  %v1993 = vadd.f32 %v1840, %v1992
  %v1994 = vpop.f32.mrb[0].mxu0
  %v1995 = vadd.f32 %v1842, %v1994
  %v1996 = vpop.f32.mrb[0].mxu0
  %v1997 = vadd.f32 %v1844, %v1996
  %1998 = vdwg.mxu0
  %1999 = vmatprep.subr.bf16.mxu0 %v1742
  %2000 = vmatpush1.bf16.msra.mxu0 %v1741
  %2001 = vmatprep.subr.bf16.mxu0 %v1744
  %2002 = vmatpush1.bf16.msra.mxu0 %v1743
  %2003 = vmatprep.subr.bf16.mxu0 %v1746
  %2004 = vmatpush1.bf16.msra.mxu0 %v1745
  %2005 = vmatprep.subr.bf16.mxu0 %v1748
  %2006 = vmatpush1.bf16.msra.mxu0 %v1747
  %2007 = vmatprep.subr.bf16.mxu0 %v1750
  %2008 = vmatpush1.bf16.msra.mxu0 %v1749
  %2009 = vmatprep.subr.bf16.mxu0 %v1752
  %2010 = vmatpush1.bf16.msra.mxu0 %v1751
  %2011 = vmatprep.subr.bf16.mxu0 %v1754
  %2012 = vmatpush1.bf16.msra.mxu0 %v1753
  %2013 = vmatprep.subr.bf16.mxu0 %v1756
  %2014 = vmatpush1.bf16.msra.mxu0 %v1755
  %2015 = vmatprep.subr.bf16.mxu0 0
  %2016 = vmatpush1.bf16.msra.mxu0 0
  %2017 = vmatprep.subr.bf16.mxu0 0
  %2018 = vmatpush1.bf16.msra.mxu0 0
  %2019 = vmatprep.subr.bf16.mxu0 0
  %2020 = vmatpush1.bf16.msra.mxu0 0
  %2021 = vmatprep.subr.bf16.mxu0 0
  %2022 = vmatpush1.bf16.msra.mxu0 0
  %2023 = vmatprep.subr.bf16.mxu0 0
  %2024 = vmatpush1.bf16.msra.mxu0 0
  %2025 = vmatprep.subr.bf16.mxu0 0
  %2026 = vmatpush1.bf16.msra.mxu0 0
  %2027 = vmatprep.subr.bf16.mxu0 0
  %2028 = vmatpush1.bf16.msra.mxu0 0
  %2029 = vmatprep.subr.bf16.mxu0 0
  %2030 = vmatpush1.bf16.msra.mxu0 0
  %2031 = vmatprep.mubr.bf16.mxu0 0
  %2032 = vmatmul.mubr.bf16.gmra.mrb[0].mxu0 %v1613
  %v2033 = vpop.f32.mrb[0].mxu0
  %v2034 = vadd.f32 0.0, %v2033
  %v2035 = vpop.f32.mrb[0].mxu0
  %v2036 = vadd.f32 0.0, %v2035
  %v2037 = vpop.f32.mrb[0].mxu0
  %v2038 = vadd.f32 0.0, %v2037
  %v2039 = vpop.f32.mrb[0].mxu0
  %v2040 = vadd.f32 0.0, %v2039
  %2041 = vmatprep.mubr.bf16.mxu0 0
  %2042 = vmatmul.mubr.bf16.gmra.mrb[0].mxu0 %v1614
  %v2043 = vpop.f32.mrb[0].mxu0
  %v2044 = vadd.f32 0.0, %v2043
  %v2045 = vpop.f32.mrb[0].mxu0
  %v2046 = vadd.f32 0.0, %v2045
  %v2047 = vpop.f32.mrb[0].mxu0
  %v2048 = vadd.f32 0.0, %v2047
  %v2049 = vpop.f32.mrb[0].mxu0
  %v2050 = vadd.f32 0.0, %v2049
  %2051 = vmatprep.mubr.bf16.mxu0 0
  %2052 = vmatmul.mubr.bf16.gmra.mrb[0].mxu0 %v1615
  %v2053 = vpop.f32.mrb[0].mxu0
  %v2054 = vadd.f32 0.0, %v2053
  %v2055 = vpop.f32.mrb[0].mxu0
  %v2056 = vadd.f32 0.0, %v2055
  %v2057 = vpop.f32.mrb[0].mxu0
  %v2058 = vadd.f32 0.0, %v2057
  %v2059 = vpop.f32.mrb[0].mxu0
  %v2060 = vadd.f32 0.0, %v2059
  %2061 = vmatprep.mubr.bf16.mxu0 0
  %2062 = vmatmul.mubr.bf16.gmra.mrb[0].mxu0 %v1616
  %v2063 = vpop.f32.mrb[0].mxu0
  %v2064 = vadd.f32 0.0, %v2063
  %v2065 = vpop.f32.mrb[0].mxu0
  %v2066 = vadd.f32 0.0, %v2065
  %v2067 = vpop.f32.mrb[0].mxu0
  %v2068 = vadd.f32 0.0, %v2067
  %v2069 = vpop.f32.mrb[0].mxu0
  %v2070 = vadd.f32 0.0, %v2069
  %2071 = vdwg.mxu0
  %2072 = vmatprep.subr.bf16.mxu0 %v1895
  %2073 = vmatpush1.bf16.msra.mxu0 %v1894
  %2074 = vmatprep.subr.bf16.mxu0 %v1897
  %2075 = vmatpush1.bf16.msra.mxu0 %v1896
  %2076 = vmatprep.subr.bf16.mxu0 %v1899
  %2077 = vmatpush1.bf16.msra.mxu0 %v1898
  %2078 = vmatprep.subr.bf16.mxu0 %v1901
  %2079 = vmatpush1.bf16.msra.mxu0 %v1900
  %2080 = vmatprep.subr.bf16.mxu0 %v1903
  %2081 = vmatpush1.bf16.msra.mxu0 %v1902
  %2082 = vmatprep.subr.bf16.mxu0 %v1905
  %2083 = vmatpush1.bf16.msra.mxu0 %v1904
  %2084 = vmatprep.subr.bf16.mxu0 %v1907
  %2085 = vmatpush1.bf16.msra.mxu0 %v1906
  %2086 = vmatprep.subr.bf16.mxu0 %v1909
  %2087 = vmatpush1.bf16.msra.mxu0 %v1908
  %2088 = vmatprep.subr.bf16.mxu0 0
  %2089 = vmatpush1.bf16.msra.mxu0 0
  %2090 = vmatprep.subr.bf16.mxu0 0
  %2091 = vmatpush1.bf16.msra.mxu0 0
  %2092 = vmatprep.subr.bf16.mxu0 0
  %2093 = vmatpush1.bf16.msra.mxu0 0
  %2094 = vmatprep.subr.bf16.mxu0 0
  %2095 = vmatpush1.bf16.msra.mxu0 0
  %2096 = vmatprep.subr.bf16.mxu0 0
  %2097 = vmatpush1.bf16.msra.mxu0 0
  %2098 = vmatprep.subr.bf16.mxu0 0
  %2099 = vmatpush1.bf16.msra.mxu0 0
  %2100 = vmatprep.subr.bf16.mxu0 0
  %2101 = vmatpush1.bf16.msra.mxu0 0
  %2102 = vmatprep.subr.bf16.mxu0 0
  %2103 = vmatpush1.bf16.msra.mxu0 0
  %2104 = vmatprep.mubr.bf16.mxu0 0
  %2105 = vmatmul.mubr.bf16.gmra.mrb[0].mxu0 %v1654
  %v2106 = vpop.f32.mrb[0].mxu0
  %v2107 = vadd.f32 %v2034, %v2106
  %v2108 = vpop.f32.mrb[0].mxu0
  %v2109 = vadd.f32 %v2036, %v2108
  %v2110 = vpop.f32.mrb[0].mxu0
  %v2111 = vadd.f32 %v2038, %v2110
  %v2112 = vpop.f32.mrb[0].mxu0
  %v2113 = vadd.f32 %v2040, %v2112
  %2114 = vmatprep.mubr.bf16.mxu0 0
  %2115 = vmatmul.mubr.bf16.gmra.mrb[0].mxu0 %v1655
  %v2116 = vpop.f32.mrb[0].mxu0
  %v2117 = vadd.f32 %v2044, %v2116
  %v2118 = vpop.f32.mrb[0].mxu0
  %v2119 = vadd.f32 %v2046, %v2118
  %v2120 = vpop.f32.mrb[0].mxu0
  %v2121 = vadd.f32 %v2048, %v2120
  %v2122 = vpop.f32.mrb[0].mxu0
  %v2123 = vadd.f32 %v2050, %v2122
  %2124 = vmatprep.mubr.bf16.mxu0 0
  %2125 = vmatmul.mubr.bf16.gmra.mrb[0].mxu0 %v1656
  %v2126 = vpop.f32.mrb[0].mxu0
  %v2127 = vadd.f32 %v2054, %v2126
  %v2128 = vpop.f32.mrb[0].mxu0
  %v2129 = vadd.f32 %v2056, %v2128
  %v2130 = vpop.f32.mrb[0].mxu0
  %v2131 = vadd.f32 %v2058, %v2130
  %v2132 = vpop.f32.mrb[0].mxu0
  %v2133 = vadd.f32 %v2060, %v2132
  %2134 = vmatprep.mubr.bf16.mxu0 0
  %2135 = vmatmul.mubr.bf16.gmra.mrb[0].mxu0 %v1657
  %v2136 = vpop.f32.mrb[0].mxu0
  %v2137 = vadd.f32 %v2064, %v2136
  %v2138 = vpop.f32.mrb[0].mxu0
  %v2139 = vadd.f32 %v2066, %v2138
  %v2140 = vpop.f32.mrb[0].mxu0
  %v2141 = vadd.f32 %v2068, %v2140
  %v2142 = vpop.f32.mrb[0].mxu0
  %v2143 = vadd.f32 %v2070, %v2142
  %2144 = vdwg.mxu0
  %s2145 = scalar_lea.vmem %s3, 256
  %v2146 = vld [vmem:[%s2145] sm:$0xff]
  %v2147 = vld [vmem:[%s2145 + $0x8] sm:$0xff]
  %v2148 = vld [vmem:[%s2145 + $0x10] sm:$0xff]
  %v2149 = vld [vmem:[%s2145 + $0x18] sm:$0xff]
  %v2150 = vld [vmem:[%s2145 + $0x20] sm:$0xff]
  %v2151 = vld [vmem:[%s2145 + $0x28] sm:$0xff]
  %v2152 = vld [vmem:[%s2145 + $0x30] sm:$0xff]
  %v2153 = vld [vmem:[%s2145 + $0x38] sm:$0xff]
  %v2154 = vld [vmem:[%s2145 + $0x40] sm:$0xff]
  %v2155 = vld [vmem:[%s2145 + $0x48] sm:$0xff]
  %v2156 = vld [vmem:[%s2145 + $0x50] sm:$0xff]
  %v2157 = vld [vmem:[%s2145 + $0x58] sm:$0xff]
  %v2158 = vld [vmem:[%s2145 + $0x60] sm:$0xff]
  %v2159 = vld [vmem:[%s2145 + $0x68] sm:$0xff]
  %v2160 = vld [vmem:[%s2145 + $0x70] sm:$0xff]
  %v2161 = vld [vmem:[%s2145 + $0x78] sm:$0xff]
  %v2178 = vunpack.c.l.b16 %v2146
  %v2179 = vunpack.c.h.b16 %v2146
  %v2180 = vunpack.c.l.b16 %v2147
  %v2181 = vunpack.c.h.b16 %v2147
  %v2182 = vunpack.c.l.b16 %v2148
  %v2183 = vunpack.c.h.b16 %v2148
  %v2184 = vunpack.c.l.b16 %v2149
  %v2185 = vunpack.c.h.b16 %v2149
  %v2186 = vunpack.c.l.b16 %v2150
  %v2187 = vunpack.c.h.b16 %v2150
  %v2188 = vunpack.c.l.b16 %v2151
  %v2189 = vunpack.c.h.b16 %v2151
  %v2190 = vunpack.c.l.b16 %v2152
  %v2191 = vunpack.c.h.b16 %v2152
  %v2192 = vunpack.c.l.b16 %v2153
  %v2193 = vunpack.c.h.b16 %v2153
  %v2194 = vunpack.c.l.b16 %v2154
  %v2195 = vunpack.c.h.b16 %v2154
  %v2196 = vunpack.c.l.b16 %v2155
  %v2197 = vunpack.c.h.b16 %v2155
  %v2198 = vunpack.c.l.b16 %v2156
  %v2199 = vunpack.c.h.b16 %v2156
  %v2200 = vunpack.c.l.b16 %v2157
  %v2201 = vunpack.c.h.b16 %v2157
  %v2202 = vunpack.c.l.b16 %v2158
  %v2203 = vunpack.c.h.b16 %v2158
  %v2204 = vunpack.c.l.b16 %v2159
  %v2205 = vunpack.c.h.b16 %v2159
  %v2206 = vunpack.c.l.b16 %v2160
  %v2207 = vunpack.c.h.b16 %v2160
  %v2208 = vunpack.c.l.b16 %v2161
  %v2209 = vunpack.c.h.b16 %v2161
  %v2210 = vpack.c.b16 %v2180, %v2178
  %v2211 = vpack.c.b16 %v2181, %v2179
  %v2212 = vpack.c.b16 %v2184, %v2182
  %v2213 = vpack.c.b16 %v2185, %v2183
  %v2214 = vpack.c.b16 %v2188, %v2186
  %v2215 = vpack.c.b16 %v2189, %v2187
  %v2216 = vpack.c.b16 %v2192, %v2190
  %v2217 = vpack.c.b16 %v2193, %v2191
  %v2218 = vpack.c.b16 %v2196, %v2194
  %v2219 = vpack.c.b16 %v2197, %v2195
  %v2220 = vpack.c.b16 %v2200, %v2198
  %v2221 = vpack.c.b16 %v2201, %v2199
  %v2222 = vpack.c.b16 %v2204, %v2202
  %v2223 = vpack.c.b16 %v2205, %v2203
  %v2224 = vpack.c.b16 %v2208, %v2206
  %v2225 = vpack.c.b16 %v2209, %v2207
  %2242 = vmatprep.subr.bf16.mxu0 %v2211
  %2243 = vmatpush1.bf16.msra.mxu0 %v2210
  %2244 = vmatprep.subr.bf16.mxu0 %v2213
  %2245 = vmatpush1.bf16.msra.mxu0 %v2212
  %2246 = vmatprep.subr.bf16.mxu0 %v2215
  %2247 = vmatpush1.bf16.msra.mxu0 %v2214
  %2248 = vmatprep.subr.bf16.mxu0 %v2217
  %2249 = vmatpush1.bf16.msra.mxu0 %v2216
  %2250 = vmatprep.subr.bf16.mxu0 %v2219
  %2251 = vmatpush1.bf16.msra.mxu0 %v2218
  %2252 = vmatprep.subr.bf16.mxu0 %v2221
  %2253 = vmatpush1.bf16.msra.mxu0 %v2220
  %2254 = vmatprep.subr.bf16.mxu0 %v2223
  %2255 = vmatpush1.bf16.msra.mxu0 %v2222
  %2256 = vmatprep.subr.bf16.mxu0 %v2225
  %2257 = vmatpush1.bf16.msra.mxu0 %v2224
  %2258 = vmatprep.subr.bf16.mxu0 0
  %2259 = vmatpush1.bf16.msra.mxu0 0
  %2260 = vmatprep.subr.bf16.mxu0 0
  %2261 = vmatpush1.bf16.msra.mxu0 0
  %2262 = vmatprep.subr.bf16.mxu0 0
  %2263 = vmatpush1.bf16.msra.mxu0 0
  %2264 = vmatprep.subr.bf16.mxu0 0
  %2265 = vmatpush1.bf16.msra.mxu0 0
  %2266 = vmatprep.subr.bf16.mxu0 0
  %2267 = vmatpush1.bf16.msra.mxu0 0
  %2268 = vmatprep.subr.bf16.mxu0 0
  %2269 = vmatpush1.bf16.msra.mxu0 0
  %2270 = vmatprep.subr.bf16.mxu0 0
  %2271 = vmatpush1.bf16.msra.mxu0 0
  %2272 = vmatprep.subr.bf16.mxu0 0
  %2273 = vmatpush1.bf16.msra.mxu0 0
  %2274 = vmatprep.mubr.bf16.mxu0 0
  %2275 = vmatmul.mubr.bf16.gmra.mrb[0].mxu0 %v1613
  %v2276 = vpop.f32.mrb[0].mxu0
  %v2277 = vadd.f32 0.0, %v2276
  %v2278 = vpop.f32.mrb[0].mxu0
  %v2279 = vadd.f32 0.0, %v2278
  %v2280 = vpop.f32.mrb[0].mxu0
  %v2281 = vadd.f32 0.0, %v2280
  %v2282 = vpop.f32.mrb[0].mxu0
  %v2283 = vadd.f32 0.0, %v2282
  %2284 = vmatprep.mubr.bf16.mxu0 0
  %2285 = vmatmul.mubr.bf16.gmra.mrb[0].mxu0 %v1614
  %v2286 = vpop.f32.mrb[0].mxu0
  %v2287 = vadd.f32 0.0, %v2286
  %v2288 = vpop.f32.mrb[0].mxu0
  %v2289 = vadd.f32 0.0, %v2288
  %v2290 = vpop.f32.mrb[0].mxu0
  %v2291 = vadd.f32 0.0, %v2290
  %v2292 = vpop.f32.mrb[0].mxu0
  %v2293 = vadd.f32 0.0, %v2292
  %2294 = vmatprep.mubr.bf16.mxu0 0
  %2295 = vmatmul.mubr.bf16.gmra.mrb[0].mxu0 %v1615
  %v2296 = vpop.f32.mrb[0].mxu0
  %v2297 = vadd.f32 0.0, %v2296
  %v2298 = vpop.f32.mrb[0].mxu0
  %v2299 = vadd.f32 0.0, %v2298
  %v2300 = vpop.f32.mrb[0].mxu0
  %v2301 = vadd.f32 0.0, %v2300
  %v2302 = vpop.f32.mrb[0].mxu0
  %v2303 = vadd.f32 0.0, %v2302
  %2304 = vmatprep.mubr.bf16.mxu0 0
  %2305 = vmatmul.mubr.bf16.gmra.mrb[0].mxu0 %v1616
  %v2306 = vpop.f32.mrb[0].mxu0
  %v2307 = vadd.f32 0.0, %v2306
  %v2308 = vpop.f32.mrb[0].mxu0
  %v2309 = vadd.f32 0.0, %v2308
  %v2310 = vpop.f32.mrb[0].mxu0
  %v2311 = vadd.f32 0.0, %v2310
  %v2312 = vpop.f32.mrb[0].mxu0
  %v2313 = vadd.f32 0.0, %v2312
  %2314 = vdwg.mxu0
  %v2315 = vadd.f32 %v1961, %v2277
  %v2316 = vadd.f32 %v1963, %v2279
  %v2317 = vadd.f32 %v1965, %v2281
  %v2318 = vadd.f32 %v1967, %v2283
  %v2319 = vadd.f32 %v1971, %v2287
  %v2320 = vadd.f32 %v1973, %v2289
  %v2321 = vadd.f32 %v1975, %v2291
  %v2322 = vadd.f32 %v1977, %v2293
  %v2323 = vadd.f32 %v1981, %v2297
  %v2324 = vadd.f32 %v1983, %v2299
  %v2325 = vadd.f32 %v1985, %v2301
  %v2326 = vadd.f32 %v1987, %v2303
  %v2327 = vadd.f32 %v1991, %v2307
  %v2328 = vadd.f32 %v1993, %v2309
  %v2329 = vadd.f32 %v1995, %v2311
  %v2330 = vadd.f32 %v1997, %v2313
  %2331 = vmatprep.subr.bf16.mxu0 %v2211
  %2332 = vmatpush1.bf16.msra.mxu0 %v2210
  %2333 = vmatprep.subr.bf16.mxu0 %v2213
  %2334 = vmatpush1.bf16.msra.mxu0 %v2212
  %2335 = vmatprep.subr.bf16.mxu0 %v2215
  %2336 = vmatpush1.bf16.msra.mxu0 %v2214
  %2337 = vmatprep.subr.bf16.mxu0 %v2217
  %2338 = vmatpush1.bf16.msra.mxu0 %v2216
  %2339 = vmatprep.subr.bf16.mxu0 %v2219
  %2340 = vmatpush1.bf16.msra.mxu0 %v2218
  %2341 = vmatprep.subr.bf16.mxu0 %v2221
  %2342 = vmatpush1.bf16.msra.mxu0 %v2220
  %2343 = vmatprep.subr.bf16.mxu0 %v2223
  %2344 = vmatpush1.bf16.msra.mxu0 %v2222
  %2345 = vmatprep.subr.bf16.mxu0 %v2225
  %2346 = vmatpush1.bf16.msra.mxu0 %v2224
  %2347 = vmatprep.subr.bf16.mxu0 0
  %2348 = vmatpush1.bf16.msra.mxu0 0
  %2349 = vmatprep.subr.bf16.mxu0 0
  %2350 = vmatpush1.bf16.msra.mxu0 0
  %2351 = vmatprep.subr.bf16.mxu0 0
  %2352 = vmatpush1.bf16.msra.mxu0 0
  %2353 = vmatprep.subr.bf16.mxu0 0
  %2354 = vmatpush1.bf16.msra.mxu0 0
  %2355 = vmatprep.subr.bf16.mxu0 0
  %2356 = vmatpush1.bf16.msra.mxu0 0
  %2357 = vmatprep.subr.bf16.mxu0 0
  %2358 = vmatpush1.bf16.msra.mxu0 0
  %2359 = vmatprep.subr.bf16.mxu0 0
  %2360 = vmatpush1.bf16.msra.mxu0 0
  %2361 = vmatprep.subr.bf16.mxu0 0
  %2362 = vmatpush1.bf16.msra.mxu0 0
  %2363 = vmatprep.mubr.bf16.mxu0 0
  %2364 = vmatmul.mubr.bf16.gmra.mrb[0].mxu0 %v1655
  %v2365 = vpop.f32.mrb[0].mxu0
  %v2366 = vadd.f32 0.0, %v2365
  %v2367 = vpop.f32.mrb[0].mxu0
  %v2368 = vadd.f32 0.0, %v2367
  %v2369 = vpop.f32.mrb[0].mxu0
  %v2370 = vadd.f32 0.0, %v2369
  %v2371 = vpop.f32.mrb[0].mxu0
  %v2372 = vadd.f32 0.0, %v2371
  %2373 = vmatprep.mubr.bf16.mxu0 0
  %2374 = vmatmul.mubr.bf16.gmra.mrb[0].mxu0 %v1656
  %v2375 = vpop.f32.mrb[0].mxu0
  %v2376 = vadd.f32 0.0, %v2375
  %v2377 = vpop.f32.mrb[0].mxu0
  %v2378 = vadd.f32 0.0, %v2377
  %v2379 = vpop.f32.mrb[0].mxu0
  %v2380 = vadd.f32 0.0, %v2379
  %v2381 = vpop.f32.mrb[0].mxu0
  %v2382 = vadd.f32 0.0, %v2381
  %2383 = vmatprep.mubr.bf16.mxu0 0
  %2384 = vmatmul.mubr.bf16.gmra.mrb[0].mxu0 %v1657
  %v2385 = vpop.f32.mrb[0].mxu0
  %v2386 = vadd.f32 0.0, %v2385
  %v2387 = vpop.f32.mrb[0].mxu0
  %v2388 = vadd.f32 0.0, %v2387
  %v2389 = vpop.f32.mrb[0].mxu0
  %v2390 = vadd.f32 0.0, %v2389
  %v2391 = vpop.f32.mrb[0].mxu0
  %v2392 = vadd.f32 0.0, %v2391
  %2393 = vmatprep.mubr.bf16.mxu0 0
  %2394 = vmatmul.mubr.bf16.gmra.mrb[0].mxu0 %v1658
  %v2395 = vpop.f32.mrb[0].mxu0
  %v2396 = vadd.f32 0.0, %v2395
  %v2397 = vpop.f32.mrb[0].mxu0
  %v2398 = vadd.f32 0.0, %v2397
  %v2399 = vpop.f32.mrb[0].mxu0
  %v2400 = vadd.f32 0.0, %v2399
  %v2401 = vpop.f32.mrb[0].mxu0
  %v2402 = vadd.f32 0.0, %v2401
  %2403 = vdwg.mxu0
  %v2404 = vadd.f32 %v2107, %v2366
  %v2405 = vadd.f32 %v2109, %v2368
  %v2406 = vadd.f32 %v2111, %v2370
  %v2407 = vadd.f32 %v2113, %v2372
  %v2408 = vadd.f32 %v2117, %v2376
  %v2409 = vadd.f32 %v2119, %v2378
  %v2410 = vadd.f32 %v2121, %v2380
  %v2411 = vadd.f32 %v2123, %v2382
  %v2412 = vadd.f32 %v2127, %v2386
  %v2413 = vadd.f32 %v2129, %v2388
  %v2414 = vadd.f32 %v2131, %v2390
  %v2415 = vadd.f32 %v2133, %v2392
  %v2416 = vadd.f32 %v2137, %v2396
  %v2417 = vadd.f32 %v2139, %v2398
  %v2418 = vadd.f32 %v2141, %v2400
  %v2419 = vadd.f32 %v2143, %v2402
  %s2420 = scalar_lea.vmem %s3, 384
  %v2421 = vld [vmem:[%s2420] sm:$0xff]
  %v2422 = vld [vmem:[%s2420 + $0x8] sm:$0xff]
  %v2423 = vld [vmem:[%s2420 + $0x10] sm:$0xff]
  %v2424 = vld [vmem:[%s2420 + $0x18] sm:$0xff]
  %v2425 = vld [vmem:[%s2420 + $0x20] sm:$0xff]
  %v2426 = vld [vmem:[%s2420 + $0x28] sm:$0xff]
  %v2427 = vld [vmem:[%s2420 + $0x30] sm:$0xff]
  %v2428 = vld [vmem:[%s2420 + $0x38] sm:$0xff]
  %v2429 = vld [vmem:[%s2420 + $0x40] sm:$0xff]
  %v2430 = vld [vmem:[%s2420 + $0x48] sm:$0xff]
  %v2431 = vld [vmem:[%s2420 + $0x50] sm:$0xff]
  %v2432 = vld [vmem:[%s2420 + $0x58] sm:$0xff]
  %v2433 = vld [vmem:[%s2420 + $0x60] sm:$0xff]
  %v2434 = vld [vmem:[%s2420 + $0x68] sm:$0xff]
  %v2435 = vld [vmem:[%s2420 + $0x70] sm:$0xff]
  %v2436 = vld [vmem:[%s2420 + $0x78] sm:$0xff]
  %v2453 = vunpack.c.l.b16 %v2421
  %v2454 = vunpack.c.h.b16 %v2421
  %v2455 = vunpack.c.l.b16 %v2422
  %v2456 = vunpack.c.h.b16 %v2422
  %v2457 = vunpack.c.l.b16 %v2423
  %v2458 = vunpack.c.h.b16 %v2423
  %v2459 = vunpack.c.l.b16 %v2424
  %v2460 = vunpack.c.h.b16 %v2424
  %v2461 = vunpack.c.l.b16 %v2425
  %v2462 = vunpack.c.h.b16 %v2425
  %v2463 = vunpack.c.l.b16 %v2426
  %v2464 = vunpack.c.h.b16 %v2426
  %v2465 = vunpack.c.l.b16 %v2427
  %v2466 = vunpack.c.h.b16 %v2427
  %v2467 = vunpack.c.l.b16 %v2428
  %v2468 = vunpack.c.h.b16 %v2428
  %v2469 = vunpack.c.l.b16 %v2429
  %v2470 = vunpack.c.h.b16 %v2429
  %v2471 = vunpack.c.l.b16 %v2430
  %v2472 = vunpack.c.h.b16 %v2430
  %v2473 = vunpack.c.l.b16 %v2431
  %v2474 = vunpack.c.h.b16 %v2431
  %v2475 = vunpack.c.l.b16 %v2432
  %v2476 = vunpack.c.h.b16 %v2432
  %v2477 = vunpack.c.l.b16 %v2433
  %v2478 = vunpack.c.h.b16 %v2433
  %v2479 = vunpack.c.l.b16 %v2434
  %v2480 = vunpack.c.h.b16 %v2434
  %v2481 = vunpack.c.l.b16 %v2435
  %v2482 = vunpack.c.h.b16 %v2435
  %v2483 = vunpack.c.l.b16 %v2436
  %v2484 = vunpack.c.h.b16 %v2436
  %v2485 = vpack.c.b16 %v2455, %v2453
  %v2486 = vpack.c.b16 %v2456, %v2454
  %v2487 = vpack.c.b16 %v2459, %v2457
  %v2488 = vpack.c.b16 %v2460, %v2458
  %v2489 = vpack.c.b16 %v2463, %v2461
  %v2490 = vpack.c.b16 %v2464, %v2462
  %v2491 = vpack.c.b16 %v2467, %v2465
  %v2492 = vpack.c.b16 %v2468, %v2466
  %v2493 = vpack.c.b16 %v2471, %v2469
  %v2494 = vpack.c.b16 %v2472, %v2470
  %v2495 = vpack.c.b16 %v2475, %v2473
  %v2496 = vpack.c.b16 %v2476, %v2474
  %v2497 = vpack.c.b16 %v2479, %v2477
  %v2498 = vpack.c.b16 %v2480, %v2478
  %v2499 = vpack.c.b16 %v2483, %v2481
  %v2500 = vpack.c.b16 %v2484, %v2482
  %2517 = vmatprep.subr.bf16.mxu0 %v2486
  %2518 = vmatpush1.bf16.msra.mxu0 %v2485
  %2519 = vmatprep.subr.bf16.mxu0 %v2488
  %2520 = vmatpush1.bf16.msra.mxu0 %v2487
  %2521 = vmatprep.subr.bf16.mxu0 %v2490
  %2522 = vmatpush1.bf16.msra.mxu0 %v2489
  %2523 = vmatprep.subr.bf16.mxu0 %v2492
  %2524 = vmatpush1.bf16.msra.mxu0 %v2491
  %2525 = vmatprep.subr.bf16.mxu0 %v2494
  %2526 = vmatpush1.bf16.msra.mxu0 %v2493
  %2527 = vmatprep.subr.bf16.mxu0 %v2496
  %2528 = vmatpush1.bf16.msra.mxu0 %v2495
  %2529 = vmatprep.subr.bf16.mxu0 %v2498
  %2530 = vmatpush1.bf16.msra.mxu0 %v2497
  %2531 = vmatprep.subr.bf16.mxu0 %v2500
  %2532 = vmatpush1.bf16.msra.mxu0 %v2499
  %2533 = vmatprep.subr.bf16.mxu0 0
  %2534 = vmatpush1.bf16.msra.mxu0 0
  %2535 = vmatprep.subr.bf16.mxu0 0
  %2536 = vmatpush1.bf16.msra.mxu0 0
  %2537 = vmatprep.subr.bf16.mxu0 0
  %2538 = vmatpush1.bf16.msra.mxu0 0
  %2539 = vmatprep.subr.bf16.mxu0 0
  %2540 = vmatpush1.bf16.msra.mxu0 0
  %2541 = vmatprep.subr.bf16.mxu0 0
  %2542 = vmatpush1.bf16.msra.mxu0 0
  %2543 = vmatprep.subr.bf16.mxu0 0
  %2544 = vmatpush1.bf16.msra.mxu0 0
  %2545 = vmatprep.subr.bf16.mxu0 0
  %2546 = vmatpush1.bf16.msra.mxu0 0
  %2547 = vmatprep.subr.bf16.mxu0 0
  %2548 = vmatpush1.bf16.msra.mxu0 0
  %2549 = vmatprep.mubr.bf16.mxu0 0
  %2550 = vmatmul.mubr.bf16.gmra.mrb[0].mxu0 %v1655
  %v2551 = vpop.f32.mrb[0].mxu0
  %v2552 = vadd.f32 0.0, %v2551
  %v2553 = vpop.f32.mrb[0].mxu0
  %v2554 = vadd.f32 0.0, %v2553
  %v2555 = vpop.f32.mrb[0].mxu0
  %v2556 = vadd.f32 0.0, %v2555
  %v2557 = vpop.f32.mrb[0].mxu0
  %v2558 = vadd.f32 0.0, %v2557
  %2559 = vmatprep.mubr.bf16.mxu0 0
  %2560 = vmatmul.mubr.bf16.gmra.mrb[0].mxu0 %v1656
  %v2561 = vpop.f32.mrb[0].mxu0
  %v2562 = vadd.f32 0.0, %v2561
  %v2563 = vpop.f32.mrb[0].mxu0
  %v2564 = vadd.f32 0.0, %v2563
  %v2565 = vpop.f32.mrb[0].mxu0
  %v2566 = vadd.f32 0.0, %v2565
  %v2567 = vpop.f32.mrb[0].mxu0
  %v2568 = vadd.f32 0.0, %v2567
  %2569 = vmatprep.mubr.bf16.mxu0 0
  %2570 = vmatmul.mubr.bf16.gmra.mrb[0].mxu0 %v1657
  %v2571 = vpop.f32.mrb[0].mxu0
  %v2572 = vadd.f32 0.0, %v2571
  %v2573 = vpop.f32.mrb[0].mxu0
  %v2574 = vadd.f32 0.0, %v2573
  %v2575 = vpop.f32.mrb[0].mxu0
  %v2576 = vadd.f32 0.0, %v2575
  %v2577 = vpop.f32.mrb[0].mxu0
  %v2578 = vadd.f32 0.0, %v2577
  %2579 = vmatprep.mubr.bf16.mxu0 0
  %2580 = vmatmul.mubr.bf16.gmra.mrb[0].mxu0 %v1658
  %v2581 = vpop.f32.mrb[0].mxu0
  %v2582 = vadd.f32 0.0, %v2581
  %v2583 = vpop.f32.mrb[0].mxu0
  %v2584 = vadd.f32 0.0, %v2583
  %v2585 = vpop.f32.mrb[0].mxu0
  %v2586 = vadd.f32 0.0, %v2585
  %v2587 = vpop.f32.mrb[0].mxu0
  %v2588 = vadd.f32 0.0, %v2587
  %2589 = vdwg.mxu0
  %v2590 = vadd.f32 %v2315, %v2552
  %v2591 = vadd.f32 %v2316, %v2554
  %v2592 = vadd.f32 %v2317, %v2556
  %v2593 = vadd.f32 %v2318, %v2558
  %v2594 = vadd.f32 %v2319, %v2562
  %v2595 = vadd.f32 %v2320, %v2564
  %v2596 = vadd.f32 %v2321, %v2566
  %v2597 = vadd.f32 %v2322, %v2568
  %v2598 = vadd.f32 %v2323, %v2572
  %v2599 = vadd.f32 %v2324, %v2574
  %v2600 = vadd.f32 %v2325, %v2576
  %v2601 = vadd.f32 %v2326, %v2578
  %v2602 = vadd.f32 %v2327, %v2582
  %v2603 = vadd.f32 %v2328, %v2584
  %v2604 = vadd.f32 %v2329, %v2586
  %v2605 = vadd.f32 %v2330, %v2588
  %2606 = vmatprep.subr.bf16.mxu0 %v2486
  %2607 = vmatpush1.bf16.msra.mxu0 %v2485
  %2608 = vmatprep.subr.bf16.mxu0 %v2488
  %2609 = vmatpush1.bf16.msra.mxu0 %v2487
  %2610 = vmatprep.subr.bf16.mxu0 %v2490
  %2611 = vmatpush1.bf16.msra.mxu0 %v2489
  %2612 = vmatprep.subr.bf16.mxu0 %v2492
  %2613 = vmatpush1.bf16.msra.mxu0 %v2491
  %2614 = vmatprep.subr.bf16.mxu0 %v2494
  %2615 = vmatpush1.bf16.msra.mxu0 %v2493
  %2616 = vmatprep.subr.bf16.mxu0 %v2496
  %2617 = vmatpush1.bf16.msra.mxu0 %v2495
  %2618 = vmatprep.subr.bf16.mxu0 %v2498
  %2619 = vmatpush1.bf16.msra.mxu0 %v2497
  %2620 = vmatprep.subr.bf16.mxu0 %v2500
  %2621 = vmatpush1.bf16.msra.mxu0 %v2499
  %2622 = vmatprep.subr.bf16.mxu0 0
  %2623 = vmatpush1.bf16.msra.mxu0 0
  %2624 = vmatprep.subr.bf16.mxu0 0
  %2625 = vmatpush1.bf16.msra.mxu0 0
  %2626 = vmatprep.subr.bf16.mxu0 0
  %2627 = vmatpush1.bf16.msra.mxu0 0
  %2628 = vmatprep.subr.bf16.mxu0 0
  %2629 = vmatpush1.bf16.msra.mxu0 0
  %2630 = vmatprep.subr.bf16.mxu0 0
  %2631 = vmatpush1.bf16.msra.mxu0 0
  %2632 = vmatprep.subr.bf16.mxu0 0
  %2633 = vmatpush1.bf16.msra.mxu0 0
  %2634 = vmatprep.subr.bf16.mxu0 0
  %2635 = vmatpush1.bf16.msra.mxu0 0
  %2636 = vmatprep.subr.bf16.mxu0 0
  %2637 = vmatpush1.bf16.msra.mxu0 0
  %2638 = vmatprep.mubr.bf16.mxu0 0
  %2639 = vmatmul.mubr.bf16.gmra.mrb[0].mxu0 %v1614
  %v2640 = vpop.f32.mrb[0].mxu0
  %v2641 = vadd.f32 0.0, %v2640
  %v2642 = vpop.f32.mrb[0].mxu0
  %v2643 = vadd.f32 0.0, %v2642
  %v2644 = vpop.f32.mrb[0].mxu0
  %v2645 = vadd.f32 0.0, %v2644
  %v2646 = vpop.f32.mrb[0].mxu0
  %v2647 = vadd.f32 0.0, %v2646
  %2648 = vmatprep.mubr.bf16.mxu0 0
  %2649 = vmatmul.mubr.bf16.gmra.mrb[0].mxu0 %v1615
  %v2650 = vpop.f32.mrb[0].mxu0
  %v2651 = vadd.f32 0.0, %v2650
  %v2652 = vpop.f32.mrb[0].mxu0
  %v2653 = vadd.f32 0.0, %v2652
  %v2654 = vpop.f32.mrb[0].mxu0
  %v2655 = vadd.f32 0.0, %v2654
  %v2656 = vpop.f32.mrb[0].mxu0
  %v2657 = vadd.f32 0.0, %v2656
  %2658 = vmatprep.mubr.bf16.mxu0 0
  %2659 = vmatmul.mubr.bf16.gmra.mrb[0].mxu0 %v1616
  %v2660 = vpop.f32.mrb[0].mxu0
  %v2661 = vadd.f32 0.0, %v2660
  %v2662 = vpop.f32.mrb[0].mxu0
  %v2663 = vadd.f32 0.0, %v2662
  %v2664 = vpop.f32.mrb[0].mxu0
  %v2665 = vadd.f32 0.0, %v2664
  %v2666 = vpop.f32.mrb[0].mxu0
  %v2667 = vadd.f32 0.0, %v2666
  %2668 = vmatprep.mubr.bf16.mxu0 0
  %2669 = vmatmul.mubr.bf16.gmra.mrb[0].mxu0 %v1617
  %v2670 = vpop.f32.mrb[0].mxu0
  %v2671 = vadd.f32 0.0, %v2670
  %v2672 = vpop.f32.mrb[0].mxu0
  %v2673 = vadd.f32 0.0, %v2672
  %v2674 = vpop.f32.mrb[0].mxu0
  %v2675 = vadd.f32 0.0, %v2674
  %v2676 = vpop.f32.mrb[0].mxu0
  %v2677 = vadd.f32 0.0, %v2676
  %2678 = vdwg.mxu0
  %v2679 = vadd.f32 %v2404, %v2641
  %v2680 = vadd.f32 %v2405, %v2643
  %v2681 = vadd.f32 %v2406, %v2645
  %v2682 = vadd.f32 %v2407, %v2647
  %v2683 = vadd.f32 %v2408, %v2651
  %v2684 = vadd.f32 %v2409, %v2653
  %v2685 = vadd.f32 %v2410, %v2655
  %v2686 = vadd.f32 %v2411, %v2657
  %v2687 = vadd.f32 %v2412, %v2661
  %v2688 = vadd.f32 %v2413, %v2663
  %v2689 = vadd.f32 %v2414, %v2665
  %v2690 = vadd.f32 %v2415, %v2667
  %v2691 = vadd.f32 %v2416, %v2671
  %v2692 = vadd.f32 %v2417, %v2673
  %v2693 = vadd.f32 %v2418, %v2675
  %v2694 = vadd.f32 %v2419, %v2677
  %s2695 = scalar_lea.vmem %s3, 512
  %v2696 = vld [vmem:[%s2695] sm:$0xff]
  %v2697 = vld [vmem:[%s2695 + $0x8] sm:$0xff]
  %v2698 = vld [vmem:[%s2695 + $0x10] sm:$0xff]
  %v2699 = vld [vmem:[%s2695 + $0x18] sm:$0xff]
  %v2700 = vld [vmem:[%s2695 + $0x20] sm:$0xff]
  %v2701 = vld [vmem:[%s2695 + $0x28] sm:$0xff]
  %v2702 = vld [vmem:[%s2695 + $0x30] sm:$0xff]
  %v2703 = vld [vmem:[%s2695 + $0x38] sm:$0xff]
  %v2704 = vld [vmem:[%s2695 + $0x40] sm:$0xff]
  %v2705 = vld [vmem:[%s2695 + $0x48] sm:$0xff]
  %v2706 = vld [vmem:[%s2695 + $0x50] sm:$0xff]
  %v2707 = vld [vmem:[%s2695 + $0x58] sm:$0xff]
  %v2708 = vld [vmem:[%s2695 + $0x60] sm:$0xff]
  %v2709 = vld [vmem:[%s2695 + $0x68] sm:$0xff]
  %v2710 = vld [vmem:[%s2695 + $0x70] sm:$0xff]
  %v2711 = vld [vmem:[%s2695 + $0x78] sm:$0xff]
  %v2728 = vunpack.c.l.b16 %v2696
  %v2729 = vunpack.c.h.b16 %v2696
  %v2730 = vunpack.c.l.b16 %v2697
  %v2731 = vunpack.c.h.b16 %v2697
  %v2732 = vunpack.c.l.b16 %v2698
  %v2733 = vunpack.c.h.b16 %v2698
  %v2734 = vunpack.c.l.b16 %v2699
  %v2735 = vunpack.c.h.b16 %v2699
  %v2736 = vunpack.c.l.b16 %v2700
  %v2737 = vunpack.c.h.b16 %v2700
  %v2738 = vunpack.c.l.b16 %v2701
  %v2739 = vunpack.c.h.b16 %v2701
  %v2740 = vunpack.c.l.b16 %v2702
  %v2741 = vunpack.c.h.b16 %v2702
  %v2742 = vunpack.c.l.b16 %v2703
  %v2743 = vunpack.c.h.b16 %v2703
  %v2744 = vunpack.c.l.b16 %v2704
  %v2745 = vunpack.c.h.b16 %v2704
  %v2746 = vunpack.c.l.b16 %v2705
  %v2747 = vunpack.c.h.b16 %v2705
  %v2748 = vunpack.c.l.b16 %v2706
  %v2749 = vunpack.c.h.b16 %v2706
  %v2750 = vunpack.c.l.b16 %v2707
  %v2751 = vunpack.c.h.b16 %v2707
  %v2752 = vunpack.c.l.b16 %v2708
  %v2753 = vunpack.c.h.b16 %v2708
  %v2754 = vunpack.c.l.b16 %v2709
  %v2755 = vunpack.c.h.b16 %v2709
  %v2756 = vunpack.c.l.b16 %v2710
  %v2757 = vunpack.c.h.b16 %v2710
  %v2758 = vunpack.c.l.b16 %v2711
  %v2759 = vunpack.c.h.b16 %v2711
  %v2760 = vpack.c.b16 %v2730, %v2728
  %v2761 = vpack.c.b16 %v2731, %v2729
  %v2762 = vpack.c.b16 %v2734, %v2732
  %v2763 = vpack.c.b16 %v2735, %v2733
  %v2764 = vpack.c.b16 %v2738, %v2736
  %v2765 = vpack.c.b16 %v2739, %v2737
  %v2766 = vpack.c.b16 %v2742, %v2740
  %v2767 = vpack.c.b16 %v2743, %v2741
  %v2768 = vpack.c.b16 %v2746, %v2744
  %v2769 = vpack.c.b16 %v2747, %v2745
  %v2770 = vpack.c.b16 %v2750, %v2748
  %v2771 = vpack.c.b16 %v2751, %v2749
  %v2772 = vpack.c.b16 %v2754, %v2752
  %v2773 = vpack.c.b16 %v2755, %v2753
  %v2774 = vpack.c.b16 %v2758, %v2756
  %v2775 = vpack.c.b16 %v2759, %v2757
  %2792 = vmatprep.subr.bf16.mxu0 %v2761
  %2793 = vmatpush1.bf16.msra.mxu0 %v2760
  %2794 = vmatprep.subr.bf16.mxu0 %v2763
  %2795 = vmatpush1.bf16.msra.mxu0 %v2762
  %2796 = vmatprep.subr.bf16.mxu0 %v2765
  %2797 = vmatpush1.bf16.msra.mxu0 %v2764
  %2798 = vmatprep.subr.bf16.mxu0 %v2767
  %2799 = vmatpush1.bf16.msra.mxu0 %v2766
  %2800 = vmatprep.subr.bf16.mxu0 %v2769
  %2801 = vmatpush1.bf16.msra.mxu0 %v2768
  %2802 = vmatprep.subr.bf16.mxu0 %v2771
  %2803 = vmatpush1.bf16.msra.mxu0 %v2770
  %2804 = vmatprep.subr.bf16.mxu0 %v2773
  %2805 = vmatpush1.bf16.msra.mxu0 %v2772
  %2806 = vmatprep.subr.bf16.mxu0 %v2775
  %2807 = vmatpush1.bf16.msra.mxu0 %v2774
  %2808 = vmatprep.subr.bf16.mxu0 0
  %2809 = vmatpush1.bf16.msra.mxu0 0
  %2810 = vmatprep.subr.bf16.mxu0 0
  %2811 = vmatpush1.bf16.msra.mxu0 0
  %2812 = vmatprep.subr.bf16.mxu0 0
  %2813 = vmatpush1.bf16.msra.mxu0 0
  %2814 = vmatprep.subr.bf16.mxu0 0
  %2815 = vmatpush1.bf16.msra.mxu0 0
  %2816 = vmatprep.subr.bf16.mxu0 0
  %2817 = vmatpush1.bf16.msra.mxu0 0
  %2818 = vmatprep.subr.bf16.mxu0 0
  %2819 = vmatpush1.bf16.msra.mxu0 0
  %2820 = vmatprep.subr.bf16.mxu0 0
  %2821 = vmatpush1.bf16.msra.mxu0 0
  %2822 = vmatprep.subr.bf16.mxu0 0
  %2823 = vmatpush1.bf16.msra.mxu0 0
  %2824 = vmatprep.mubr.bf16.mxu0 0
  %2825 = vmatmul.mubr.bf16.gmra.mrb[0].mxu0 %v1614
  %v2826 = vpop.f32.mrb[0].mxu0
  %v2827 = vadd.f32 0.0, %v2826
  %v2828 = vpop.f32.mrb[0].mxu0
  %v2829 = vadd.f32 0.0, %v2828
  %v2830 = vpop.f32.mrb[0].mxu0
  %v2831 = vadd.f32 0.0, %v2830
  %v2832 = vpop.f32.mrb[0].mxu0
  %v2833 = vadd.f32 0.0, %v2832
  %2834 = vmatprep.mubr.bf16.mxu0 0
  %2835 = vmatmul.mubr.bf16.gmra.mrb[0].mxu0 %v1615
  %v2836 = vpop.f32.mrb[0].mxu0
  %v2837 = vadd.f32 0.0, %v2836
  %v2838 = vpop.f32.mrb[0].mxu0
  %v2839 = vadd.f32 0.0, %v2838
  %v2840 = vpop.f32.mrb[0].mxu0
  %v2841 = vadd.f32 0.0, %v2840
  %v2842 = vpop.f32.mrb[0].mxu0
  %v2843 = vadd.f32 0.0, %v2842
  %2844 = vmatprep.mubr.bf16.mxu0 0
  %2845 = vmatmul.mubr.bf16.gmra.mrb[0].mxu0 %v1616
  %v2846 = vpop.f32.mrb[0].mxu0
  %v2847 = vadd.f32 0.0, %v2846
  %v2848 = vpop.f32.mrb[0].mxu0
  %v2849 = vadd.f32 0.0, %v2848
  %v2850 = vpop.f32.mrb[0].mxu0
  %v2851 = vadd.f32 0.0, %v2850
  %v2852 = vpop.f32.mrb[0].mxu0
  %v2853 = vadd.f32 0.0, %v2852
  %2854 = vmatprep.mubr.bf16.mxu0 0
  %2855 = vmatmul.mubr.bf16.gmra.mrb[0].mxu0 %v1617
  %v2856 = vpop.f32.mrb[0].mxu0
  %v2857 = vadd.f32 0.0, %v2856
  %v2858 = vpop.f32.mrb[0].mxu0
  %v2859 = vadd.f32 0.0, %v2858
  %v2860 = vpop.f32.mrb[0].mxu0
  %v2861 = vadd.f32 0.0, %v2860
  %v2862 = vpop.f32.mrb[0].mxu0
  %v2863 = vadd.f32 0.0, %v2862
  %2864 = vdwg.mxu0
  %v2865 = vadd.f32 %v2590, %v2827
  %v2866 = vadd.f32 %v2591, %v2829
  %v2867 = vadd.f32 %v2592, %v2831
  %v2868 = vadd.f32 %v2593, %v2833
  %v2869 = vadd.f32 %v2594, %v2837
  %v2870 = vadd.f32 %v2595, %v2839
  %v2871 = vadd.f32 %v2596, %v2841
  %v2872 = vadd.f32 %v2597, %v2843
  %v2873 = vadd.f32 %v2598, %v2847
  %v2874 = vadd.f32 %v2599, %v2849
  %v2875 = vadd.f32 %v2600, %v2851
  %v2876 = vadd.f32 %v2601, %v2853
  %v2877 = vadd.f32 %v2602, %v2857
  %v2878 = vadd.f32 %v2603, %v2859
  %v2879 = vadd.f32 %v2604, %v2861
  %v2880 = vadd.f32 %v2605, %v2863
  %2881 = vmatprep.subr.bf16.mxu0 %v2761
  %2882 = vmatpush1.bf16.msra.mxu0 %v2760
  %2883 = vmatprep.subr.bf16.mxu0 %v2763
  %2884 = vmatpush1.bf16.msra.mxu0 %v2762
  %2885 = vmatprep.subr.bf16.mxu0 %v2765
  %2886 = vmatpush1.bf16.msra.mxu0 %v2764
  %2887 = vmatprep.subr.bf16.mxu0 %v2767
  %2888 = vmatpush1.bf16.msra.mxu0 %v2766
  %2889 = vmatprep.subr.bf16.mxu0 %v2769
  %2890 = vmatpush1.bf16.msra.mxu0 %v2768
  %2891 = vmatprep.subr.bf16.mxu0 %v2771
  %2892 = vmatpush1.bf16.msra.mxu0 %v2770
  %2893 = vmatprep.subr.bf16.mxu0 %v2773
  %2894 = vmatpush1.bf16.msra.mxu0 %v2772
  %2895 = vmatprep.subr.bf16.mxu0 %v2775
  %2896 = vmatpush1.bf16.msra.mxu0 %v2774
  %2897 = vmatprep.subr.bf16.mxu0 0
  %2898 = vmatpush1.bf16.msra.mxu0 0
  %2899 = vmatprep.subr.bf16.mxu0 0
  %2900 = vmatpush1.bf16.msra.mxu0 0
  %2901 = vmatprep.subr.bf16.mxu0 0
  %2902 = vmatpush1.bf16.msra.mxu0 0
  %2903 = vmatprep.subr.bf16.mxu0 0
  %2904 = vmatpush1.bf16.msra.mxu0 0
  %2905 = vmatprep.subr.bf16.mxu0 0
  %2906 = vmatpush1.bf16.msra.mxu0 0
  %2907 = vmatprep.subr.bf16.mxu0 0
  %2908 = vmatpush1.bf16.msra.mxu0 0
  %2909 = vmatprep.subr.bf16.mxu0 0
  %2910 = vmatpush1.bf16.msra.mxu0 0
  %2911 = vmatprep.subr.bf16.mxu0 0
  %2912 = vmatpush1.bf16.msra.mxu0 0
  %2913 = vmatprep.mubr.bf16.mxu0 0
  %2914 = vmatmul.mubr.bf16.gmra.mrb[0].mxu0 %v1656
  %v2915 = vpop.f32.mrb[0].mxu0
  %v2916 = vadd.f32 0.0, %v2915
  %v2917 = vpop.f32.mrb[0].mxu0
  %v2918 = vadd.f32 0.0, %v2917
  %v2919 = vpop.f32.mrb[0].mxu0
  %v2920 = vadd.f32 0.0, %v2919
  %v2921 = vpop.f32.mrb[0].mxu0
  %v2922 = vadd.f32 0.0, %v2921
  %2923 = vmatprep.mubr.bf16.mxu0 0
  %2924 = vmatmul.mubr.bf16.gmra.mrb[0].mxu0 %v1657
  %v2925 = vpop.f32.mrb[0].mxu0
  %v2926 = vadd.f32 0.0, %v2925
  %v2927 = vpop.f32.mrb[0].mxu0
  %v2928 = vadd.f32 0.0, %v2927
  %v2929 = vpop.f32.mrb[0].mxu0
  %v2930 = vadd.f32 0.0, %v2929
  %v2931 = vpop.f32.mrb[0].mxu0
  %v2932 = vadd.f32 0.0, %v2931
  %2933 = vmatprep.mubr.bf16.mxu0 0
  %2934 = vmatmul.mubr.bf16.gmra.mrb[0].mxu0 %v1658
  %v2935 = vpop.f32.mrb[0].mxu0
  %v2936 = vadd.f32 0.0, %v2935
  %v2937 = vpop.f32.mrb[0].mxu0
  %v2938 = vadd.f32 0.0, %v2937
  %v2939 = vpop.f32.mrb[0].mxu0
  %v2940 = vadd.f32 0.0, %v2939
  %v2941 = vpop.f32.mrb[0].mxu0
  %v2942 = vadd.f32 0.0, %v2941
  %2943 = vmatprep.mubr.bf16.mxu0 0
  %2944 = vmatmul.mubr.bf16.gmra.mrb[0].mxu0 %v1659
  %v2945 = vpop.f32.mrb[0].mxu0
  %v2946 = vadd.f32 0.0, %v2945
  %v2947 = vpop.f32.mrb[0].mxu0
  %v2948 = vadd.f32 0.0, %v2947
  %v2949 = vpop.f32.mrb[0].mxu0
  %v2950 = vadd.f32 0.0, %v2949
  %v2951 = vpop.f32.mrb[0].mxu0
  %v2952 = vadd.f32 0.0, %v2951
  %2953 = vdwg.mxu0
  %v2954 = vadd.f32 %v2679, %v2916
  %v2955 = vadd.f32 %v2680, %v2918
  %v2956 = vadd.f32 %v2681, %v2920
  %v2957 = vadd.f32 %v2682, %v2922
  %v2958 = vadd.f32 %v2683, %v2926
  %v2959 = vadd.f32 %v2684, %v2928
  %v2960 = vadd.f32 %v2685, %v2930
  %v2961 = vadd.f32 %v2686, %v2932
  %v2962 = vadd.f32 %v2687, %v2936
  %v2963 = vadd.f32 %v2688, %v2938
  %v2964 = vadd.f32 %v2689, %v2940
  %v2965 = vadd.f32 %v2690, %v2942
  %v2966 = vadd.f32 %v2691, %v2946
  %v2967 = vadd.f32 %v2692, %v2948
  %v2968 = vadd.f32 %v2693, %v2950
  %v2969 = vadd.f32 %v2694, %v2952
  %2986 = vrot.lane.b32.xlu0 %v2865, 48
  %v2987 = vpop.permute.xlu0 %2986
  %2988 = vrot.lane.b32.xlu0 %v2866, 48
  %v2989 = vpop.permute.xlu0 %2988
  %2990 = vrot.lane.b32.xlu0 %v2867, 48
  %v2991 = vpop.permute.xlu0 %2990
  %2992 = vrot.lane.b32.xlu0 %v2868, 48
  %v2993 = vpop.permute.xlu0 %2992
  %2994 = vrot.lane.b32.xlu0 %v2869, 48
  %v2995 = vpop.permute.xlu0 %2994
  %2996 = vrot.lane.b32.xlu0 %v2870, 48
  %v2997 = vpop.permute.xlu0 %2996
  %2998 = vrot.lane.b32.xlu0 %v2871, 48
  %v2999 = vpop.permute.xlu0 %2998
  %3000 = vrot.lane.b32.xlu0 %v2872, 48
  %v3001 = vpop.permute.xlu0 %3000
  %3002 = vrot.lane.b32.xlu0 %v2873, 48
  %v3003 = vpop.permute.xlu0 %3002
  %3004 = vrot.lane.b32.xlu0 %v2874, 48
  %v3005 = vpop.permute.xlu0 %3004
  %3006 = vrot.lane.b32.xlu0 %v2875, 48
  %v3007 = vpop.permute.xlu0 %3006
  %3008 = vrot.lane.b32.xlu0 %v2876, 48
  %v3009 = vpop.permute.xlu0 %3008
  %3010 = vrot.lane.b32.xlu0 %v2877, 48
  %v3011 = vpop.permute.xlu0 %3010
  %3012 = vrot.lane.b32.xlu0 %v2878, 48
  %v3013 = vpop.permute.xlu0 %3012
  %3014 = vrot.lane.b32.xlu0 %v2879, 48
  %v3015 = vpop.permute.xlu0 %3014
  %3016 = vrot.lane.b32.xlu0 %v2880, 48
  %v3017 = vpop.permute.xlu0 %3016
  %vm3018 = vcmask 392192
  %v3019 = vsel %vm3018, %v2987, %v2989
  %v3020 = vsel %vm3018, %v2991, %v2993
  %v3021 = vsel %vm3018, %v2995, %v2997
  %v3022 = vsel %vm3018, %v2999, %v3001
  %v3023 = vsel %vm3018, %v3003, %v3005
  %v3024 = vsel %vm3018, %v3007, %v3009
  %v3025 = vsel %vm3018, %v3011, %v3013
  %v3026 = vsel %vm3018, %v3015, %v3017
  %v3035 = vmax.f32 %v2865, %v3019
  %v3036 = vmax.f32 %v2867, %v3020
  %v3037 = vmax.f32 %v2869, %v3021
  %v3038 = vmax.f32 %v2871, %v3022
  %v3039 = vmax.f32 %v2873, %v3023
  %v3040 = vmax.f32 %v2875, %v3024
  %v3041 = vmax.f32 %v2877, %v3025
  %v3042 = vmax.f32 %v2879, %v3026
  %3059 = vrot.lane.b32.xlu0 %v2954, 48
  %v3060 = vpop.permute.xlu0 %3059
  %3061 = vrot.lane.b32.xlu0 %v2955, 48
  %v3062 = vpop.permute.xlu0 %3061
  %3063 = vrot.lane.b32.xlu0 %v2956, 48
  %v3064 = vpop.permute.xlu0 %3063
  %3065 = vrot.lane.b32.xlu0 %v2957, 48
  %v3066 = vpop.permute.xlu0 %3065
  %3067 = vrot.lane.b32.xlu0 %v2958, 48
  %v3068 = vpop.permute.xlu0 %3067
  %3069 = vrot.lane.b32.xlu0 %v2959, 48
  %v3070 = vpop.permute.xlu0 %3069
  %3071 = vrot.lane.b32.xlu0 %v2960, 48
  %v3072 = vpop.permute.xlu0 %3071
  %3073 = vrot.lane.b32.xlu0 %v2961, 48
  %v3074 = vpop.permute.xlu0 %3073
  %3075 = vrot.lane.b32.xlu0 %v2962, 48
  %v3076 = vpop.permute.xlu0 %3075
  %3077 = vrot.lane.b32.xlu0 %v2963, 48
  %v3078 = vpop.permute.xlu0 %3077
  %3079 = vrot.lane.b32.xlu0 %v2964, 48
  %v3080 = vpop.permute.xlu0 %3079
  %3081 = vrot.lane.b32.xlu0 %v2965, 48
  %v3082 = vpop.permute.xlu0 %3081
  %3083 = vrot.lane.b32.xlu0 %v2966, 48
  %v3084 = vpop.permute.xlu0 %3083
  %3085 = vrot.lane.b32.xlu0 %v2967, 48
  %v3086 = vpop.permute.xlu0 %3085
  %3087 = vrot.lane.b32.xlu0 %v2968, 48
  %v3088 = vpop.permute.xlu0 %3087
  %3089 = vrot.lane.b32.xlu0 %v2969, 48
  %v3090 = vpop.permute.xlu0 %3089
  %v3091 = vsel %vm3018, %v3060, %v3062
  %v3092 = vsel %vm3018, %v3064, %v3066
  %v3093 = vsel %vm3018, %v3068, %v3070
  %v3094 = vsel %vm3018, %v3072, %v3074
  %v3095 = vsel %vm3018, %v3076, %v3078
  %v3096 = vsel %vm3018, %v3080, %v3082
  %v3097 = vsel %vm3018, %v3084, %v3086
  %v3098 = vsel %vm3018, %v3088, %v3090
  %v3107 = vmax.f32 %v2954, %v3091
  %v3108 = vmax.f32 %v2956, %v3092
  %v3109 = vmax.f32 %v2958, %v3093
  %v3110 = vmax.f32 %v2960, %v3094
  %v3111 = vmax.f32 %v2962, %v3095
  %v3112 = vmax.f32 %v2964, %v3096
  %v3113 = vmax.f32 %v2966, %v3097
  %v3114 = vmax.f32 %v2968, %v3098
  %v3115 = vmax.f32 %v3035, %v3107
  %v3116 = vmax.f32 %v3036, %v3108
  %v3117 = vmax.f32 %v3037, %v3109
  %v3118 = vmax.f32 %v3038, %v3110
  %v3119 = vmax.f32 %v3039, %v3111
  %v3120 = vmax.f32 %v3040, %v3112
  %v3121 = vmax.f32 %v3041, %v3113
  %v3122 = vmax.f32 %v3042, %v3114
  %v3123 = vld [vmem:[%s4] sm:$0x1]
  %v3125 = vlaneseq
  %v3126 = vshrl.u32 %v3125, 7
  %v3127 = vsub.s32 0, %v3126
  %v3128 = vrot.slane %v3123, %v3127
  %v3130 = vadd.f32 %v3115, %v3128
  %v3131 = vadd.f32 %v3116, %v3128
  %v3132 = vadd.f32 %v3117, %v3128
  %v3133 = vadd.f32 %v3118, %v3128
  %v3134 = vadd.f32 %v3119, %v3128
  %v3135 = vadd.f32 %v3120, %v3128
  %v3136 = vadd.f32 %v3121, %v3128
  %v3137 = vadd.f32 %v3122, %v3128
  %v3138 = vmax.f32 %v3130, 0.0
  %v3139 = vmax.f32 %v3131, 0.0
  %v3140 = vmax.f32 %v3132, 0.0
  %v3141 = vmax.f32 %v3133, 0.0
  %v3142 = vmax.f32 %v3134, 0.0
  %v3143 = vmax.f32 %v3135, 0.0
  %v3144 = vmax.f32 %v3136, 0.0
  %v3145 = vmax.f32 %v3137, 0.0
  %v3146 = vpack.c.bf16 %v3139, %v3138
  %v3147 = vpack.c.bf16 %v3141, %v3140
  %v3148 = vpack.c.bf16 %v3143, %v3142
  %v3149 = vpack.c.bf16 %v3145, %v3144
  %v3150 = vld [vmem:[%s5] sm:$0xf]
  %v3151 = vld [vmem:[%s5 + $0x4] sm:$0xf]
  %v3152 = vld [vmem:[%s5 + $0x8] sm:$0xf]
  %v3153 = vld [vmem:[%s5 + $0xc] sm:$0xf]
  %v3154 = vld [vmem:[%s5 + $0x10] sm:$0xf]
  %v3155 = vld [vmem:[%s5 + $0x14] sm:$0xf]
  %v3156 = vld [vmem:[%s5 + $0x18] sm:$0xf]
  %v3157 = vld [vmem:[%s5 + $0x1c] sm:$0xf]
  %v3158 = vld [vmem:[%s5 + $0x20] sm:$0xf]
  %v3159 = vld [vmem:[%s5 + $0x24] sm:$0xf]
  %s3160 = scalar_lea.vmem %s5, 40
  %v3161 = vld [vmem:[%s3160] sm:$0xf]
  %v3162 = vld [vmem:[%s3160 + $0x4] sm:$0xf]
  %v3163 = vld [vmem:[%s3160 + $0x8] sm:$0xf]
  %v3164 = vld [vmem:[%s3160 + $0xc] sm:$0xf]
  %v3165 = vld [vmem:[%s3160 + $0x10] sm:$0xf]
  %v3166 = vld [vmem:[%s3160 + $0x14] sm:$0xf]
  %v3167 = vld [vmem:[%s3160 + $0x18] sm:$0xf]
  %v3168 = vld [vmem:[%s3160 + $0x1c] sm:$0xf]
  %v3169 = vld [vmem:[%s3160 + $0x20] sm:$0xf]
  %v3170 = vld [vmem:[%s3160 + $0x24] sm:$0xf]
  %v3181 = vunpack.c.l.b16 %v3161
  %v3182 = vunpack.c.l.b16 %v3162
  %v3183 = vunpack.c.l.b16 %v3163
  %v3184 = vunpack.c.l.b16 %v3164
  %v3185 = vunpack.c.l.b16 %v3165
  %v3186 = vunpack.c.l.b16 %v3166
  %v3187 = vunpack.c.l.b16 %v3167
  %v3188 = vunpack.c.l.b16 %v3168
  %v3189 = vunpack.c.l.b16 %v3169
  %v3190 = vunpack.c.l.b16 %v3170
  %v3191 = vpack.c.b16 %v3182, %v3181
  %v3192 = vpack.c.b16 %v3184, %v3183
  %v3193 = vpack.c.b16 %v3186, %v3185
  %v3194 = vpack.c.b16 %v3188, %v3187
  %v3195 = vpack.c.b16 %v3190, %v3189
  %vm3201 = vcmask 654336
  %v3203 = vsel %vm3201, %v3147, 0
  %3205 = vmatprep.subr.bf16.mxu0 0
  %3206 = vmatpush1.bf16.msra.mxu0 %v3191
  %3207 = vmatprep.subr.bf16.mxu0 0
  %3208 = vmatpush1.bf16.msra.mxu0 %v3192
  %3209 = vmatprep.subr.bf16.mxu0 0
  %3210 = vmatpush1.bf16.msra.mxu0 %v3193
  %3211 = vmatprep.subr.bf16.mxu0 0
  %3212 = vmatpush1.bf16.msra.mxu0 %v3194
  %3213 = vmatprep.subr.bf16.mxu0 0
  %3214 = vmatpush1.bf16.msra.mxu0 %v3195
  %3215 = vmatprep.subr.bf16.mxu0 0
  %3216 = vmatpush1.bf16.msra.mxu0 0
  %3217 = vmatprep.subr.bf16.mxu0 0
  %3218 = vmatpush1.bf16.msra.mxu0 0
  %3219 = vmatprep.subr.bf16.mxu0 0
  %3220 = vmatpush1.bf16.msra.mxu0 0
  %3221 = vmatprep.subr.bf16.mxu0 0
  %3222 = vmatpush1.bf16.msra.mxu0 0
  %3223 = vmatprep.subr.bf16.mxu0 0
  %3224 = vmatpush1.bf16.msra.mxu0 0
  %3225 = vmatprep.subr.bf16.mxu0 0
  %3226 = vmatpush1.bf16.msra.mxu0 0
  %3227 = vmatprep.subr.bf16.mxu0 0
  %3228 = vmatpush1.bf16.msra.mxu0 0
  %3229 = vmatprep.subr.bf16.mxu0 0
  %3230 = vmatpush1.bf16.msra.mxu0 0
  %3231 = vmatprep.subr.bf16.mxu0 0
  %3232 = vmatpush1.bf16.msra.mxu0 0
  %3233 = vmatprep.subr.bf16.mxu0 0
  %3234 = vmatpush1.bf16.msra.mxu0 0
  %3235 = vmatprep.subr.bf16.mxu0 0
  %3236 = vmatpush1.bf16.msra.mxu0 0
  %3237 = vmatprep.mubr.bf16.mxu0 0
  %3238 = vmatmul.mubr.bf16.gmra.mrb[0].mxu0 %v3203
  %v3239 = vpop.f32.mrb[0].mxu0
  %v3240 = vadd.f32 0.0, %v3239
  %v3241 = vpop.f32.mrb[0].mxu0
  %v3242 = vpop.f32.mrb[0].mxu0
  %v3243 = vadd.f32 0.0, %v3242
  %v3244 = vpop.f32.mrb[0].mxu0
  %3245 = vdwg.mxu0
  %v3256 = vunpack.c.l.b16 %v3150
  %v3257 = vunpack.c.l.b16 %v3151
  %v3258 = vunpack.c.l.b16 %v3152
  %v3259 = vunpack.c.l.b16 %v3153
  %v3260 = vunpack.c.l.b16 %v3154
  %v3261 = vunpack.c.l.b16 %v3155
  %v3262 = vunpack.c.l.b16 %v3156
  %v3263 = vunpack.c.l.b16 %v3157
  %v3264 = vunpack.c.l.b16 %v3158
  %v3265 = vunpack.c.l.b16 %v3159
  %v3266 = vpack.c.b16 %v3257, %v3256
  %v3267 = vpack.c.b16 %v3259, %v3258
  %v3268 = vpack.c.b16 %v3261, %v3260
  %v3269 = vpack.c.b16 %v3263, %v3262
  %v3270 = vpack.c.b16 %v3265, %v3264
  %v3277 = vsel %vm3201, %v3146, 0
  %3279 = vmatprep.subr.bf16.mxu0 0
  %3280 = vmatpush1.bf16.msra.mxu0 %v3266
  %3281 = vmatprep.subr.bf16.mxu0 0
  %3282 = vmatpush1.bf16.msra.mxu0 %v3267
  %3283 = vmatprep.subr.bf16.mxu0 0
  %3284 = vmatpush1.bf16.msra.mxu0 %v3268
  %3285 = vmatprep.subr.bf16.mxu0 0
  %3286 = vmatpush1.bf16.msra.mxu0 %v3269
  %3287 = vmatprep.subr.bf16.mxu0 0
  %3288 = vmatpush1.bf16.msra.mxu0 %v3270
  %3289 = vmatprep.subr.bf16.mxu0 0
  %3290 = vmatpush1.bf16.msra.mxu0 0
  %3291 = vmatprep.subr.bf16.mxu0 0
  %3292 = vmatpush1.bf16.msra.mxu0 0
  %3293 = vmatprep.subr.bf16.mxu0 0
  %3294 = vmatpush1.bf16.msra.mxu0 0
  %3295 = vmatprep.subr.bf16.mxu0 0
  %3296 = vmatpush1.bf16.msra.mxu0 0
  %3297 = vmatprep.subr.bf16.mxu0 0
  %3298 = vmatpush1.bf16.msra.mxu0 0
  %3299 = vmatprep.subr.bf16.mxu0 0
  %3300 = vmatpush1.bf16.msra.mxu0 0
  %3301 = vmatprep.subr.bf16.mxu0 0
  %3302 = vmatpush1.bf16.msra.mxu0 0
  %3303 = vmatprep.subr.bf16.mxu0 0
  %3304 = vmatpush1.bf16.msra.mxu0 0
  %3305 = vmatprep.subr.bf16.mxu0 0
  %3306 = vmatpush1.bf16.msra.mxu0 0
  %3307 = vmatprep.subr.bf16.mxu0 0
  %3308 = vmatpush1.bf16.msra.mxu0 0
  %3309 = vmatprep.subr.bf16.mxu0 0
  %3310 = vmatpush1.bf16.msra.mxu0 0
  %3311 = vmatprep.mubr.bf16.mxu0 0
  %3312 = vmatmul.mubr.bf16.gmra.mrb[0].mxu0 %v3277
  %v3313 = vpop.f32.mrb[0].mxu0
  %v3314 = vadd.f32 %v3240, %v3313
  %v3315 = vpop.f32.mrb[0].mxu0
  %v3316 = vpop.f32.mrb[0].mxu0
  %v3317 = vadd.f32 %v3243, %v3316
  %v3318 = vpop.f32.mrb[0].mxu0
  %3319 = vdwg.mxu0
  %s3320 = scalar_lea.vmem %s5, 80
  %v3321 = vld [vmem:[%s3320] sm:$0xf]
  %v3322 = vld [vmem:[%s3320 + $0x4] sm:$0xf]
  %v3323 = vld [vmem:[%s3320 + $0x8] sm:$0xf]
  %v3324 = vld [vmem:[%s3320 + $0xc] sm:$0xf]
  %v3325 = vld [vmem:[%s3320 + $0x10] sm:$0xf]
  %v3326 = vld [vmem:[%s3320 + $0x14] sm:$0xf]
  %v3327 = vld [vmem:[%s3320 + $0x18] sm:$0xf]
  %v3328 = vld [vmem:[%s3320 + $0x1c] sm:$0xf]
  %v3329 = vld [vmem:[%s3320 + $0x20] sm:$0xf]
  %v3330 = vld [vmem:[%s3320 + $0x24] sm:$0xf]
  %v3341 = vunpack.c.l.b16 %v3321
  %v3342 = vunpack.c.l.b16 %v3322
  %v3343 = vunpack.c.l.b16 %v3323
  %v3344 = vunpack.c.l.b16 %v3324
  %v3345 = vunpack.c.l.b16 %v3325
  %v3346 = vunpack.c.l.b16 %v3326
  %v3347 = vunpack.c.l.b16 %v3327
  %v3348 = vunpack.c.l.b16 %v3328
  %v3349 = vunpack.c.l.b16 %v3329
  %v3350 = vunpack.c.l.b16 %v3330
  %v3351 = vpack.c.b16 %v3342, %v3341
  %v3352 = vpack.c.b16 %v3344, %v3343
  %v3353 = vpack.c.b16 %v3346, %v3345
  %v3354 = vpack.c.b16 %v3348, %v3347
  %v3355 = vpack.c.b16 %v3350, %v3349
  %v3362 = vsel %vm3201, %v3148, 0
  %3364 = vmatprep.subr.bf16.mxu0 0
  %3365 = vmatpush1.bf16.msra.mxu0 %v3351
  %3366 = vmatprep.subr.bf16.mxu0 0
  %3367 = vmatpush1.bf16.msra.mxu0 %v3352
  %3368 = vmatprep.subr.bf16.mxu0 0
  %3369 = vmatpush1.bf16.msra.mxu0 %v3353
  %3370 = vmatprep.subr.bf16.mxu0 0
  %3371 = vmatpush1.bf16.msra.mxu0 %v3354
  %3372 = vmatprep.subr.bf16.mxu0 0
  %3373 = vmatpush1.bf16.msra.mxu0 %v3355
  %3374 = vmatprep.subr.bf16.mxu0 0
  %3375 = vmatpush1.bf16.msra.mxu0 0
  %3376 = vmatprep.subr.bf16.mxu0 0
  %3377 = vmatpush1.bf16.msra.mxu0 0
  %3378 = vmatprep.subr.bf16.mxu0 0
  %3379 = vmatpush1.bf16.msra.mxu0 0
  %3380 = vmatprep.subr.bf16.mxu0 0
  %3381 = vmatpush1.bf16.msra.mxu0 0
  %3382 = vmatprep.subr.bf16.mxu0 0
  %3383 = vmatpush1.bf16.msra.mxu0 0
  %3384 = vmatprep.subr.bf16.mxu0 0
  %3385 = vmatpush1.bf16.msra.mxu0 0
  %3386 = vmatprep.subr.bf16.mxu0 0
  %3387 = vmatpush1.bf16.msra.mxu0 0
  %3388 = vmatprep.subr.bf16.mxu0 0
  %3389 = vmatpush1.bf16.msra.mxu0 0
  %3390 = vmatprep.subr.bf16.mxu0 0
  %3391 = vmatpush1.bf16.msra.mxu0 0
  %3392 = vmatprep.subr.bf16.mxu0 0
  %3393 = vmatpush1.bf16.msra.mxu0 0
  %3394 = vmatprep.subr.bf16.mxu0 0
  %3395 = vmatpush1.bf16.msra.mxu0 0
  %3396 = vmatprep.mubr.bf16.mxu0 0
  %3397 = vmatmul.mubr.bf16.gmra.mrb[0].mxu0 %v3362
  %v3398 = vpop.f32.mrb[0].mxu0
  %v3399 = vadd.f32 0.0, %v3398
  %v3400 = vpop.f32.mrb[0].mxu0
  %v3401 = vpop.f32.mrb[0].mxu0
  %v3402 = vadd.f32 0.0, %v3401
  %v3403 = vpop.f32.mrb[0].mxu0
  %3404 = vdwg.mxu0
  %v3405 = vadd.f32 %v3314, %v3399
  %v3406 = vadd.f32 %v3317, %v3402
  %s3407 = scalar_lea.vmem %s5, 120
  %v3408 = vld [vmem:[%s3407] sm:$0xf]
  %v3409 = vld [vmem:[%s3407 + $0x4] sm:$0xf]
  %v3410 = vld [vmem:[%s3407 + $0x8] sm:$0xf]
  %v3411 = vld [vmem:[%s3407 + $0xc] sm:$0xf]
  %v3412 = vld [vmem:[%s3407 + $0x10] sm:$0xf]
  %v3413 = vld [vmem:[%s3407 + $0x14] sm:$0xf]
  %v3414 = vld [vmem:[%s3407 + $0x18] sm:$0xf]
  %v3415 = vld [vmem:[%s3407 + $0x1c] sm:$0xf]
  %v3416 = vld [vmem:[%s3407 + $0x20] sm:$0xf]
  %v3417 = vld [vmem:[%s3407 + $0x24] sm:$0xf]
  %v3428 = vunpack.c.l.b16 %v3408
  %v3429 = vunpack.c.l.b16 %v3409
  %v3430 = vunpack.c.l.b16 %v3410
  %v3431 = vunpack.c.l.b16 %v3411
  %v3432 = vunpack.c.l.b16 %v3412
  %v3433 = vunpack.c.l.b16 %v3413
  %v3434 = vunpack.c.l.b16 %v3414
  %v3435 = vunpack.c.l.b16 %v3415
  %v3436 = vunpack.c.l.b16 %v3416
  %v3437 = vunpack.c.l.b16 %v3417
  %v3438 = vpack.c.b16 %v3429, %v3428
  %v3439 = vpack.c.b16 %v3431, %v3430
  %v3440 = vpack.c.b16 %v3433, %v3432
  %v3441 = vpack.c.b16 %v3435, %v3434
  %v3442 = vpack.c.b16 %v3437, %v3436
  %v3449 = vsel %vm3201, %v3149, 0
  %3451 = vmatprep.subr.bf16.mxu0 0
  %3452 = vmatpush1.bf16.msra.mxu0 %v3438
  %3453 = vmatprep.subr.bf16.mxu0 0
  %3454 = vmatpush1.bf16.msra.mxu0 %v3439
  %3455 = vmatprep.subr.bf16.mxu0 0
  %3456 = vmatpush1.bf16.msra.mxu0 %v3440
  %3457 = vmatprep.subr.bf16.mxu0 0
  %3458 = vmatpush1.bf16.msra.mxu0 %v3441
  %3459 = vmatprep.subr.bf16.mxu0 0
  %3460 = vmatpush1.bf16.msra.mxu0 %v3442
  %3461 = vmatprep.subr.bf16.mxu0 0
  %3462 = vmatpush1.bf16.msra.mxu0 0
  %3463 = vmatprep.subr.bf16.mxu0 0
  %3464 = vmatpush1.bf16.msra.mxu0 0
  %3465 = vmatprep.subr.bf16.mxu0 0
  %3466 = vmatpush1.bf16.msra.mxu0 0
  %3467 = vmatprep.subr.bf16.mxu0 0
  %3468 = vmatpush1.bf16.msra.mxu0 0
  %3469 = vmatprep.subr.bf16.mxu0 0
  %3470 = vmatpush1.bf16.msra.mxu0 0
  %3471 = vmatprep.subr.bf16.mxu0 0
  %3472 = vmatpush1.bf16.msra.mxu0 0
  %3473 = vmatprep.subr.bf16.mxu0 0
  %3474 = vmatpush1.bf16.msra.mxu0 0
  %3475 = vmatprep.subr.bf16.mxu0 0
  %3476 = vmatpush1.bf16.msra.mxu0 0
  %3477 = vmatprep.subr.bf16.mxu0 0
  %3478 = vmatpush1.bf16.msra.mxu0 0
  %3479 = vmatprep.subr.bf16.mxu0 0
  %3480 = vmatpush1.bf16.msra.mxu0 0
  %3481 = vmatprep.subr.bf16.mxu0 0
  %3482 = vmatpush1.bf16.msra.mxu0 0
  %3483 = vmatprep.mubr.bf16.mxu0 0
  %3484 = vmatmul.mubr.bf16.gmra.mrb[0].mxu0 %v3449
  %v3485 = vpop.f32.mrb[0].mxu0
  %v3486 = vadd.f32 0.0, %v3485
  %v3487 = vpop.f32.mrb[0].mxu0
  %v3488 = vpop.f32.mrb[0].mxu0
  %v3489 = vadd.f32 0.0, %v3488
  %v3490 = vpop.f32.mrb[0].mxu0
  %3491 = vdwg.mxu0
  %v3492 = vadd.f32 %v3405, %v3486
  %v3493 = vadd.f32 %v3406, %v3489
  %v3494 = vld [vmem:[%s6] sm:$0x1]
  %v3496 = vlaneseq
  %v3497 = vshrl.u32 %v3496, 7
  %v3498 = vsub.s32 0, %v3497
  %v3499 = vrot.slane %v3494, %v3498
  %v3501 = vadd.f32 %v3492, %v3499
  %v3502 = vadd.f32 %v3493, %v3499
  %v3503 = vmax.f32 %v3501, 0.0
  %v3504 = vmax.f32 %v3502, 0.0
  %v3505 = vpack.c.bf16 %v3504, %v3503
  %v3506 = vld [vmem:[%s7] sm:$0xf]
  %v3507 = vld [vmem:[%s7 + $0x4] sm:$0xf]
  %v3508 = vld [vmem:[%s7 + $0x8] sm:$0xf]
  %v3509 = vld [vmem:[%s7 + $0xc] sm:$0xf]
  %v3510 = vld [vmem:[%s7 + $0x10] sm:$0xf]
  %v3511 = vld [vmem:[%s7 + $0x14] sm:$0xf]
  %v3512 = vld [vmem:[%s7 + $0x18] sm:$0xf]
  %v3513 = vld [vmem:[%s7 + $0x1c] sm:$0xf]
  %v3514 = vld [vmem:[%s8] sm:$0x1]
  %v3516 = vlaneseq
  %v3517 = vshrl.u32 %v3516, 7
  %v3518 = vsub.s32 0, %v3517
  %v3519 = vrot.slane %v3514, %v3518
  %v3529 = vunpack.c.l.b16 %v3506
  %v3530 = vunpack.c.l.b16 %v3507
  %v3531 = vunpack.c.l.b16 %v3508
  %v3532 = vunpack.c.l.b16 %v3509
  %v3533 = vunpack.c.l.b16 %v3510
  %v3534 = vunpack.c.l.b16 %v3511
  %v3535 = vunpack.c.l.b16 %v3512
  %v3536 = vunpack.c.l.b16 %v3513
  %v3537 = vpack.c.b16 %v3530, %v3529
  %v3538 = vpack.c.b16 %v3532, %v3531
  %v3539 = vpack.c.b16 %v3534, %v3533
  %v3540 = vpack.c.b16 %v3536, %v3535
  %vm3545 = vcmask 523264
  %v3547 = vsel %vm3545, %v3505, 0
  %3549 = vmatprep.subr.bf16.mxu0 0
  %3550 = vmatpush1.bf16.msra.mxu0 %v3537
  %3551 = vmatprep.subr.bf16.mxu0 0
  %3552 = vmatpush1.bf16.msra.mxu0 %v3538
  %3553 = vmatprep.subr.bf16.mxu0 0
  %3554 = vmatpush1.bf16.msra.mxu0 %v3539
  %3555 = vmatprep.subr.bf16.mxu0 0
  %3556 = vmatpush1.bf16.msra.mxu0 %v3540
  %3557 = vmatprep.subr.bf16.mxu0 0
  %3558 = vmatpush1.bf16.msra.mxu0 0
  %3559 = vmatprep.subr.bf16.mxu0 0
  %3560 = vmatpush1.bf16.msra.mxu0 0
  %3561 = vmatprep.subr.bf16.mxu0 0
  %3562 = vmatpush1.bf16.msra.mxu0 0
  %3563 = vmatprep.subr.bf16.mxu0 0
  %3564 = vmatpush1.bf16.msra.mxu0 0
  %3565 = vmatprep.subr.bf16.mxu0 0
  %3566 = vmatpush1.bf16.msra.mxu0 0
  %3567 = vmatprep.subr.bf16.mxu0 0
  %3568 = vmatpush1.bf16.msra.mxu0 0
  %3569 = vmatprep.subr.bf16.mxu0 0
  %3570 = vmatpush1.bf16.msra.mxu0 0
  %3571 = vmatprep.subr.bf16.mxu0 0
  %3572 = vmatpush1.bf16.msra.mxu0 0
  %3573 = vmatprep.subr.bf16.mxu0 0
  %3574 = vmatpush1.bf16.msra.mxu0 0
  %3575 = vmatprep.subr.bf16.mxu0 0
  %3576 = vmatpush1.bf16.msra.mxu0 0
  %3577 = vmatprep.subr.bf16.mxu0 0
  %3578 = vmatpush1.bf16.msra.mxu0 0
  %3579 = vmatprep.subr.bf16.mxu0 0
  %3580 = vmatpush1.bf16.msra.mxu0 0
  %3581 = vmatprep.mubr.bf16.mxu0 0
  %3582 = vmatmul.mubr.bf16.gmra.mrb[0].mxu0 %v3547
  %v3583 = vpop.f32.mrb[0].mxu0
  %v3584 = vadd.f32 %v3519, %v3583
  %v3585 = vpop.f32.mrb[0].mxu0
  %v3586 = vpop.f32.mrb[0].mxu0
  %v3587 = vadd.f32 %v3519, %v3586
  %v3588 = vpop.f32.mrb[0].mxu0
  %3589 = vdwg.mxu0
  %3590 = vmax.xlane.f32.xlu0 %v3584
  %v3591 = vpop.xlane.xlu0 %3590
  %3592 = vmax.xlane.f32.xlu0 %v3587
  %v3593 = vpop.xlane.xlu0 %3592
  %v3594 = vsub.f32 %v3584, %v3591
  %v3595 = vsub.f32 %v3587, %v3593
  %v3596 = vmul.f32 %v3594, 1.442695
  %v3597 = vpow.pop %v3596
  %v3598 = vmul.f32 %v3595, 1.442695
  %v3599 = vpow.pop %v3598
  %3600 = vadd.xlane.f32.xlu0 %v3597
  %v3601 = vpop.xlane.xlu0 %3600
  %3602 = vadd.xlane.f32.xlu0 %v3599
  %v3603 = vpop.xlane.xlu0 %3602
  %v3604 = vlog2.pop %v3601
  %v3605 = vmul.f32 %v3604, 0.6931472
  %v3606 = vlog2.pop %v3603
  %v3607 = vmul.f32 %v3606, 0.6931472
  %v3608 = vsub.f32 %v3594, %v3605
  %v3609 = vsub.f32 %v3595, %v3607
  %3610 = vst [vmem:[%s9] sm:$0xff] %v3608
  %3611 = vst [vmem:[%s9 + $0x8] sm:$0xff] %v3609
  // Predicated region
  $region38: #{cnn_forward.1} parent=0 // pred_check
    _
  $region39: #{cnn_forward.1} parent=0 // pred_check_branch
    %3613 = sbr.rel (0) target = $region41
  $region40: #{cnn_forward.1} parent=0 // pred_region
    _
  $region41: #{cnn_forward.1} parent=0 // pred_fallthru
    _
  // Predicated region
  $region42: #{cnn_forward.1} parent=0 // pred_check
    _
  $region43: #{cnn_forward.1} parent=0 // pred_check_branch
    %3615 = sbr.rel (0) target = $region45
  $region44: #{cnn_forward.1} parent=0 // pred_region
    _
  $region45: #{cnn_forward.1} parent=0 // pred_fallthru
    _

</llo_original>
